<compile_context>
chip_gen: v6e
topology: v6e:2x2x1
jax: 0.10.0
libtpu: 0.0.40
codegen_flags: <defaults>
</compile_context>

<pallas_src>
import functools

import jax
import jax.numpy as jnp
from jax.experimental import pallas as pl
from jax.experimental.pallas import tpu as pltpu

# ----------------------------- small config ---------------------------------
B = 2              # batch
C = 3              # image channels
IMG = 16           # image spatial size
PATCH = 8          # patch size -> 2x2 = 4 patches
D = 128            # vision hidden size   (stand-in for 1024, lane-dense)
NH = 4             # attention heads
DH = D // NH       # head dim
LAYERS = 2         # transformer layers   (stand-in for 24)
FF = 4 * D         # MLP intermediate size
PD = 128           # projection dim       (stand-in for 768, lane-dense)
OUT = 128          # head output dim      (stand-in for 512, lane-dense)

HP = IMG // PATCH
NP = HP * HP       # number of patches (4)
SEQ = NP + 1       # valid tokens (CLS + patches) = 5
SEQ_PAD = 8        # padded to the sublane multiple
CPP = C * PATCH * PATCH
EPS = 1e-5
NEG_INF = -1e30

# ------------------------------ in-kernel helpers ----------------------------


def _ln(x, g, b):
    """LayerNorm over last dim in f32.  x: [rows, D], g/b: [1, D]."""
    x = x.astype(jnp.float32)
    mean = jnp.mean(x, axis=-1, keepdims=True)
    var = jnp.mean(jnp.square(x - mean), axis=-1, keepdims=True)
    return (x - mean) * jax.lax.rsqrt(var + EPS) * g + b


def _bf16(x):
    return x.astype(jnp.bfloat16)


# ------------------------------ fused kernel ---------------------------------


def _encoder_kernel(
    # embed params
    patch_ref, pw_ref, cls_ref, pos_ref, preg_ref, preb_ref,
    # per-layer stacked params (leading LAYERS dim, indexed by grid layer)
    ln1g_ref, ln1b_ref, wqkv_ref, bqkv_ref, wo_ref, bo_ref,
    ln2g_ref, ln2b_ref, w1_ref, b1_ref, w2_ref, b2_ref,
    # head params
    postg_ref, postb_ref, wproj_ref, mw1_ref, mb1_ref, mw2_ref, mb2_ref,
    # output + scratch
    out_ref, h_scr, attn_scr,
    *, nh, dh, n_layers, seq_valid):
  """grid = (batch, layer).  Residual stream lives in h_scr across layers."""
  layer = pl.program_id(1)
  m = SEQ_PAD
  d = nh * dh

  # ---- layer 0: embed (patch matmul + CLS + pos + pre-LN) into VMEM scratch.
  @pl.when(layer == 0)
  def _():
    patches = _bf16(patch_ref[0])                                  # (NP, CPP)
    pe = jnp.dot(patches, pw_ref[...],
                 preferred_element_type=jnp.float32)               # (NP, D)
    # Direct row writes (no sublane concat); padded pos rows are zero.
    h_scr[...] = pos_ref[...]
    h_scr[0:1, :] = h_scr[0:1, :] + cls_ref[...]
    h_scr[1:1 + NP, :] = h_scr[1:1 + NP, :] + pe
    h_scr[...] = _ln(h_scr[...], preg_ref[...], preb_ref[...])

  # ---- fused transformer encoder layer (pre-LN CLIP style), all in VMEM ----
  x = h_scr[...]                                                   # (M, D) f32

  hn = _ln(x, ln1g_ref[0], ln1b_ref[0])
  qkv = jnp.dot(_bf16(hn), wqkv_ref[0],
                preferred_element_type=jnp.float32) + bqkv_ref[0]  # (M, 3D)

  key_ok = jax.lax.broadcasted_iota(jnp.int32, (1, m), 1) < seq_valid
  for hix in range(nh):
    # 1/sqrt(dh) scale is pre-folded into the Q columns of wqkv/bqkv.
    qh = _bf16(qkv[:, hix * dh:(hix + 1) * dh])
    kh = _bf16(qkv[:, d + hix * dh: d + (hix + 1) * dh])
    vh = _bf16(qkv[:, 2 * d + hix * dh: 2 * d + (hix + 1) * dh])
    # q @ k^T via transposed contraction (no materialized transpose).
    s = jax.lax.dot_general(qh, kh, (((1,), (1,)), ((), ())),
                            preferred_element_type=jnp.float32)    # (M, M)
    s = jnp.where(key_ok, s, NEG_INF)                              # mask pad keys
    s = s - jnp.max(s, axis=-1, keepdims=True)
    p = jnp.exp(s)
    p = p * pl.reciprocal(jnp.sum(p, axis=-1, keepdims=True), approx=True)
    # Write each head's context directly into its slice of the scratch
    # (no per-head list, no lane concat, bounded live ranges).
    attn_scr[:, hix * dh:(hix + 1) * dh] = jnp.dot(
        _bf16(p), vh, preferred_element_type=jnp.float32)

  attn = jnp.dot(_bf16(attn_scr[...]), wo_ref[0],
                 preferred_element_type=jnp.float32) + bo_ref[0]
  h1 = x + attn

  hn2 = _ln(h1, ln2g_ref[0], ln2b_ref[0])
  ff = jnp.dot(_bf16(hn2), w1_ref[0],
               preferred_element_type=jnp.float32) + b1_ref[0]     # (M, FF)
  ff = ff * jax.nn.sigmoid(1.702 * ff)                             # quick_gelu
  ff = jnp.dot(_bf16(ff), w2_ref[0],
               preferred_element_type=jnp.float32) + b2_ref[0]     # (M, D)
  h_scr[...] = h1 + ff                                             # new residual

  # ---- last layer: post-LN on CLS + visual_projection + MLP head ----
  @pl.when(layer == n_layers - 1)
  def _():
    cls_tok = h_scr[0:1, :]                                        # (1, D)
    hn_cls = _ln(cls_tok, postg_ref[...], postb_ref[...])
    feats = jnp.dot(_bf16(hn_cls), wproj_ref[...],
                    preferred_element_type=jnp.float32)            # (1, PD)
    y = jnp.dot(_bf16(feats), mw1_ref[...],
                preferred_element_type=jnp.float32) + mb1_ref[...]
    y = jnp.maximum(y, 0.0)
    y = jnp.dot(_bf16(y), mw2_ref[...],
                preferred_element_type=jnp.float32) + mb2_ref[...]  # (1, OUT)
    out_ref[0] = y.astype(out_ref.dtype)


# ------------------------------ kernel wrapper --------------------------------


def clip_vit_image_encoder(params, x):
  """x: [B, C, IMG, IMG] (NCHW, float32) -> [B, OUT]."""
  Bx = x.shape[0]
  # Patch extraction (Conv2d k=s=PATCH, no bias) rewritten as a matmul over
  # [NP, C*P*P] patches with (c, ph, pw) element ordering (layout plumbing
  # done in XLA; the matmul itself runs inside the fused kernel).
  patches = (
      x.reshape(Bx, C, HP, PATCH, HP, PATCH)
      .transpose(0, 2, 4, 1, 3, 5)
      .reshape(Bx, NP, CPP)
  )

  lw = params["layers"]
  kernel = functools.partial(_encoder_kernel, nh=NH, dh=DH,
                             n_layers=LAYERS, seq_valid=SEQ)

  cst2 = lambda b, l: (0, 0)
  per_layer = lambda b, l: (l, 0, 0)
  per_batch = lambda b, l: (b, 0, 0)

  # Advisory cost estimate so XLA schedules surrounding ops sensibly.
  m = SEQ_PAD
  layer_flops = 2 * m * (D * 3 * D + 2 * m * D + D * D + 2 * D * FF)
  embed_flops = 2 * NP * CPP * D
  head_flops = 2 * (D * PD + PD * PD + PD * OUT)
  flops = Bx * (LAYERS * layer_flops + embed_flops + head_flops)
  transcendentals = Bx * LAYERS * (NH * m * m + m * FF)
  param_bytes = sum(int(v.size) * v.dtype.itemsize
                    for v in jax.tree_util.tree_leaves(params))
  bytes_accessed = int(patches.size * 4 + Bx * OUT * 4 + param_bytes)
  cost = pl.CostEstimate(flops=int(flops),
                         transcendentals=int(transcendentals),
                         bytes_accessed=bytes_accessed)

  out3 = pl.pallas_call(
      kernel,
      out_shape=jax.ShapeDtypeStruct((Bx, 1, OUT), jnp.float32),
      grid=(Bx, LAYERS),
      in_specs=[
          pl.BlockSpec((1, NP, CPP), per_batch),        # patches
          pl.BlockSpec((CPP, D), cst2),                 # patch conv weight
          pl.BlockSpec((1, D), cst2),                   # class embedding
          pl.BlockSpec((SEQ_PAD, D), cst2),             # position embedding
          pl.BlockSpec((1, D), cst2),                   # pre_ln gamma
          pl.BlockSpec((1, D), cst2),                   # pre_ln beta
          pl.BlockSpec((1, 1, D), per_layer),           # ln1_g
          pl.BlockSpec((1, 1, D), per_layer),           # ln1_b
          pl.BlockSpec((1, D, 3 * D), per_layer),       # wqkv
          pl.BlockSpec((1, 1, 3 * D), per_layer),       # bqkv
          pl.BlockSpec((1, D, D), per_layer),           # wo
          pl.BlockSpec((1, 1, D), per_layer),           # bo
          pl.BlockSpec((1, 1, D), per_layer),           # ln2_g
          pl.BlockSpec((1, 1, D), per_layer),           # ln2_b
          pl.BlockSpec((1, D, FF), per_layer),          # w_fc1
          pl.BlockSpec((1, 1, FF), per_layer),          # b_fc1
          pl.BlockSpec((1, FF, D), per_layer),          # w_fc2
          pl.BlockSpec((1, 1, D), per_layer),           # b_fc2
          pl.BlockSpec((1, D), cst2),                   # post_ln gamma
          pl.BlockSpec((1, D), cst2),                   # post_ln beta
          pl.BlockSpec((D, PD), cst2),                  # visual_projection
          pl.BlockSpec((PD, PD), cst2),                 # mlp_w1
          pl.BlockSpec((1, PD), cst2),                  # mlp_b1
          pl.BlockSpec((PD, OUT), cst2),                # mlp_w2
          pl.BlockSpec((1, OUT), cst2),                 # mlp_b2
      ],
      out_specs=pl.BlockSpec((1, 1, OUT), per_batch),
      scratch_shapes=[
          pltpu.VMEM((SEQ_PAD, D), jnp.float32),        # residual stream
          pltpu.VMEM((SEQ_PAD, D), jnp.float32),        # per-head attn ctx
      ],
      compiler_params=pltpu.CompilerParams(
          dimension_semantics=("parallel", "arbitrary")),
      cost_estimate=cost,
  )(patches, params["patch_w"], params["cls"], params["pos"],
    params["pre_ln_g"], params["pre_ln_b"],
    lw["ln1_g"], lw["ln1_b"], lw["wqkv"], lw["bqkv"], lw["wo"], lw["bo"],
    lw["ln2_g"], lw["ln2_b"], lw["w_fc1"], lw["b_fc1"], lw["w_fc2"],
    lw["b_fc2"],
    params["post_ln_g"], params["post_ln_b"], params["w_proj"],
    params["mlp_w1"], params["mlp_b1"], params["mlp_w2"], params["mlp_b2"])
  return out3[:, 0, :]


# ------------------------------ parameters ----------------------------------
# TODO(synk): 'openai/clip-vit-large-patch14' pretrained weights cannot be
# loaded here; deterministic synthetic initialization stands in for them.


def init_params(key):
  def nrm(k, shape, std=0.02):
    return (std * jax.random.normal(k, shape, dtype=jnp.float32)).astype(
        jnp.bfloat16)

  keys = iter(jax.random.split(key, 16))
  scale = DH ** -0.5

  pos_valid = 0.02 * jax.random.normal(next(keys), (SEQ, D), jnp.float32)
  pos = jnp.zeros((SEQ_PAD, D), jnp.float32).at[:SEQ].set(pos_valid)

  # Fused [wq | wk | wv]; fold the 1/sqrt(DH) attention scale into the Q
  # columns (weights + bias) once at init time.
  wqkv_f = 0.02 * jax.random.normal(next(keys), (LAYERS, D, 3 * D),
                                    jnp.float32)
  wqkv_f = wqkv_f.at[:, :, :D].multiply(scale)
  bqkv = jnp.zeros((LAYERS, 1, 3 * D), jnp.float32)
  bqkv = bqkv.at[:, :, :D].multiply(scale)    # no-op for zeros; kept for clarity

  p = {
      "patch_w": nrm(next(keys), (CPP, D)),
      "cls": 0.02 * jax.random.normal(next(keys), (1, D), jnp.float32),
      "pos": pos,
      "pre_ln_g": jnp.ones((1, D), jnp.float32),
      "pre_ln_b": jnp.zeros((1, D), jnp.float32),
      "post_ln_g": jnp.ones((1, D), jnp.float32),
      "post_ln_b": jnp.zeros((1, D), jnp.float32),
      "w_proj": nrm(next(keys), (D, PD)),       # visual_projection, no bias
      "mlp_w1": nrm(next(keys), (PD, PD)),
      "mlp_b1": jnp.zeros((1, PD), jnp.float32),
      "mlp_w2": nrm(next(keys), (PD, OUT)),
      "mlp_b2": jnp.zeros((1, OUT), jnp.float32),
      "layers": {
          "ln1_g": jnp.ones((LAYERS, 1, D), jnp.float32),
          "ln1_b": jnp.zeros((LAYERS, 1, D), jnp.float32),
          "wqkv": wqkv_f.astype(jnp.bfloat16),
          "bqkv": bqkv,
          "wo": nrm(next(keys), (LAYERS, D, D)),
          "bo": jnp.zeros((LAYERS, 1, D), jnp.float32),
          "ln2_g": jnp.ones((LAYERS, 1, D), jnp.float32),
          "ln2_b": jnp.zeros((LAYERS, 1, D), jnp.float32),
          "w_fc1": nrm(next(keys), (LAYERS, D, FF)),
          "b_fc1": jnp.zeros((LAYERS, 1, FF), jnp.float32),
          "w_fc2": nrm(next(keys), (LAYERS, FF, D)),
          "b_fc2": jnp.zeros((LAYERS, 1, D), jnp.float32),
      },
  }
  return p


# --------------------------------- main --------------------------------------

if __name__ == "__main__":
  key = jax.random.PRNGKey(0)
  k_param, k_x = jax.random.split(key)
  params = init_params(k_param)
  x = jax.random.normal(k_x, (B, C, IMG, IMG), dtype=jnp.float32)

  fwd = jax.jit(clip_vit_image_encoder)
  out = fwd(params, x)
  out = jax.block_until_ready(out)
  assert out.shape == (B, OUT), out.shape
  assert jnp.all(jnp.isfinite(out))
  print("KERNEL_OK")
</pallas_src>

<mosaic_0001>
module attributes {stable_mosaic.version = 11 : i64} {
  func.func @_encoder_kernel(%arg0: i32, %arg1: i32, %arg2: memref<1x4x192xf32, #tpu.memory_space<vmem>>, %arg3: memref<192x128xbf16, #tpu.memory_space<vmem>>, %arg4: memref<1x128xf32, #tpu.memory_space<vmem>>, %arg5: memref<8x128xf32, #tpu.memory_space<vmem>>, %arg6: memref<1x128xf32, #tpu.memory_space<vmem>>, %arg7: memref<1x128xf32, #tpu.memory_space<vmem>>, %arg8: memref<1x1x128xf32, #tpu.memory_space<vmem>>, %arg9: memref<1x1x128xf32, #tpu.memory_space<vmem>>, %arg10: memref<1x128x384xbf16, #tpu.memory_space<vmem>>, %arg11: memref<1x1x384xf32, #tpu.memory_space<vmem>>, %arg12: memref<1x128x128xbf16, #tpu.memory_space<vmem>>, %arg13: memref<1x1x128xf32, #tpu.memory_space<vmem>>, %arg14: memref<1x1x128xf32, #tpu.memory_space<vmem>>, %arg15: memref<1x1x128xf32, #tpu.memory_space<vmem>>, %arg16: memref<1x128x512xbf16, #tpu.memory_space<vmem>>, %arg17: memref<1x1x512xf32, #tpu.memory_space<vmem>>, %arg18: memref<1x512x128xbf16, #tpu.memory_space<vmem>>, %arg19: memref<1x1x128xf32, #tpu.memory_space<vmem>>, %arg20: memref<1x128xf32, #tpu.memory_space<vmem>>, %arg21: memref<1x128xf32, #tpu.memory_space<vmem>>, %arg22: memref<128x128xbf16, #tpu.memory_space<vmem>>, %arg23: memref<128x128xbf16, #tpu.memory_space<vmem>>, %arg24: memref<1x128xf32, #tpu.memory_space<vmem>>, %arg25: memref<128x128xbf16, #tpu.memory_space<vmem>>, %arg26: memref<1x128xf32, #tpu.memory_space<vmem>>, %arg27: memref<1x1x128xf32, #tpu.memory_space<vmem>>, %arg28: memref<8x128xf32, #tpu.memory_space<vmem>>, %arg29: memref<8x128xf32, #tpu.memory_space<vmem>>) attributes {dimension_semantics = [#tpu.dimension_semantics<parallel>, #tpu.dimension_semantics<arbitrary>], iteration_bounds = array<i64: 2, 2>, scalar_prefetch = 0 : i64, scratch_operands = 2 : i64, tpu.core_type = #tpu.core_type<tc>, window_params = [{transform_indices = @transform_0, window_bounds = array<i64: 1, 4, 192>}, {pipeline_mode = #tpu.pipeline_mode<synchronous>, transform_indices = @transform_1, window_bounds = array<i64: 192, 128>}, {pipeline_mode = #tpu.pipeline_mode<synchronous>, transform_indices = @transform_2, window_bounds = array<i64: 1, 128>}, {pipeline_mode = #tpu.pipeline_mode<synchronous>, transform_indices = @transform_3, window_bounds = array<i64: 8, 128>}, {pipeline_mode = #tpu.pipeline_mode<synchronous>, transform_indices = @transform_4, window_bounds = array<i64: 1, 128>}, {pipeline_mode = #tpu.pipeline_mode<synchronous>, transform_indices = @transform_5, window_bounds = array<i64: 1, 128>}, {transform_indices = @transform_6, window_bounds = array<i64: 1, 1, 128>}, {transform_indices = @transform_7, window_bounds = array<i64: 1, 1, 128>}, {transform_indices = @transform_8, window_bounds = array<i64: 1, 128, 384>}, {transform_indices = @transform_9, window_bounds = array<i64: 1, 1, 384>}, {transform_indices = @transform_10, window_bounds = array<i64: 1, 128, 128>}, {transform_indices = @transform_11, window_bounds = array<i64: 1, 1, 128>}, {transform_indices = @transform_12, window_bounds = array<i64: 1, 1, 128>}, {transform_indices = @transform_13, window_bounds = array<i64: 1, 1, 128>}, {transform_indices = @transform_14, window_bounds = array<i64: 1, 128, 512>}, {transform_indices = @transform_15, window_bounds = array<i64: 1, 1, 512>}, {transform_indices = @transform_16, window_bounds = array<i64: 1, 512, 128>}, {transform_indices = @transform_17, window_bounds = array<i64: 1, 1, 128>}, {pipeline_mode = #tpu.pipeline_mode<synchronous>, transform_indices = @transform_18, window_bounds = array<i64: 1, 128>}, {pipeline_mode = #tpu.pipeline_mode<synchronous>, transform_indices = @transform_19, window_bounds = array<i64: 1, 128>}, {pipeline_mode = #tpu.pipeline_mode<synchronous>, transform_indices = @transform_20, window_bounds = array<i64: 128, 128>}, {pipeline_mode = #tpu.pipeline_mode<synchronous>, transform_indices = @transform_21, window_bounds = array<i64: 128, 128>}, {pipeline_mode = #tpu.pipeline_mode<synchronous>, transform_indices = @transform_22, window_bounds = array<i64: 1, 128>}, {pipeline_mode = #tpu.pipeline_mode<synchronous>, transform_indices = @transform_23, window_bounds = array<i64: 128, 128>}, {pipeline_mode = #tpu.pipeline_mode<synchronous>, transform_indices = @transform_24, window_bounds = array<i64: 1, 128>}, {transform_indices = @transform_25, window_bounds = array<i64: 1, 1, 128>}]} {
    %c0_i32 = arith.constant 0 : i32
    %0 = arith.cmpi eq, %arg1, %c0_i32 : i32
    %1 = arith.extui %0 : i1 to i32
    %c0_i32_0 = arith.constant 0 : i32
    %2 = arith.cmpi ne, %1, %c0_i32_0 : i32
    scf.if %2 {
      %c0_83 = arith.constant 0 : index
      %c0_84 = arith.constant 0 : index
      %c0_85 = arith.constant 0 : index
      %202 = vector.load %arg2[%c0_83, %c0_84, %c0_85] : memref<1x4x192xf32, #tpu.memory_space<vmem>>, vector<1x4x192xf32>
      %203 = vector.shape_cast %202 : vector<1x4x192xf32> to vector<4x192xf32>
      %204 = arith.truncf %203 : vector<4x192xf32> to vector<4x192xbf16>
      %c0_86 = arith.constant 0 : index
      %c0_87 = arith.constant 0 : index
      %205 = vector.load %arg3[%c0_86, %c0_87] : memref<192x128xbf16, #tpu.memory_space<vmem>>, vector<192x128xbf16>
      %cst_88 = arith.constant dense<0.000000e+00> : vector<4x128xf32>
      %206 = tpu.matmul %204, %205, %cst_88 {dimension_numbers = #tpu.dot_dimension_numbers<[1], [0], [0], [1], [0, 0, 1, 1], [], []>} : vector<4x192xbf16>, vector<192x128xbf16>, vector<4x128xf32> -> vector<4x128xf32>
      %c0_89 = arith.constant 0 : index
      %c0_90 = arith.constant 0 : index
      %207 = vector.load %arg5[%c0_89, %c0_90] : memref<8x128xf32, #tpu.memory_space<vmem>>, vector<8x128xf32>
      %c0_91 = arith.constant 0 : index
      %c0_92 = arith.constant 0 : index
      %208 = vector.load %arg28[%c0_91, %c0_92] : memref<8x128xf32, #tpu.memory_space<vmem>>, vector<8x128xf32>
      tpu.vector_store %arg28[%c0_91, %c0_92], %207 {strides = array<i32>} : memref<8x128xf32, #tpu.memory_space<vmem>>, vector<8x128xf32>,
      %c0_93 = arith.constant 0 : index
      %c0_94 = arith.constant 0 : index
      %209 = vector.load %arg28[%c0_93, %c0_94] : memref<8x128xf32, #tpu.memory_space<vmem>>, vector<1x128xf32>
      %c0_95 = arith.constant 0 : index
      %c0_96 = arith.constant 0 : index
      %210 = vector.load %arg4[%c0_95, %c0_96] : memref<1x128xf32, #tpu.memory_space<vmem>>, vector<1x128xf32>
      %211 = arith.addf %209, %210 : vector<1x128xf32>
      %c0_97 = arith.constant 0 : index
      %c0_98 = arith.constant 0 : index
      %212 = vector.load %arg28[%c0_97, %c0_98] : memref<8x128xf32, #tpu.memory_space<vmem>>, vector<1x128xf32>
      tpu.vector_store %arg28[%c0_97, %c0_98], %211 {strides = array<i32>} : memref<8x128xf32, #tpu.memory_space<vmem>>, vector<1x128xf32>,
      %c1 = arith.constant 1 : index
      %c0_99 = arith.constant 0 : index
      %213 = vector.load %arg28[%c1, %c0_99] : memref<8x128xf32, #tpu.memory_space<vmem>>, vector<4x128xf32>
      %214 = arith.addf %213, %206 : vector<4x128xf32>
      %c1_100 = arith.constant 1 : index
      %c0_101 = arith.constant 0 : index
      %215 = vector.load %arg28[%c1_100, %c0_101] : memref<8x128xf32, #tpu.memory_space<vmem>>, vector<4x128xf32>
      tpu.vector_store %arg28[%c1_100, %c0_101], %214 {strides = array<i32>} : memref<8x128xf32, #tpu.memory_space<vmem>>, vector<4x128xf32>,
      %c0_102 = arith.constant 0 : index
      %c0_103 = arith.constant 0 : index
      %216 = vector.load %arg28[%c0_102, %c0_103] : memref<8x128xf32, #tpu.memory_space<vmem>>, vector<8x128xf32>
      %c0_104 = arith.constant 0 : index
      %c0_105 = arith.constant 0 : index
      %217 = vector.load %arg6[%c0_104, %c0_105] : memref<1x128xf32, #tpu.memory_space<vmem>>, vector<1x128xf32>
      %c0_106 = arith.constant 0 : index
      %c0_107 = arith.constant 0 : index
      %218 = vector.load %arg7[%c0_106, %c0_107] : memref<1x128xf32, #tpu.memory_space<vmem>>, vector<1x128xf32>
      %cst_108 = arith.constant dense<0.000000e+00> : vector<8xf32>
      %219 = vector.multi_reduction <add>, %216, %cst_108 [1] : vector<8x128xf32> to vector<8xf32>
      %220 = vector.shape_cast %219 : vector<8xf32> to vector<8x1xf32>
      %cst_109 = arith.constant 1.280000e+02 : f32
      %221 = vector.broadcast %cst_109 : f32 to vector<8x1xf32>
      %222 = arith.divf %220, %221 : vector<8x1xf32>
      %223 = vector.broadcast %222 : vector<8x1xf32> to vector<8x128xf32>
      %224 = arith.subf %216, %223 : vector<8x128xf32>
      %225 = arith.mulf %224, %224 : vector<8x128xf32>
      %cst_110 = arith.constant dense<0.000000e+00> : vector<8xf32>
      %226 = vector.multi_reduction <add>, %225, %cst_110 [1] : vector<8x128xf32> to vector<8xf32>
      %227 = vector.shape_cast %226 : vector<8xf32> to vector<8x1xf32>
      %cst_111 = arith.constant 1.280000e+02 : f32
      %228 = vector.broadcast %cst_111 : f32 to vector<8x1xf32>
      %229 = arith.divf %227, %228 : vector<8x1xf32>
      %230 = vector.broadcast %222 : vector<8x1xf32> to vector<8x128xf32>
      %231 = arith.subf %216, %230 : vector<8x128xf32>
      %cst_112 = arith.constant 9.99999974E-6 : f32
      %232 = vector.broadcast %cst_112 : f32 to vector<8x1xf32>
      %233 = arith.addf %229, %232 : vector<8x1xf32>
      %234 = math.rsqrt %233 : vector<8x1xf32>
      %235 = vector.broadcast %234 : vector<8x1xf32> to vector<8x128xf32>
      %236 = arith.mulf %231, %235 : vector<8x128xf32>
      %237 = vector.broadcast %217 : vector<1x128xf32> to vector<8x128xf32>
      %238 = arith.mulf %236, %237 : vector<8x128xf32>
      %239 = vector.broadcast %218 : vector<1x128xf32> to vector<8x128xf32>
      %240 = arith.addf %238, %239 : vector<8x128xf32>
      %c0_113 = arith.constant 0 : index
      %c0_114 = arith.constant 0 : index
      %241 = vector.load %arg28[%c0_113, %c0_114] : memref<8x128xf32, #tpu.memory_space<vmem>>, vector<8x128xf32>
      tpu.vector_store %arg28[%c0_113, %c0_114], %240 {strides = array<i32>} : memref<8x128xf32, #tpu.memory_space<vmem>>, vector<8x128xf32>,
    } else {
    }
    %c0 = arith.constant 0 : index
    %c0_1 = arith.constant 0 : index
    %3 = vector.load %arg28[%c0, %c0_1] : memref<8x128xf32, #tpu.memory_space<vmem>>, vector<8x128xf32>
    %c0_2 = arith.constant 0 : index
    %c0_3 = arith.constant 0 : index
    %c0_4 = arith.constant 0 : index
    %4 = vector.load %arg8[%c0_2, %c0_3, %c0_4] : memref<1x1x128xf32, #tpu.memory_space<vmem>>, vector<1x1x128xf32>
    %5 = vector.shape_cast %4 : vector<1x1x128xf32> to vector<1x128xf32>
    %c0_5 = arith.constant 0 : index
    %c0_6 = arith.constant 0 : index
    %c0_7 = arith.constant 0 : index
    %6 = vector.load %arg9[%c0_5, %c0_6, %c0_7] : memref<1x1x128xf32, #tpu.memory_space<vmem>>, vector<1x1x128xf32>
    %7 = vector.shape_cast %6 : vector<1x1x128xf32> to vector<1x128xf32>
    %cst = arith.constant dense<0.000000e+00> : vector<8xf32>
    %8 = vector.multi_reduction <add>, %3, %cst [1] : vector<8x128xf32> to vector<8xf32>
    %9 = vector.shape_cast %8 : vector<8xf32> to vector<8x1xf32>
    %cst_8 = arith.constant 1.280000e+02 : f32
    %10 = vector.broadcast %cst_8 : f32 to vector<8x1xf32>
    %11 = arith.divf %9, %10 : vector<8x1xf32>
    %12 = vector.broadcast %11 : vector<8x1xf32> to vector<8x128xf32>
    %13 = arith.subf %3, %12 : vector<8x128xf32>
    %14 = arith.mulf %13, %13 : vector<8x128xf32>
    %cst_9 = arith.constant dense<0.000000e+00> : vector<8xf32>
    %15 = vector.multi_reduction <add>, %14, %cst_9 [1] : vector<8x128xf32> to vector<8xf32>
    %16 = vector.shape_cast %15 : vector<8xf32> to vector<8x1xf32>
    %cst_10 = arith.constant 1.280000e+02 : f32
    %17 = vector.broadcast %cst_10 : f32 to vector<8x1xf32>
    %18 = arith.divf %16, %17 : vector<8x1xf32>
    %19 = vector.broadcast %11 : vector<8x1xf32> to vector<8x128xf32>
    %20 = arith.subf %3, %19 : vector<8x128xf32>
    %cst_11 = arith.constant 9.99999974E-6 : f32
    %21 = vector.broadcast %cst_11 : f32 to vector<8x1xf32>
    %22 = arith.addf %18, %21 : vector<8x1xf32>
    %23 = math.rsqrt %22 : vector<8x1xf32>
    %24 = vector.broadcast %23 : vector<8x1xf32> to vector<8x128xf32>
    %25 = arith.mulf %20, %24 : vector<8x128xf32>
    %26 = vector.broadcast %5 : vector<1x128xf32> to vector<8x128xf32>
    %27 = arith.mulf %25, %26 : vector<8x128xf32>
    %28 = vector.broadcast %7 : vector<1x128xf32> to vector<8x128xf32>
    %29 = arith.addf %27, %28 : vector<8x128xf32>
    %30 = arith.truncf %29 : vector<8x128xf32> to vector<8x128xbf16>
    %c0_12 = arith.constant 0 : index
    %c0_13 = arith.constant 0 : index
    %c0_14 = arith.constant 0 : index
    %31 = vector.load %arg10[%c0_12, %c0_13, %c0_14] : memref<1x128x384xbf16, #tpu.memory_space<vmem>>, vector<1x128x384xbf16>
    %32 = vector.shape_cast %31 : vector<1x128x384xbf16> to vector<128x384xbf16>
    %cst_15 = arith.constant dense<0.000000e+00> : vector<8x384xf32>
    %33 = tpu.matmul %30, %32, %cst_15 {dimension_numbers = #tpu.dot_dimension_numbers<[1], [0], [0], [1], [0, 0, 1, 1], [], []>} : vector<8x128xbf16>, vector<128x384xbf16>, vector<8x384xf32> -> vector<8x384xf32>
    %c0_16 = arith.constant 0 : index
    %c0_17 = arith.constant 0 : index
    %c0_18 = arith.constant 0 : index
    %34 = vector.load %arg11[%c0_16, %c0_17, %c0_18] : memref<1x1x384xf32, #tpu.memory_space<vmem>>, vector<1x1x384xf32>
    %35 = vector.shape_cast %34 : vector<1x1x384xf32> to vector<1x384xf32>
    %36 = vector.broadcast %35 : vector<1x384xf32> to vector<8x384xf32>
    %37 = arith.addf %33, %36 : vector<8x384xf32>
    %38 = tpu.iota {dimensions = array<i32: 1>} : vector<1x8xi32>
    %c5_i32 = arith.constant 5 : i32
    %39 = vector.broadcast %c5_i32 : i32 to vector<1x8xi32>
    %40 = arith.cmpi slt, %38, %39 : vector<1x8xi32>
    %41 = vector.extract_strided_slice %37 {offsets = [0, 0], sizes = [8, 32], strides = [1, 1]} : vector<8x384xf32> to vector<8x32xf32>
    %42 = arith.truncf %41 : vector<8x32xf32> to vector<8x32xbf16>
    %43 = vector.extract_strided_slice %37 {offsets = [0, 128], sizes = [8, 32], strides = [1, 1]} : vector<8x384xf32> to vector<8x32xf32>
    %44 = arith.truncf %43 : vector<8x32xf32> to vector<8x32xbf16>
    %45 = vector.extract_strided_slice %37 {offsets = [0, 256], sizes = [8, 32], strides = [1, 1]} : vector<8x384xf32> to vector<8x32xf32>
    %46 = arith.truncf %45 : vector<8x32xf32> to vector<8x32xbf16>
    %cst_19 = arith.constant dense<0.000000e+00> : vector<8x8xf32>
    %47 = tpu.matmul %42, %44, %cst_19 {dimension_numbers = #tpu.dot_dimension_numbers<[1], [1], [0], [0], [0, 0, 1, 0], [], []>} : vector<8x32xbf16>, vector<8x32xbf16>, vector<8x8xf32> -> vector<8x8xf32>
    %cst_20 = arith.constant -1.000000e+30 : f32
    %48 = vector.shape_cast %40 : vector<1x8xi1> to vector<1x8xi1>
    %49 = vector.broadcast %48 : vector<1x8xi1> to vector<8x8xi1>
    %50 = vector.broadcast %cst_20 : f32 to vector<8x8xf32>
    %51 = arith.select %49, %47, %50 : vector<8x8xi1>, vector<8x8xf32>
    %cst_21 = arith.constant dense<0xFF800000> : vector<8xf32>
    %52 = vector.multi_reduction <maximumf>, %51, %cst_21 [1] : vector<8x8xf32> to vector<8xf32>
    %53 = vector.shape_cast %52 : vector<8xf32> to vector<8x1xf32>
    %54 = vector.broadcast %53 : vector<8x1xf32> to vector<8x8xf32>
    %55 = arith.subf %51, %54 : vector<8x8xf32>
    %56 = math.exp %55 : vector<8x8xf32>
    %cst_22 = arith.constant dense<0.000000e+00> : vector<8xf32>
    %57 = vector.multi_reduction <add>, %56, %cst_22 [1] : vector<8x8xf32> to vector<8xf32>
    %58 = vector.shape_cast %57 : vector<8xf32> to vector<8x1xf32>
    %59 = tpu.reciprocal %58 {approx = true} : vector<8x1xf32> -> vector<8x1xf32>
    %60 = vector.broadcast %59 : vector<8x1xf32> to vector<8x8xf32>
    %61 = arith.mulf %56, %60 : vector<8x8xf32>
    %62 = arith.truncf %61 : vector<8x8xf32> to vector<8x8xbf16>
    %cst_23 = arith.constant dense<0.000000e+00> : vector<8x32xf32>
    %63 = tpu.matmul %62, %46, %cst_23 {dimension_numbers = #tpu.dot_dimension_numbers<[1], [0], [0], [1], [0, 0, 1, 1], [], []>} : vector<8x8xbf16>, vector<8x32xbf16>, vector<8x32xf32> -> vector<8x32xf32>
    %c0_24 = arith.constant 0 : index
    %c0_25 = arith.constant 0 : index
    %64 = vector.load %arg29[%c0_24, %c0_25] : memref<8x128xf32, #tpu.memory_space<vmem>>, vector<8x32xf32>
    tpu.vector_store %arg29[%c0_24, %c0_25], %63 {strides = array<i32>} : memref<8x128xf32, #tpu.memory_space<vmem>>, vector<8x32xf32>,
    %65 = vector.extract_strided_slice %37 {offsets = [0, 32], sizes = [8, 32], strides = [1, 1]} : vector<8x384xf32> to vector<8x32xf32>
    %66 = arith.truncf %65 : vector<8x32xf32> to vector<8x32xbf16>
    %67 = vector.extract_strided_slice %37 {offsets = [0, 160], sizes = [8, 32], strides = [1, 1]} : vector<8x384xf32> to vector<8x32xf32>
    %68 = arith.truncf %67 : vector<8x32xf32> to vector<8x32xbf16>
    %69 = vector.extract_strided_slice %37 {offsets = [0, 288], sizes = [8, 32], strides = [1, 1]} : vector<8x384xf32> to vector<8x32xf32>
    %70 = arith.truncf %69 : vector<8x32xf32> to vector<8x32xbf16>
    %cst_26 = arith.constant dense<0.000000e+00> : vector<8x8xf32>
    %71 = tpu.matmul %66, %68, %cst_26 {dimension_numbers = #tpu.dot_dimension_numbers<[1], [1], [0], [0], [0, 0, 1, 0], [], []>} : vector<8x32xbf16>, vector<8x32xbf16>, vector<8x8xf32> -> vector<8x8xf32>
    %cst_27 = arith.constant -1.000000e+30 : f32
    %72 = vector.shape_cast %40 : vector<1x8xi1> to vector<1x8xi1>
    %73 = vector.broadcast %72 : vector<1x8xi1> to vector<8x8xi1>
    %74 = vector.broadcast %cst_27 : f32 to vector<8x8xf32>
    %75 = arith.select %73, %71, %74 : vector<8x8xi1>, vector<8x8xf32>
    %cst_28 = arith.constant dense<0xFF800000> : vector<8xf32>
    %76 = vector.multi_reduction <maximumf>, %75, %cst_28 [1] : vector<8x8xf32> to vector<8xf32>
    %77 = vector.shape_cast %76 : vector<8xf32> to vector<8x1xf32>
    %78 = vector.broadcast %77 : vector<8x1xf32> to vector<8x8xf32>
    %79 = arith.subf %75, %78 : vector<8x8xf32>
    %80 = math.exp %79 : vector<8x8xf32>
    %cst_29 = arith.constant dense<0.000000e+00> : vector<8xf32>
    %81 = vector.multi_reduction <add>, %80, %cst_29 [1] : vector<8x8xf32> to vector<8xf32>
    %82 = vector.shape_cast %81 : vector<8xf32> to vector<8x1xf32>
    %83 = tpu.reciprocal %82 {approx = true} : vector<8x1xf32> -> vector<8x1xf32>
    %84 = vector.broadcast %83 : vector<8x1xf32> to vector<8x8xf32>
    %85 = arith.mulf %80, %84 : vector<8x8xf32>
    %86 = arith.truncf %85 : vector<8x8xf32> to vector<8x8xbf16>
    %cst_30 = arith.constant dense<0.000000e+00> : vector<8x32xf32>
    %87 = tpu.matmul %86, %70, %cst_30 {dimension_numbers = #tpu.dot_dimension_numbers<[1], [0], [0], [1], [0, 0, 1, 1], [], []>} : vector<8x8xbf16>, vector<8x32xbf16>, vector<8x32xf32> -> vector<8x32xf32>
    %c0_31 = arith.constant 0 : index
    %c32 = arith.constant 32 : index
    %88 = vector.load %arg29[%c0_31, %c32] : memref<8x128xf32, #tpu.memory_space<vmem>>, vector<8x32xf32>
    tpu.vector_store %arg29[%c0_31, %c32], %87 {strides = array<i32>} : memref<8x128xf32, #tpu.memory_space<vmem>>, vector<8x32xf32>,
    %89 = vector.extract_strided_slice %37 {offsets = [0, 64], sizes = [8, 32], strides = [1, 1]} : vector<8x384xf32> to vector<8x32xf32>
    %90 = arith.truncf %89 : vector<8x32xf32> to vector<8x32xbf16>
    %91 = vector.extract_strided_slice %37 {offsets = [0, 192], sizes = [8, 32], strides = [1, 1]} : vector<8x384xf32> to vector<8x32xf32>
    %92 = arith.truncf %91 : vector<8x32xf32> to vector<8x32xbf16>
    %93 = vector.extract_strided_slice %37 {offsets = [0, 320], sizes = [8, 32], strides = [1, 1]} : vector<8x384xf32> to vector<8x32xf32>
    %94 = arith.truncf %93 : vector<8x32xf32> to vector<8x32xbf16>
    %cst_32 = arith.constant dense<0.000000e+00> : vector<8x8xf32>
    %95 = tpu.matmul %90, %92, %cst_32 {dimension_numbers = #tpu.dot_dimension_numbers<[1], [1], [0], [0], [0, 0, 1, 0], [], []>} : vector<8x32xbf16>, vector<8x32xbf16>, vector<8x8xf32> -> vector<8x8xf32>
    %cst_33 = arith.constant -1.000000e+30 : f32
    %96 = vector.shape_cast %40 : vector<1x8xi1> to vector<1x8xi1>
    %97 = vector.broadcast %96 : vector<1x8xi1> to vector<8x8xi1>
    %98 = vector.broadcast %cst_33 : f32 to vector<8x8xf32>
    %99 = arith.select %97, %95, %98 : vector<8x8xi1>, vector<8x8xf32>
    %cst_34 = arith.constant dense<0xFF800000> : vector<8xf32>
    %100 = vector.multi_reduction <maximumf>, %99, %cst_34 [1] : vector<8x8xf32> to vector<8xf32>
    %101 = vector.shape_cast %100 : vector<8xf32> to vector<8x1xf32>
    %102 = vector.broadcast %101 : vector<8x1xf32> to vector<8x8xf32>
    %103 = arith.subf %99, %102 : vector<8x8xf32>
    %104 = math.exp %103 : vector<8x8xf32>
    %cst_35 = arith.constant dense<0.000000e+00> : vector<8xf32>
    %105 = vector.multi_reduction <add>, %104, %cst_35 [1] : vector<8x8xf32> to vector<8xf32>
    %106 = vector.shape_cast %105 : vector<8xf32> to vector<8x1xf32>
    %107 = tpu.reciprocal %106 {approx = true} : vector<8x1xf32> -> vector<8x1xf32>
    %108 = vector.broadcast %107 : vector<8x1xf32> to vector<8x8xf32>
    %109 = arith.mulf %104, %108 : vector<8x8xf32>
    %110 = arith.truncf %109 : vector<8x8xf32> to vector<8x8xbf16>
    %cst_36 = arith.constant dense<0.000000e+00> : vector<8x32xf32>
    %111 = tpu.matmul %110, %94, %cst_36 {dimension_numbers = #tpu.dot_dimension_numbers<[1], [0], [0], [1], [0, 0, 1, 1], [], []>} : vector<8x8xbf16>, vector<8x32xbf16>, vector<8x32xf32> -> vector<8x32xf32>
    %c0_37 = arith.constant 0 : index
    %c64 = arith.constant 64 : index
    %112 = vector.load %arg29[%c0_37, %c64] : memref<8x128xf32, #tpu.memory_space<vmem>>, vector<8x32xf32>
    tpu.vector_store %arg29[%c0_37, %c64], %111 {strides = array<i32>} : memref<8x128xf32, #tpu.memory_space<vmem>>, vector<8x32xf32>,
    %113 = vector.extract_strided_slice %37 {offsets = [0, 96], sizes = [8, 32], strides = [1, 1]} : vector<8x384xf32> to vector<8x32xf32>
    %114 = arith.truncf %113 : vector<8x32xf32> to vector<8x32xbf16>
    %115 = vector.extract_strided_slice %37 {offsets = [0, 224], sizes = [8, 32], strides = [1, 1]} : vector<8x384xf32> to vector<8x32xf32>
    %116 = arith.truncf %115 : vector<8x32xf32> to vector<8x32xbf16>
    %117 = vector.extract_strided_slice %37 {offsets = [0, 352], sizes = [8, 32], strides = [1, 1]} : vector<8x384xf32> to vector<8x32xf32>
    %118 = arith.truncf %117 : vector<8x32xf32> to vector<8x32xbf16>
    %cst_38 = arith.constant dense<0.000000e+00> : vector<8x8xf32>
    %119 = tpu.matmul %114, %116, %cst_38 {dimension_numbers = #tpu.dot_dimension_numbers<[1], [1], [0], [0], [0, 0, 1, 0], [], []>} : vector<8x32xbf16>, vector<8x32xbf16>, vector<8x8xf32> -> vector<8x8xf32>
    %cst_39 = arith.constant -1.000000e+30 : f32
    %120 = vector.shape_cast %40 : vector<1x8xi1> to vector<1x8xi1>
    %121 = vector.broadcast %120 : vector<1x8xi1> to vector<8x8xi1>
    %122 = vector.broadcast %cst_39 : f32 to vector<8x8xf32>
    %123 = arith.select %121, %119, %122 : vector<8x8xi1>, vector<8x8xf32>
    %cst_40 = arith.constant dense<0xFF800000> : vector<8xf32>
    %124 = vector.multi_reduction <maximumf>, %123, %cst_40 [1] : vector<8x8xf32> to vector<8xf32>
    %125 = vector.shape_cast %124 : vector<8xf32> to vector<8x1xf32>
    %126 = vector.broadcast %125 : vector<8x1xf32> to vector<8x8xf32>
    %127 = arith.subf %123, %126 : vector<8x8xf32>
    %128 = math.exp %127 : vector<8x8xf32>
    %cst_41 = arith.constant dense<0.000000e+00> : vector<8xf32>
    %129 = vector.multi_reduction <add>, %128, %cst_41 [1] : vector<8x8xf32> to vector<8xf32>
    %130 = vector.shape_cast %129 : vector<8xf32> to vector<8x1xf32>
    %131 = tpu.reciprocal %130 {approx = true} : vector<8x1xf32> -> vector<8x1xf32>
    %132 = vector.broadcast %131 : vector<8x1xf32> to vector<8x8xf32>
    %133 = arith.mulf %128, %132 : vector<8x8xf32>
    %134 = arith.truncf %133 : vector<8x8xf32> to vector<8x8xbf16>
    %cst_42 = arith.constant dense<0.000000e+00> : vector<8x32xf32>
    %135 = tpu.matmul %134, %118, %cst_42 {dimension_numbers = #tpu.dot_dimension_numbers<[1], [0], [0], [1], [0, 0, 1, 1], [], []>} : vector<8x8xbf16>, vector<8x32xbf16>, vector<8x32xf32> -> vector<8x32xf32>
    %c0_43 = arith.constant 0 : index
    %c96 = arith.constant 96 : index
    %136 = vector.load %arg29[%c0_43, %c96] : memref<8x128xf32, #tpu.memory_space<vmem>>, vector<8x32xf32>
    tpu.vector_store %arg29[%c0_43, %c96], %135 {strides = array<i32>} : memref<8x128xf32, #tpu.memory_space<vmem>>, vector<8x32xf32>,
    %c0_44 = arith.constant 0 : index
    %c0_45 = arith.constant 0 : index
    %137 = vector.load %arg29[%c0_44, %c0_45] : memref<8x128xf32, #tpu.memory_space<vmem>>, vector<8x128xf32>
    %138 = arith.truncf %137 : vector<8x128xf32> to vector<8x128xbf16>
    %c0_46 = arith.constant 0 : index
    %c0_47 = arith.constant 0 : index
    %c0_48 = arith.constant 0 : index
    %139 = vector.load %arg12[%c0_46, %c0_47, %c0_48] : memref<1x128x128xbf16, #tpu.memory_space<vmem>>, vector<1x128x128xbf16>
    %140 = vector.shape_cast %139 : vector<1x128x128xbf16> to vector<128x128xbf16>
    %cst_49 = arith.constant dense<0.000000e+00> : vector<8x128xf32>
    %141 = tpu.matmul %138, %140, %cst_49 {dimension_numbers = #tpu.dot_dimension_numbers<[1], [0], [0], [1], [0, 0, 1, 1], [], []>} : vector<8x128xbf16>, vector<128x128xbf16>, vector<8x128xf32> -> vector<8x128xf32>
    %c0_50 = arith.constant 0 : index
    %c0_51 = arith.constant 0 : index
    %c0_52 = arith.constant 0 : index
    %142 = vector.load %arg13[%c0_50, %c0_51, %c0_52] : memref<1x1x128xf32, #tpu.memory_space<vmem>>, vector<1x1x128xf32>
    %143 = vector.shape_cast %142 : vector<1x1x128xf32> to vector<1x128xf32>
    %144 = vector.broadcast %143 : vector<1x128xf32> to vector<8x128xf32>
    %145 = arith.addf %141, %144 : vector<8x128xf32>
    %146 = arith.addf %3, %145 : vector<8x128xf32>
    %c0_53 = arith.constant 0 : index
    %c0_54 = arith.constant 0 : index
    %c0_55 = arith.constant 0 : index
    %147 = vector.load %arg14[%c0_53, %c0_54, %c0_55] : memref<1x1x128xf32, #tpu.memory_space<vmem>>, vector<1x1x128xf32>
    %148 = vector.shape_cast %147 : vector<1x1x128xf32> to vector<1x128xf32>
    %c0_56 = arith.constant 0 : index
    %c0_57 = arith.constant 0 : index
    %c0_58 = arith.constant 0 : index
    %149 = vector.load %arg15[%c0_56, %c0_57, %c0_58] : memref<1x1x128xf32, #tpu.memory_space<vmem>>, vector<1x1x128xf32>
    %150 = vector.shape_cast %149 : vector<1x1x128xf32> to vector<1x128xf32>
    %cst_59 = arith.constant dense<0.000000e+00> : vector<8xf32>
    %151 = vector.multi_reduction <add>, %146, %cst_59 [1] : vector<8x128xf32> to vector<8xf32>
    %152 = vector.shape_cast %151 : vector<8xf32> to vector<8x1xf32>
    %cst_60 = arith.constant 1.280000e+02 : f32
    %153 = vector.broadcast %cst_60 : f32 to vector<8x1xf32>
    %154 = arith.divf %152, %153 : vector<8x1xf32>
    %155 = vector.broadcast %154 : vector<8x1xf32> to vector<8x128xf32>
    %156 = arith.subf %146, %155 : vector<8x128xf32>
    %157 = arith.mulf %156, %156 : vector<8x128xf32>
    %cst_61 = arith.constant dense<0.000000e+00> : vector<8xf32>
    %158 = vector.multi_reduction <add>, %157, %cst_61 [1] : vector<8x128xf32> to vector<8xf32>
    %159 = vector.shape_cast %158 : vector<8xf32> to vector<8x1xf32>
    %cst_62 = arith.constant 1.280000e+02 : f32
    %160 = vector.broadcast %cst_62 : f32 to vector<8x1xf32>
    %161 = arith.divf %159, %160 : vector<8x1xf32>
    %162 = vector.broadcast %154 : vector<8x1xf32> to vector<8x128xf32>
    %163 = arith.subf %146, %162 : vector<8x128xf32>
    %cst_63 = arith.constant 9.99999974E-6 : f32
    %164 = vector.broadcast %cst_63 : f32 to vector<8x1xf32>
    %165 = arith.addf %161, %164 : vector<8x1xf32>
    %166 = math.rsqrt %165 : vector<8x1xf32>
    %167 = vector.broadcast %166 : vector<8x1xf32> to vector<8x128xf32>
    %168 = arith.mulf %163, %167 : vector<8x128xf32>
    %169 = vector.broadcast %148 : vector<1x128xf32> to vector<8x128xf32>
    %170 = arith.mulf %168, %169 : vector<8x128xf32>
    %171 = vector.broadcast %150 : vector<1x128xf32> to vector<8x128xf32>
    %172 = arith.addf %170, %171 : vector<8x128xf32>
    %173 = arith.truncf %172 : vector<8x128xf32> to vector<8x128xbf16>
    %c0_64 = arith.constant 0 : index
    %c0_65 = arith.constant 0 : index
    %c0_66 = arith.constant 0 : index
    %174 = vector.load %arg16[%c0_64, %c0_65, %c0_66] : memref<1x128x512xbf16, #tpu.memory_space<vmem>>, vector<1x128x512xbf16>
    %175 = vector.shape_cast %174 : vector<1x128x512xbf16> to vector<128x512xbf16>
    %cst_67 = arith.constant dense<0.000000e+00> : vector<8x512xf32>
    %176 = tpu.matmul %173, %175, %cst_67 {dimension_numbers = #tpu.dot_dimension_numbers<[1], [0], [0], [1], [0, 0, 1, 1], [], []>} : vector<8x128xbf16>, vector<128x512xbf16>, vector<8x512xf32> -> vector<8x512xf32>
    %c0_68 = arith.constant 0 : index
    %c0_69 = arith.constant 0 : index
    %c0_70 = arith.constant 0 : index
    %177 = vector.load %arg17[%c0_68, %c0_69, %c0_70] : memref<1x1x512xf32, #tpu.memory_space<vmem>>, vector<1x1x512xf32>
    %178 = vector.shape_cast %177 : vector<1x1x512xf32> to vector<1x512xf32>
    %179 = vector.broadcast %178 : vector<1x512xf32> to vector<8x512xf32>
    %180 = arith.addf %176, %179 : vector<8x512xf32>
    %cst_71 = arith.constant 1.702000e+00 : f32
    %181 = vector.broadcast %cst_71 : f32 to vector<8x512xf32>
    %182 = arith.mulf %181, %180 : vector<8x512xf32>
    %183 = arith.negf %182 : vector<8x512xf32>
    %184 = math.exp %183 : vector<8x512xf32>
    %cst_72 = arith.constant 1.000000e+00 : f32
    %185 = vector.broadcast %cst_72 : f32 to vector<8x512xf32>
    %186 = arith.addf %185, %184 : vector<8x512xf32>
    %187 = arith.divf %185, %186 : vector<8x512xf32>
    %188 = arith.mulf %180, %187 : vector<8x512xf32>
    %189 = arith.truncf %188 : vector<8x512xf32> to vector<8x512xbf16>
    %c0_73 = arith.constant 0 : index
    %c0_74 = arith.constant 0 : index
    %c0_75 = arith.constant 0 : index
    %190 = vector.load %arg18[%c0_73, %c0_74, %c0_75] : memref<1x512x128xbf16, #tpu.memory_space<vmem>>, vector<1x512x128xbf16>
    %191 = vector.shape_cast %190 : vector<1x512x128xbf16> to vector<512x128xbf16>
    %cst_76 = arith.constant dense<0.000000e+00> : vector<8x128xf32>
    %192 = tpu.matmul %189, %191, %cst_76 {dimension_numbers = #tpu.dot_dimension_numbers<[1], [0], [0], [1], [0, 0, 1, 1], [], []>} : vector<8x512xbf16>, vector<512x128xbf16>, vector<8x128xf32> -> vector<8x128xf32>
    %c0_77 = arith.constant 0 : index
    %c0_78 = arith.constant 0 : index
    %c0_79 = arith.constant 0 : index
    %193 = vector.load %arg19[%c0_77, %c0_78, %c0_79] : memref<1x1x128xf32, #tpu.memory_space<vmem>>, vector<1x1x128xf32>
    %194 = vector.shape_cast %193 : vector<1x1x128xf32> to vector<1x128xf32>
    %195 = vector.broadcast %194 : vector<1x128xf32> to vector<8x128xf32>
    %196 = arith.addf %192, %195 : vector<8x128xf32>
    %197 = arith.addf %146, %196 : vector<8x128xf32>
    %c0_80 = arith.constant 0 : index
    %c0_81 = arith.constant 0 : index
    %198 = vector.load %arg28[%c0_80, %c0_81] : memref<8x128xf32, #tpu.memory_space<vmem>>, vector<8x128xf32>
    tpu.vector_store %arg28[%c0_80, %c0_81], %197 {strides = array<i32>} : memref<8x128xf32, #tpu.memory_space<vmem>>, vector<8x128xf32>,
    %c1_i32 = arith.constant 1 : i32
    %199 = arith.cmpi eq, %arg1, %c1_i32 : i32
    %200 = arith.extui %199 : i1 to i32
    %c0_i32_82 = arith.constant 0 : i32
    %201 = arith.cmpi ne, %200, %c0_i32_82 : i32
    scf.if %201 {
      %c0_83 = arith.constant 0 : index
      %c0_84 = arith.constant 0 : index
      %202 = vector.load %arg28[%c0_83, %c0_84] : memref<8x128xf32, #tpu.memory_space<vmem>>, vector<1x128xf32>
      %c0_85 = arith.constant 0 : index
      %c0_86 = arith.constant 0 : index
      %203 = vector.load %arg20[%c0_85, %c0_86] : memref<1x128xf32, #tpu.memory_space<vmem>>, vector<1x128xf32>
      %c0_87 = arith.constant 0 : index
      %c0_88 = arith.constant 0 : index
      %204 = vector.load %arg21[%c0_87, %c0_88] : memref<1x128xf32, #tpu.memory_space<vmem>>, vector<1x128xf32>
      %cst_89 = arith.constant dense<0.000000e+00> : vector<1xf32>
      %205 = vector.multi_reduction <add>, %202, %cst_89 [1] : vector<1x128xf32> to vector<1xf32>
      %206 = vector.shape_cast %205 : vector<1xf32> to vector<1x1xf32>
      %cst_90 = arith.constant 1.280000e+02 : f32
      %207 = vector.broadcast %cst_90 : f32 to vector<1x1xf32>
      %208 = arith.divf %206, %207 : vector<1x1xf32>
      %209 = vector.broadcast %208 : vector<1x1xf32> to vector<1x128xf32>
      %210 = arith.subf %202, %209 : vector<1x128xf32>
      %211 = arith.mulf %210, %210 : vector<1x128xf32>
      %cst_91 = arith.constant dense<0.000000e+00> : vector<1xf32>
      %212 = vector.multi_reduction <add>, %211, %cst_91 [1] : vector<1x128xf32> to vector<1xf32>
      %213 = vector.shape_cast %212 : vector<1xf32> to vector<1x1xf32>
      %cst_92 = arith.constant 1.280000e+02 : f32
      %214 = vector.broadcast %cst_92 : f32 to vector<1x1xf32>
      %215 = arith.divf %213, %214 : vector<1x1xf32>
      %216 = vector.broadcast %208 : vector<1x1xf32> to vector<1x128xf32>
      %217 = arith.subf %202, %216 : vector<1x128xf32>
      %cst_93 = arith.constant 9.99999974E-6 : f32
      %218 = vector.broadcast %cst_93 : f32 to vector<1x1xf32>
      %219 = arith.addf %215, %218 : vector<1x1xf32>
      %220 = math.rsqrt %219 : vector<1x1xf32>
      %221 = vector.broadcast %220 : vector<1x1xf32> to vector<1x128xf32>
      %222 = arith.mulf %217, %221 : vector<1x128xf32>
      %223 = arith.mulf %222, %203 : vector<1x128xf32>
      %224 = arith.addf %223, %204 : vector<1x128xf32>
      %225 = arith.truncf %224 : vector<1x128xf32> to vector<1x128xbf16>
      %c0_94 = arith.constant 0 : index
      %c0_95 = arith.constant 0 : index
      %226 = vector.load %arg22[%c0_94, %c0_95] : memref<128x128xbf16, #tpu.memory_space<vmem>>, vector<128x128xbf16>
      %cst_96 = arith.constant dense<0.000000e+00> : vector<1x128xf32>
      %227 = tpu.matmul %225, %226, %cst_96 {dimension_numbers = #tpu.dot_dimension_numbers<[1], [0], [0], [1], [0, 0, 1, 1], [], []>} : vector<1x128xbf16>, vector<128x128xbf16>, vector<1x128xf32> -> vector<1x128xf32>
      %228 = arith.truncf %227 : vector<1x128xf32> to vector<1x128xbf16>
      %c0_97 = arith.constant 0 : index
      %c0_98 = arith.constant 0 : index
      %229 = vector.load %arg23[%c0_97, %c0_98] : memref<128x128xbf16, #tpu.memory_space<vmem>>, vector<128x128xbf16>
      %cst_99 = arith.constant dense<0.000000e+00> : vector<1x128xf32>
      %230 = tpu.matmul %228, %229, %cst_99 {dimension_numbers = #tpu.dot_dimension_numbers<[1], [0], [0], [1], [0, 0, 1, 1], [], []>} : vector<1x128xbf16>, vector<128x128xbf16>, vector<1x128xf32> -> vector<1x128xf32>
      %c0_100 = arith.constant 0 : index
      %c0_101 = arith.constant 0 : index
      %231 = vector.load %arg24[%c0_100, %c0_101] : memref<1x128xf32, #tpu.memory_space<vmem>>, vector<1x128xf32>
      %232 = arith.addf %230, %231 : vector<1x128xf32>
      %cst_102 = arith.constant 0.000000e+00 : f32
      %233 = vector.broadcast %cst_102 : f32 to vector<1x128xf32>
      %234 = arith.maximumf %232, %233 : vector<1x128xf32>
      %235 = arith.truncf %234 : vector<1x128xf32> to vector<1x128xbf16>
      %c0_103 = arith.constant 0 : index
      %c0_104 = arith.constant 0 : index
      %236 = vector.load %arg25[%c0_103, %c0_104] : memref<128x128xbf16, #tpu.memory_space<vmem>>, vector<128x128xbf16>
      %cst_105 = arith.constant dense<0.000000e+00> : vector<1x128xf32>
      %237 = tpu.matmul %235, %236, %cst_105 {dimension_numbers = #tpu.dot_dimension_numbers<[1], [0], [0], [1], [0, 0, 1, 1], [], []>} : vector<1x128xbf16>, vector<128x128xbf16>, vector<1x128xf32> -> vector<1x128xf32>
      %c0_106 = arith.constant 0 : index
      %c0_107 = arith.constant 0 : index
      %238 = vector.load %arg26[%c0_106, %c0_107] : memref<1x128xf32, #tpu.memory_space<vmem>>, vector<1x128xf32>
      %239 = arith.addf %237, %238 : vector<1x128xf32>
      %c0_108 = arith.constant 0 : index
      %c0_109 = arith.constant 0 : index
      %c0_110 = arith.constant 0 : index
      %240 = vector.load %arg27[%c0_108, %c0_109, %c0_110] : memref<1x1x128xf32, #tpu.memory_space<vmem>>, vector<1x1x128xf32>
      %241 = vector.shape_cast %240 : vector<1x1x128xf32> to vector<1x128xf32>
      %242 = vector.shape_cast %239 : vector<1x128xf32> to vector<1x1x128xf32>
      tpu.vector_store %arg27[%c0_108, %c0_109, %c0_110], %242 {strides = array<i32>} : memref<1x1x128xf32, #tpu.memory_space<vmem>>, vector<1x1x128xf32>,
    } else {
    }
    return
  }
  func.func @transform_0(%arg0: i32, %arg1: i32) -> (i32, i32, i32) {
    %c0_i32 = arith.constant 0 : i32
    %c0_i32_0 = arith.constant 0 : i32
    %c0_i32_1 = arith.constant 0 : i32
    return %arg0, %c0_i32, %c0_i32_0 : i32, i32, i32
  }
  func.func @transform_1(%arg0: i32, %arg1: i32) -> (i32, i32) {
    %c0_i32 = arith.constant 0 : i32
    %c0_i32_0 = arith.constant 0 : i32
    %c0_i32_1 = arith.constant 0 : i32
    return %c0_i32, %c0_i32_0 : i32, i32
  }
  func.func @transform_2(%arg0: i32, %arg1: i32) -> (i32, i32) {
    %c0_i32 = arith.constant 0 : i32
    %c0_i32_0 = arith.constant 0 : i32
    %c0_i32_1 = arith.constant 0 : i32
    return %c0_i32, %c0_i32_0 : i32, i32
  }
  func.func @transform_3(%arg0: i32, %arg1: i32) -> (i32, i32) {
    %c0_i32 = arith.constant 0 : i32
    %c0_i32_0 = arith.constant 0 : i32
    %c0_i32_1 = arith.constant 0 : i32
    return %c0_i32, %c0_i32_0 : i32, i32
  }
  func.func @transform_4(%arg0: i32, %arg1: i32) -> (i32, i32) {
    %c0_i32 = arith.constant 0 : i32
    %c0_i32_0 = arith.constant 0 : i32
    %c0_i32_1 = arith.constant 0 : i32
    return %c0_i32, %c0_i32_0 : i32, i32
  }
  func.func @transform_5(%arg0: i32, %arg1: i32) -> (i32, i32) {
    %c0_i32 = arith.constant 0 : i32
    %c0_i32_0 = arith.constant 0 : i32
    %c0_i32_1 = arith.constant 0 : i32
    return %c0_i32, %c0_i32_0 : i32, i32
  }
  func.func @transform_6(%arg0: i32, %arg1: i32) -> (i32, i32, i32) {
    %c0_i32 = arith.constant 0 : i32
    %c0_i32_0 = arith.constant 0 : i32
    %c0_i32_1 = arith.constant 0 : i32
    return %arg1, %c0_i32, %c0_i32_0 : i32, i32, i32
  }
  func.func @transform_7(%arg0: i32, %arg1: i32) -> (i32, i32, i32) {
    %c0_i32 = arith.constant 0 : i32
    %c0_i32_0 = arith.constant 0 : i32
    %c0_i32_1 = arith.constant 0 : i32
    return %arg1, %c0_i32, %c0_i32_0 : i32, i32, i32
  }
  func.func @transform_8(%arg0: i32, %arg1: i32) -> (i32, i32, i32) {
    %c0_i32 = arith.constant 0 : i32
    %c0_i32_0 = arith.constant 0 : i32
    %c0_i32_1 = arith.constant 0 : i32
    return %arg1, %c0_i32, %c0_i32_0 : i32, i32, i32
  }
  func.func @transform_9(%arg0: i32, %arg1: i32) -> (i32, i32, i32) {
    %c0_i32 = arith.constant 0 : i32
    %c0_i32_0 = arith.constant 0 : i32
    %c0_i32_1 = arith.constant 0 : i32
    return %arg1, %c0_i32, %c0_i32_0 : i32, i32, i32
  }
  func.func @transform_10(%arg0: i32, %arg1: i32) -> (i32, i32, i32) {
    %c0_i32 = arith.constant 0 : i32
    %c0_i32_0 = arith.constant 0 : i32
    %c0_i32_1 = arith.constant 0 : i32
    return %arg1, %c0_i32, %c0_i32_0 : i32, i32, i32
  }
  func.func @transform_11(%arg0: i32, %arg1: i32) -> (i32, i32, i32) {
    %c0_i32 = arith.constant 0 : i32
    %c0_i32_0 = arith.constant 0 : i32
    %c0_i32_1 = arith.constant 0 : i32
    return %arg1, %c0_i32, %c0_i32_0 : i32, i32, i32
  }
  func.func @transform_12(%arg0: i32, %arg1: i32) -> (i32, i32, i32) {
    %c0_i32 = arith.constant 0 : i32
    %c0_i32_0 = arith.constant 0 : i32
    %c0_i32_1 = arith.constant 0 : i32
    return %arg1, %c0_i32, %c0_i32_0 : i32, i32, i32
  }
  func.func @transform_13(%arg0: i32, %arg1: i32) -> (i32, i32, i32) {
    %c0_i32 = arith.constant 0 : i32
    %c0_i32_0 = arith.constant 0 : i32
    %c0_i32_1 = arith.constant 0 : i32
    return %arg1, %c0_i32, %c0_i32_0 : i32, i32, i32
  }
  func.func @transform_14(%arg0: i32, %arg1: i32) -> (i32, i32, i32) {
    %c0_i32 = arith.constant 0 : i32
    %c0_i32_0 = arith.constant 0 : i32
    %c0_i32_1 = arith.constant 0 : i32
    return %arg1, %c0_i32, %c0_i32_0 : i32, i32, i32
  }
  func.func @transform_15(%arg0: i32, %arg1: i32) -> (i32, i32, i32) {
    %c0_i32 = arith.constant 0 : i32
    %c0_i32_0 = arith.constant 0 : i32
    %c0_i32_1 = arith.constant 0 : i32
    return %arg1, %c0_i32, %c0_i32_0 : i32, i32, i32
  }
  func.func @transform_16(%arg0: i32, %arg1: i32) -> (i32, i32, i32) {
    %c0_i32 = arith.constant 0 : i32
    %c0_i32_0 = arith.constant 0 : i32
    %c0_i32_1 = arith.constant 0 : i32
    return %arg1, %c0_i32, %c0_i32_0 : i32, i32, i32
  }
  func.func @transform_17(%arg0: i32, %arg1: i32) -> (i32, i32, i32) {
    %c0_i32 = arith.constant 0 : i32
    %c0_i32_0 = arith.constant 0 : i32
    %c0_i32_1 = arith.constant 0 : i32
    return %arg1, %c0_i32, %c0_i32_0 : i32, i32, i32
  }
  func.func @transform_18(%arg0: i32, %arg1: i32) -> (i32, i32) {
    %c0_i32 = arith.constant 0 : i32
    %c0_i32_0 = arith.constant 0 : i32
    %c0_i32_1 = arith.constant 0 : i32
    return %c0_i32, %c0_i32_0 : i32, i32
  }
  func.func @transform_19(%arg0: i32, %arg1: i32) -> (i32, i32) {
    %c0_i32 = arith.constant 0 : i32
    %c0_i32_0 = arith.constant 0 : i32
    %c0_i32_1 = arith.constant 0 : i32
    return %c0_i32, %c0_i32_0 : i32, i32
  }
  func.func @transform_20(%arg0: i32, %arg1: i32) -> (i32, i32) {
    %c0_i32 = arith.constant 0 : i32
    %c0_i32_0 = arith.constant 0 : i32
    %c0_i32_1 = arith.constant 0 : i32
    return %c0_i32, %c0_i32_0 : i32, i32
  }
  func.func @transform_21(%arg0: i32, %arg1: i32) -> (i32, i32) {
    %c0_i32 = arith.constant 0 : i32
    %c0_i32_0 = arith.constant 0 : i32
    %c0_i32_1 = arith.constant 0 : i32
    return %c0_i32, %c0_i32_0 : i32, i32
  }
  func.func @transform_22(%arg0: i32, %arg1: i32) -> (i32, i32) {
    %c0_i32 = arith.constant 0 : i32
    %c0_i32_0 = arith.constant 0 : i32
    %c0_i32_1 = arith.constant 0 : i32
    return %c0_i32, %c0_i32_0 : i32, i32
  }
  func.func @transform_23(%arg0: i32, %arg1: i32) -> (i32, i32) {
    %c0_i32 = arith.constant 0 : i32
    %c0_i32_0 = arith.constant 0 : i32
    %c0_i32_1 = arith.constant 0 : i32
    return %c0_i32, %c0_i32_0 : i32, i32
  }
  func.func @transform_24(%arg0: i32, %arg1: i32) -> (i32, i32) {
    %c0_i32 = arith.constant 0 : i32
    %c0_i32_0 = arith.constant 0 : i32
    %c0_i32_1 = arith.constant 0 : i32
    return %c0_i32, %c0_i32_0 : i32, i32
  }
  func.func @transform_25(%arg0: i32, %arg1: i32) -> (i32, i32, i32) {
    %c0_i32 = arith.constant 0 : i32
    %c0_i32_0 = arith.constant 0 : i32
    %c0_i32_1 = arith.constant 0 : i32
    return %arg0, %c0_i32, %c0_i32_0 : i32, i32, i32
  }
}

</mosaic_0001>

<llo_original>
// kernel: clip_vit_image_encoder.1
$region0: #{clip_vit_image_encoder.1}
  #allocation0 [shape = 'u32[]', space=smem, size = 0x4, offset = 0x4, fixed_abs, tag = 'smem constant byte address 0x4 - core index']
  #allocation1 [shape = 'u32[144,128]{1,0:T(1,128)}', space=vmem, size = 0x12000, scoped, tag = 'internal scratch']
  #allocation2 [shape = 'f32[8,128]{1,0:T(8,128)}', space=vmem, size = 0x1000, scoped, tag = 'scratch operand']
  #allocation3 [shape = 'f32[8,128]{1,0:T(8,128)}', space=vmem, size = 0x1000, scoped, tag = 'scratch operand']
  %s0 = inlined_call_operand.vmem [shape: f32[2,4,192], index: 0, kind: input, shape index: {}]
  %s1 = inlined_call_operand.hbm [shape: bf16[192,128], index: 1, kind: input, shape index: {}]
  %s2 = inlined_call_operand.hbm [shape: f32[1,128], index: 2, kind: input, shape index: {}]
  %s3 = inlined_call_operand.vmem [shape: f32[8,128], index: 3, kind: input, shape index: {}]
  %s4 = inlined_call_operand.vmem [shape: f32[1,128], index: 4, kind: input, shape index: {}]
  %s5 = inlined_call_operand.vmem [shape: f32[1,128], index: 5, kind: input, shape index: {}]
  %s6 = inlined_call_operand.hbm [shape: f32[2,1,128], index: 6, kind: input, shape index: {}]
  %s7 = inlined_call_operand.hbm [shape: f32[2,1,128], index: 7, kind: input, shape index: {}]
  %s8 = inlined_call_operand.vmem [shape: bf16[2,128,384], index: 8, kind: input, shape index: {}]
  %s9 = inlined_call_operand.hbm [shape: f32[2,1,384], index: 9, kind: input, shape index: {}]
  %s10 = inlined_call_operand.hbm [shape: bf16[2,128,128], index: 10, kind: input, shape index: {}]
  %s11 = inlined_call_operand.hbm [shape: f32[2,1,128], index: 11, kind: input, shape index: {}]
  %s12 = inlined_call_operand.hbm [shape: f32[2,1,128], index: 12, kind: input, shape index: {}]
  %s13 = inlined_call_operand.hbm [shape: f32[2,1,128], index: 13, kind: input, shape index: {}]
  %s14 = inlined_call_operand.vmem [shape: bf16[2,128,512], index: 14, kind: input, shape index: {}]
  %s15 = inlined_call_operand.hbm [shape: f32[2,1,512], index: 15, kind: input, shape index: {}]
  %s16 = inlined_call_operand.hbm [shape: bf16[2,512,128], index: 16, kind: input, shape index: {}]
  %s17 = inlined_call_operand.hbm [shape: f32[2,1,128], index: 17, kind: input, shape index: {}]
  %s18 = inlined_call_operand.vmem [shape: f32[1,128], index: 18, kind: input, shape index: {}]
  %s19 = inlined_call_operand.vmem [shape: f32[1,128], index: 19, kind: input, shape index: {}]
  %s20 = inlined_call_operand.hbm [shape: bf16[128,128], index: 20, kind: input, shape index: {}]
  %s21 = inlined_call_operand.hbm [shape: bf16[128,128], index: 21, kind: input, shape index: {}]
  %s22 = inlined_call_operand.hbm [shape: f32[1,128], index: 22, kind: input, shape index: {}]
  %s23 = inlined_call_operand.hbm [shape: bf16[128,128], index: 23, kind: input, shape index: {}]
  %s24 = inlined_call_operand.hbm [shape: f32[1,128], index: 24, kind: input, shape index: {}]
  %s25 = inlined_call_operand.hbm [shape: f32[2,1,128], index: 25, kind: output, shape index: {}]
  %s26 = sld [smem:[#allocation0]]
  $region209: #{clip_vit_image_encoder.1} parent=0
    _
  %s28 = ssub.s32 1, %s26
  %s29 = scalar_select 0, %s28, %s26
  $region1: #{clip_vit_image_encoder.1} parent=0
    #allocation4 [shape = 'u8[49152]{0}', space=vmem, size = 0xc000, scoped, tag = 'input window, operand 1, single buffered']
    #allocation5 [shape = 's32[2]{0}', space=sflag, size = 0x8, scoped, tag = 'scoped memory for clip_vit_image_encoder.1']
    #allocation6 [shape = 's32[2]{0}', space=sflag, size = 0x8, scoped, tag = 'scoped memory for clip_vit_image_encoder.1']
    #allocation7 [shape = 'u8[512]{0}', space=vmem, size = 0x400, scoped, tag = 'input window, operand 2, single buffered']
    #allocation8 [shape = 's32[1]{0}', space=sflag, size = 0x4, scoped, tag = 'scoped memory for clip_vit_image_encoder.1']
    #allocation9 [shape = 'u8[1024]{0}', space=vmem, size = 0x400, scoped, tag = 'input window, operand 6']
    #allocation10 [shape = 'u8[1024]{0}', space=vmem, size = 0x400, scoped, tag = 'input window, operand 7']
    #allocation11 [shape = 'u8[3072]{0}', space=vmem, size = 0xc00, scoped, tag = 'input window, operand 9']
    #allocation12 [shape = 'u8[65536]{0}', space=vmem, size = 0x10000, scoped, tag = 'input window, operand 10']
    #allocation13 [shape = 'u8[1024]{0}', space=vmem, size = 0x400, scoped, tag = 'input window, operand 11']
    #allocation14 [shape = 'u8[1024]{0}', space=vmem, size = 0x400, scoped, tag = 'input window, operand 12']
    #allocation15 [shape = 'u8[1024]{0}', space=vmem, size = 0x400, scoped, tag = 'input window, operand 13']
    #allocation16 [shape = 'u8[4096]{0}', space=vmem, size = 0x1000, scoped, tag = 'input window, operand 15']
    #allocation17 [shape = 'u8[262144]{0}', space=vmem, size = 0x40000, scoped, tag = 'input window, operand 16']
    #allocation18 [shape = 'u8[1024]{0}', space=vmem, size = 0x400, scoped, tag = 'input window, operand 17']
    #allocation19 [shape = 'u8[32768]{0}', space=vmem, size = 0x8000, scoped, tag = 'input window, operand 20, single buffered']
    #allocation20 [shape = 'u8[32768]{0}', space=vmem, size = 0x8000, scoped, tag = 'input window, operand 21, single buffered']
    #allocation21 [shape = 's32[1]{0}', space=sflag, size = 0x4, scoped, tag = 'scoped memory for clip_vit_image_encoder.1']
    #allocation22 [shape = 'u8[512]{0}', space=vmem, size = 0x400, scoped, tag = 'input window, operand 22, single buffered']
    #allocation23 [shape = 'u8[32768]{0}', space=vmem, size = 0x8000, scoped, tag = 'input window, operand 23, single buffered']
    #allocation24 [shape = 's32[1]{0}', space=sflag, size = 0x4, scoped, tag = 'scoped memory for clip_vit_image_encoder.1']
    #allocation25 [shape = 'u8[512]{0}', space=vmem, size = 0x400, scoped, tag = 'input window, operand 24, single buffered']
    #allocation26 [shape = 'u8[1024]{0}', space=vmem, size = 0x400, scoped, tag = 'output window, operand 0']
    %30 = vsyncpa [#allocation5], 0
    %31 = vsyncpa [#allocation8], 0
    %32 = vsyncpa [#allocation21], 0
    %33 = vsyncpa [#allocation24], 0
    %34 = vsyncpa [#allocation6], 0
    %s35 = scalar_lea.sflag [#allocation6], 1
    %36 = vsyncpa %s35, 0
    loop: start=0, step=1, limit=6
    $region2: #{clip_vit_image_encoder.1} parent=1 // loop_pre_header
      _
    $region3: #{clip_vit_image_encoder.1} parent=1 // loop_header
      %s38 = sphi 0, %s42
      %p39 = scmp.ge.s32.totalorder %s38, 6
      %s45 = sphi 0, %s57
      %s46 = sphi 0, %s53
      %s47 = sphi 0, %s45
      %s48 = sphi 0, %s46
      %s49 = sphi 0, %s47
      %s50 = sphi 0, %s48
      %s60 = sphi 0, %s62
      %s63 = sphi 0, %s60
      %s64 = sphi 0, %s63
      %s80 = sphi 0, %s64
      %s84 = sphi 0, %s84
      %s86 = sphi 0, %s84
      %s87 = sphi 0, %s86
      %s101 = sphi 0, %s87
      %s105 = sphi 0, %s105
      %s107 = sphi 0, %s105
      %s108 = sphi 0, %s107
      %s122 = sphi 0, %s108
      %s126 = sphi 0, %s126
      %s128 = sphi 0, %s126
      %s129 = sphi 0, %s128
      %s143 = sphi 0, %s129
      %s147 = sphi 0, %s147
      %s149 = sphi 0, %s147
      %s150 = sphi 0, %s149
      %s164 = sphi 0, %s150
      %s168 = sphi 0, %s168
      %s170 = sphi 0, %s168
      %s171 = sphi 0, %s170
      %s185 = sphi 0, %s171
      %s191 = sphi 0, %s193
      %s194 = sphi 0, %s191
      %s195 = sphi 0, %s194
      %s211 = sphi 0, %s195
      %s217 = sphi 0, %s219
      %s220 = sphi 0, %s217
      %s221 = sphi 0, %s220
      %s237 = sphi 0, %s221
      %s243 = sphi 0, %s245
      %s246 = sphi 0, %s243
      %s247 = sphi 0, %s246
      %s263 = sphi 0, %s247
      %s269 = sphi 0, %s271
      %s272 = sphi 0, %s269
      %s273 = sphi 0, %s272
      %s289 = sphi 0, %s273
      %s295 = sphi 0, %s297
      %s298 = sphi 0, %s295
      %s299 = sphi 0, %s298
      %s315 = sphi 0, %s299
      %s321 = sphi 0, %s323
      %s324 = sphi 0, %s321
      %s325 = sphi 0, %s324
      %s341 = sphi 0, %s325
      %s347 = sphi 0, %s349
      %s350 = sphi 0, %s347
      %s351 = sphi 0, %s350
      %s367 = sphi 0, %s351
      %s373 = sphi 0, %s375
      %s376 = sphi 0, %s373
      %s377 = sphi 0, %s376
      %s393 = sphi 0, %s377
      %s399 = sphi 0, %s401
      %s402 = sphi 0, %s399
      %s403 = sphi 0, %s402
      %s419 = sphi 0, %s403
      %s425 = sphi 0, %s427
      %s428 = sphi 0, %s425
      %s429 = sphi 0, %s428
      %s445 = sphi 0, %s429
      %s451 = sphi 0, %s453
      %s454 = sphi 0, %s451
      %s455 = sphi 0, %s454
      %s471 = sphi 0, %s455
      %s477 = sphi 0, %s479
      %s480 = sphi 0, %s477
      %s481 = sphi 0, %s480
      %s497 = sphi 0, %s481
      %s501 = sphi 0, %s501
      %s503 = sphi 0, %s501
      %s504 = sphi 0, %s503
      %s518 = sphi 0, %s504
      %s522 = sphi 0, %s522
      %s524 = sphi 0, %s522
      %s525 = sphi 0, %s524
      %s539 = sphi 0, %s525
      %s543 = sphi 0, %s543
      %s545 = sphi 0, %s543
      %s546 = sphi 0, %s545
      %s560 = sphi 0, %s546
      %s564 = sphi 0, %s564
      %s566 = sphi 0, %s564
      %s567 = sphi 0, %s566
      %s581 = sphi 0, %s567
      %s585 = sphi 0, %s585
      %s587 = sphi 0, %s585
      %s588 = sphi 0, %s587
      %s602 = sphi 0, %s588
      %s606 = sphi 0, %s606
      %s608 = sphi 0, %s606
      %s609 = sphi 0, %s608
      %s623 = sphi 0, %s609
      %s627 = sphi 0, %s627
      %s629 = sphi 0, %s627
      %s630 = sphi 0, %s629
      %s644 = sphi 0, %s630
      %s650 = sphi 0, %s652
      %s653 = sphi 0, %s650
      %s654 = sphi 0, %s653
      %s670 = sphi 0, %s654
    $region4: #{clip_vit_image_encoder.1} parent=1 // loop_header_branch
      %41 = sbr.rel (%p39) target = $region8
    $region5: #{clip_vit_image_encoder.1} parent=1 // loop_body
      %s43 = ssub.s32 %s38, 1
      %s44 = ssub.s32 %s38, 2
      %s51 = sadd.s32 1, %s46
      %p52 = scmp.ge.s32.totalorder %s51, 2
      %s53 = scalar_select %p52, 0, %s51
      %s54 = sadd.s32 1, %s45
      %s55 = scalar_select %p52, %s54, %s45
      %p56 = scmp.ge.s32.totalorder %s55, 2
      %s57 = scalar_select %p56, 0, %s55
      %s58 = ssub.s32 %s45, %s57
      %p59 = scmp.eq.s32.totalorder %s58, 0
      %s61 = sadd.s32 %s60, 1
      %s62 = scalar_select %p59, %s60, %s61
      %p65 = pneg %p59
      %p66 = scmp.eq.s32.totalorder %s38, 3
      %p67 = por %p65, %p66
      %p68 = scmp.ne.s32.totalorder %s60, %s63
      %p69 = scmp.eq.s32.totalorder %s38, 0
      %p70 = por %p68, %p69
      %p71 = scmp.ne.s32.totalorder %s60, %s63
      %p72 = scmp.eq.s32.totalorder %s43, 3
      %p73 = por %p71, %p72
      %p74 = scmp.ne.s32.totalorder %s63, %s64
      %p75 = scmp.eq.s32.totalorder %s43, 0
      %p76 = por %p74, %p75
      %p77 = scmp.ne.s32.totalorder %s63, %s64
      %p78 = scmp.eq.s32.totalorder %s44, 3
      %p79 = por %p77, %p78
      %p81 = scmp.ne.s32.totalorder %s64, %s80
      %p82 = scmp.eq.s32.totalorder %s44, 0
      %p83 = por %p81, %p82
      %s85 = sadd.s32 %s84, 1
      %p88 = scmp.eq.s32.totalorder %s38, 3
      %p89 = scmp.ne.s32.totalorder %s84, %s86
      %p90 = scmp.eq.s32.totalorder %s38, 0
      %p91 = por %p89, %p90
      %p92 = scmp.ne.s32.totalorder %s84, %s86
      %p93 = scmp.eq.s32.totalorder %s43, 3
      %p94 = por %p92, %p93
      %p95 = scmp.ne.s32.totalorder %s86, %s87
      %p96 = scmp.eq.s32.totalorder %s43, 0
      %p97 = por %p95, %p96
      %p98 = scmp.ne.s32.totalorder %s86, %s87
      %p99 = scmp.eq.s32.totalorder %s44, 3
      %p100 = por %p98, %p99
      %p102 = scmp.ne.s32.totalorder %s87, %s101
      %p103 = scmp.eq.s32.totalorder %s44, 0
      %p104 = por %p102, %p103
      %s106 = sadd.s32 %s105, 1
      %p109 = scmp.eq.s32.totalorder %s38, 3
      %p110 = scmp.ne.s32.totalorder %s105, %s107
      %p111 = scmp.eq.s32.totalorder %s38, 0
      %p112 = por %p110, %p111
      %p113 = scmp.ne.s32.totalorder %s105, %s107
      %p114 = scmp.eq.s32.totalorder %s43, 3
      %p115 = por %p113, %p114
      %p116 = scmp.ne.s32.totalorder %s107, %s108
      %p117 = scmp.eq.s32.totalorder %s43, 0
      %p118 = por %p116, %p117
      %p119 = scmp.ne.s32.totalorder %s107, %s108
      %p120 = scmp.eq.s32.totalorder %s44, 3
      %p121 = por %p119, %p120
      %p123 = scmp.ne.s32.totalorder %s108, %s122
      %p124 = scmp.eq.s32.totalorder %s44, 0
      %p125 = por %p123, %p124
      %s127 = sadd.s32 %s126, 1
      %p130 = scmp.eq.s32.totalorder %s38, 3
      %p131 = scmp.ne.s32.totalorder %s126, %s128
      %p132 = scmp.eq.s32.totalorder %s38, 0
      %p133 = por %p131, %p132
      %p134 = scmp.ne.s32.totalorder %s126, %s128
      %p135 = scmp.eq.s32.totalorder %s43, 3
      %p136 = por %p134, %p135
      %p137 = scmp.ne.s32.totalorder %s128, %s129
      %p138 = scmp.eq.s32.totalorder %s43, 0
      %p139 = por %p137, %p138
      %p140 = scmp.ne.s32.totalorder %s128, %s129
      %p141 = scmp.eq.s32.totalorder %s44, 3
      %p142 = por %p140, %p141
      %p144 = scmp.ne.s32.totalorder %s129, %s143
      %p145 = scmp.eq.s32.totalorder %s44, 0
      %p146 = por %p144, %p145
      %s148 = sadd.s32 %s147, 1
      %p151 = scmp.eq.s32.totalorder %s38, 3
      %p152 = scmp.ne.s32.totalorder %s147, %s149
      %p153 = scmp.eq.s32.totalorder %s38, 0
      %p154 = por %p152, %p153
      %p155 = scmp.ne.s32.totalorder %s147, %s149
      %p156 = scmp.eq.s32.totalorder %s43, 3
      %p157 = por %p155, %p156
      %p158 = scmp.ne.s32.totalorder %s149, %s150
      %p159 = scmp.eq.s32.totalorder %s43, 0
      %p160 = por %p158, %p159
      %p161 = scmp.ne.s32.totalorder %s149, %s150
      %p162 = scmp.eq.s32.totalorder %s44, 3
      %p163 = por %p161, %p162
      %p165 = scmp.ne.s32.totalorder %s150, %s164
      %p166 = scmp.eq.s32.totalorder %s44, 0
      %p167 = por %p165, %p166
      %s169 = sadd.s32 %s168, 1
      %p172 = scmp.eq.s32.totalorder %s38, 3
      %p173 = scmp.ne.s32.totalorder %s168, %s170
      %p174 = scmp.eq.s32.totalorder %s38, 0
      %p175 = por %p173, %p174
      %p176 = scmp.ne.s32.totalorder %s168, %s170
      %p177 = scmp.eq.s32.totalorder %s43, 3
      %p178 = por %p176, %p177
      %p179 = scmp.ne.s32.totalorder %s170, %s171
      %p180 = scmp.eq.s32.totalorder %s43, 0
      %p181 = por %p179, %p180
      %p182 = scmp.ne.s32.totalorder %s170, %s171
      %p183 = scmp.eq.s32.totalorder %s44, 3
      %p184 = por %p182, %p183
      %p186 = scmp.ne.s32.totalorder %s171, %s185
      %p187 = scmp.eq.s32.totalorder %s44, 0
      %p188 = por %p186, %p187
      %s189 = ssub.s32 %s46, %s53
      %p190 = scmp.eq.s32.totalorder %s189, 0
      %s192 = sadd.s32 %s191, 1
      %s193 = scalar_select %p190, %s191, %s192
      %p196 = pneg %p190
      %p197 = scmp.eq.s32.totalorder %s38, 3
      %p198 = por %p196, %p197
      %p199 = scmp.ne.s32.totalorder %s191, %s194
      %p200 = scmp.eq.s32.totalorder %s38, 0
      %p201 = por %p199, %p200
      %p202 = scmp.ne.s32.totalorder %s191, %s194
      %p203 = scmp.eq.s32.totalorder %s43, 3
      %p204 = por %p202, %p203
      %p205 = scmp.ne.s32.totalorder %s194, %s195
      %p206 = scmp.eq.s32.totalorder %s43, 0
      %p207 = por %p205, %p206
      %p208 = scmp.ne.s32.totalorder %s194, %s195
      %p209 = scmp.eq.s32.totalorder %s44, 3
      %p210 = por %p208, %p209
      %p212 = scmp.ne.s32.totalorder %s195, %s211
      %p213 = scmp.eq.s32.totalorder %s44, 0
      %p214 = por %p212, %p213
      %s215 = ssub.s32 %s46, %s53
      %p216 = scmp.eq.s32.totalorder %s215, 0
      %s218 = sadd.s32 %s217, 1
      %s219 = scalar_select %p216, %s217, %s218
      %p222 = pneg %p216
      %p223 = scmp.eq.s32.totalorder %s38, 3
      %p224 = por %p222, %p223
      %p225 = scmp.ne.s32.totalorder %s217, %s220
      %p226 = scmp.eq.s32.totalorder %s38, 0
      %p227 = por %p225, %p226
      %p228 = scmp.ne.s32.totalorder %s217, %s220
      %p229 = scmp.eq.s32.totalorder %s43, 3
      %p230 = por %p228, %p229
      %p231 = scmp.ne.s32.totalorder %s220, %s221
      %p232 = scmp.eq.s32.totalorder %s43, 0
      %p233 = por %p231, %p232
      %p234 = scmp.ne.s32.totalorder %s220, %s221
      %p235 = scmp.eq.s32.totalorder %s44, 3
      %p236 = por %p234, %p235
      %p238 = scmp.ne.s32.totalorder %s221, %s237
      %p239 = scmp.eq.s32.totalorder %s44, 0
      %p240 = por %p238, %p239
      %s241 = ssub.s32 %s46, %s53
      %p242 = scmp.eq.s32.totalorder %s241, 0
      %s244 = sadd.s32 %s243, 1
      %s245 = scalar_select %p242, %s243, %s244
      %p248 = pneg %p242
      %p249 = scmp.eq.s32.totalorder %s38, 3
      %p250 = por %p248, %p249
      %p251 = scmp.ne.s32.totalorder %s243, %s246
      %p252 = scmp.eq.s32.totalorder %s38, 0
      %p253 = por %p251, %p252
      %p254 = scmp.ne.s32.totalorder %s243, %s246
      %p255 = scmp.eq.s32.totalorder %s43, 3
      %p256 = por %p254, %p255
      %p257 = scmp.ne.s32.totalorder %s246, %s247
      %p258 = scmp.eq.s32.totalorder %s43, 0
      %p259 = por %p257, %p258
      %p260 = scmp.ne.s32.totalorder %s246, %s247
      %p261 = scmp.eq.s32.totalorder %s44, 3
      %p262 = por %p260, %p261
      %p264 = scmp.ne.s32.totalorder %s247, %s263
      %p265 = scmp.eq.s32.totalorder %s44, 0
      %p266 = por %p264, %p265
      %s267 = ssub.s32 %s46, %s53
      %p268 = scmp.eq.s32.totalorder %s267, 0
      %s270 = sadd.s32 %s269, 1
      %s271 = scalar_select %p268, %s269, %s270
      %p274 = pneg %p268
      %p275 = scmp.eq.s32.totalorder %s38, 3
      %p276 = por %p274, %p275
      %p277 = scmp.ne.s32.totalorder %s269, %s272
      %p278 = scmp.eq.s32.totalorder %s38, 0
      %p279 = por %p277, %p278
      %p280 = scmp.ne.s32.totalorder %s269, %s272
      %p281 = scmp.eq.s32.totalorder %s43, 3
      %p282 = por %p280, %p281
      %p283 = scmp.ne.s32.totalorder %s272, %s273
      %p284 = scmp.eq.s32.totalorder %s43, 0
      %p285 = por %p283, %p284
      %p286 = scmp.ne.s32.totalorder %s272, %s273
      %p287 = scmp.eq.s32.totalorder %s44, 3
      %p288 = por %p286, %p287
      %p290 = scmp.ne.s32.totalorder %s273, %s289
      %p291 = scmp.eq.s32.totalorder %s44, 0
      %p292 = por %p290, %p291
      %s293 = ssub.s32 %s46, %s53
      %p294 = scmp.eq.s32.totalorder %s293, 0
      %s296 = sadd.s32 %s295, 1
      %s297 = scalar_select %p294, %s295, %s296
      %p300 = pneg %p294
      %p301 = scmp.eq.s32.totalorder %s38, 3
      %p302 = por %p300, %p301
      %p303 = scmp.ne.s32.totalorder %s295, %s298
      %p304 = scmp.eq.s32.totalorder %s38, 0
      %p305 = por %p303, %p304
      %p306 = scmp.ne.s32.totalorder %s295, %s298
      %p307 = scmp.eq.s32.totalorder %s43, 3
      %p308 = por %p306, %p307
      %p309 = scmp.ne.s32.totalorder %s298, %s299
      %p310 = scmp.eq.s32.totalorder %s43, 0
      %p311 = por %p309, %p310
      %p312 = scmp.ne.s32.totalorder %s298, %s299
      %p313 = scmp.eq.s32.totalorder %s44, 3
      %p314 = por %p312, %p313
      %p316 = scmp.ne.s32.totalorder %s299, %s315
      %p317 = scmp.eq.s32.totalorder %s44, 0
      %p318 = por %p316, %p317
      %s319 = ssub.s32 %s46, %s53
      %p320 = scmp.eq.s32.totalorder %s319, 0
      %s322 = sadd.s32 %s321, 1
      %s323 = scalar_select %p320, %s321, %s322
      %p326 = pneg %p320
      %p327 = scmp.eq.s32.totalorder %s38, 3
      %p328 = por %p326, %p327
      %p329 = scmp.ne.s32.totalorder %s321, %s324
      %p330 = scmp.eq.s32.totalorder %s38, 0
      %p331 = por %p329, %p330
      %p332 = scmp.ne.s32.totalorder %s321, %s324
      %p333 = scmp.eq.s32.totalorder %s43, 3
      %p334 = por %p332, %p333
      %p335 = scmp.ne.s32.totalorder %s324, %s325
      %p336 = scmp.eq.s32.totalorder %s43, 0
      %p337 = por %p335, %p336
      %p338 = scmp.ne.s32.totalorder %s324, %s325
      %p339 = scmp.eq.s32.totalorder %s44, 3
      %p340 = por %p338, %p339
      %p342 = scmp.ne.s32.totalorder %s325, %s341
      %p343 = scmp.eq.s32.totalorder %s44, 0
      %p344 = por %p342, %p343
      %s345 = ssub.s32 %s46, %s53
      %p346 = scmp.eq.s32.totalorder %s345, 0
      %s348 = sadd.s32 %s347, 1
      %s349 = scalar_select %p346, %s347, %s348
      %p352 = pneg %p346
      %p353 = scmp.eq.s32.totalorder %s38, 3
      %p354 = por %p352, %p353
      %p355 = scmp.ne.s32.totalorder %s347, %s350
      %p356 = scmp.eq.s32.totalorder %s38, 0
      %p357 = por %p355, %p356
      %p358 = scmp.ne.s32.totalorder %s347, %s350
      %p359 = scmp.eq.s32.totalorder %s43, 3
      %p360 = por %p358, %p359
      %p361 = scmp.ne.s32.totalorder %s350, %s351
      %p362 = scmp.eq.s32.totalorder %s43, 0
      %p363 = por %p361, %p362
      %p364 = scmp.ne.s32.totalorder %s350, %s351
      %p365 = scmp.eq.s32.totalorder %s44, 3
      %p366 = por %p364, %p365
      %p368 = scmp.ne.s32.totalorder %s351, %s367
      %p369 = scmp.eq.s32.totalorder %s44, 0
      %p370 = por %p368, %p369
      %s371 = ssub.s32 %s46, %s53
      %p372 = scmp.eq.s32.totalorder %s371, 0
      %s374 = sadd.s32 %s373, 1
      %s375 = scalar_select %p372, %s373, %s374
      %p378 = pneg %p372
      %p379 = scmp.eq.s32.totalorder %s38, 3
      %p380 = por %p378, %p379
      %p381 = scmp.ne.s32.totalorder %s373, %s376
      %p382 = scmp.eq.s32.totalorder %s38, 0
      %p383 = por %p381, %p382
      %p384 = scmp.ne.s32.totalorder %s373, %s376
      %p385 = scmp.eq.s32.totalorder %s43, 3
      %p386 = por %p384, %p385
      %p387 = scmp.ne.s32.totalorder %s376, %s377
      %p388 = scmp.eq.s32.totalorder %s43, 0
      %p389 = por %p387, %p388
      %p390 = scmp.ne.s32.totalorder %s376, %s377
      %p391 = scmp.eq.s32.totalorder %s44, 3
      %p392 = por %p390, %p391
      %p394 = scmp.ne.s32.totalorder %s377, %s393
      %p395 = scmp.eq.s32.totalorder %s44, 0
      %p396 = por %p394, %p395
      %s397 = ssub.s32 %s46, %s53
      %p398 = scmp.eq.s32.totalorder %s397, 0
      %s400 = sadd.s32 %s399, 1
      %s401 = scalar_select %p398, %s399, %s400
      %p404 = pneg %p398
      %p405 = scmp.eq.s32.totalorder %s38, 3
      %p406 = por %p404, %p405
      %p407 = scmp.ne.s32.totalorder %s399, %s402
      %p408 = scmp.eq.s32.totalorder %s38, 0
      %p409 = por %p407, %p408
      %p410 = scmp.ne.s32.totalorder %s399, %s402
      %p411 = scmp.eq.s32.totalorder %s43, 3
      %p412 = por %p410, %p411
      %p413 = scmp.ne.s32.totalorder %s402, %s403
      %p414 = scmp.eq.s32.totalorder %s43, 0
      %p415 = por %p413, %p414
      %p416 = scmp.ne.s32.totalorder %s402, %s403
      %p417 = scmp.eq.s32.totalorder %s44, 3
      %p418 = por %p416, %p417
      %p420 = scmp.ne.s32.totalorder %s403, %s419
      %p421 = scmp.eq.s32.totalorder %s44, 0
      %p422 = por %p420, %p421
      %s423 = ssub.s32 %s46, %s53
      %p424 = scmp.eq.s32.totalorder %s423, 0
      %s426 = sadd.s32 %s425, 1
      %s427 = scalar_select %p424, %s425, %s426
      %p430 = pneg %p424
      %p431 = scmp.eq.s32.totalorder %s38, 3
      %p432 = por %p430, %p431
      %p433 = scmp.ne.s32.totalorder %s425, %s428
      %p434 = scmp.eq.s32.totalorder %s38, 0
      %p435 = por %p433, %p434
      %p436 = scmp.ne.s32.totalorder %s425, %s428
      %p437 = scmp.eq.s32.totalorder %s43, 3
      %p438 = por %p436, %p437
      %p439 = scmp.ne.s32.totalorder %s428, %s429
      %p440 = scmp.eq.s32.totalorder %s43, 0
      %p441 = por %p439, %p440
      %p442 = scmp.ne.s32.totalorder %s428, %s429
      %p443 = scmp.eq.s32.totalorder %s44, 3
      %p444 = por %p442, %p443
      %p446 = scmp.ne.s32.totalorder %s429, %s445
      %p447 = scmp.eq.s32.totalorder %s44, 0
      %p448 = por %p446, %p447
      %s449 = ssub.s32 %s46, %s53
      %p450 = scmp.eq.s32.totalorder %s449, 0
      %s452 = sadd.s32 %s451, 1
      %s453 = scalar_select %p450, %s451, %s452
      %p456 = pneg %p450
      %p457 = scmp.eq.s32.totalorder %s38, 3
      %p458 = por %p456, %p457
      %p459 = scmp.ne.s32.totalorder %s451, %s454
      %p460 = scmp.eq.s32.totalorder %s38, 0
      %p461 = por %p459, %p460
      %p462 = scmp.ne.s32.totalorder %s451, %s454
      %p463 = scmp.eq.s32.totalorder %s43, 3
      %p464 = por %p462, %p463
      %p465 = scmp.ne.s32.totalorder %s454, %s455
      %p466 = scmp.eq.s32.totalorder %s43, 0
      %p467 = por %p465, %p466
      %p468 = scmp.ne.s32.totalorder %s454, %s455
      %p469 = scmp.eq.s32.totalorder %s44, 3
      %p470 = por %p468, %p469
      %p472 = scmp.ne.s32.totalorder %s455, %s471
      %p473 = scmp.eq.s32.totalorder %s44, 0
      %p474 = por %p472, %p473
      %s475 = ssub.s32 %s46, %s53
      %p476 = scmp.eq.s32.totalorder %s475, 0
      %s478 = sadd.s32 %s477, 1
      %s479 = scalar_select %p476, %s477, %s478
      %p482 = pneg %p476
      %p483 = scmp.eq.s32.totalorder %s38, 3
      %p484 = por %p482, %p483
      %p485 = scmp.ne.s32.totalorder %s477, %s480
      %p486 = scmp.eq.s32.totalorder %s38, 0
      %p487 = por %p485, %p486
      %p488 = scmp.ne.s32.totalorder %s477, %s480
      %p489 = scmp.eq.s32.totalorder %s43, 3
      %p490 = por %p488, %p489
      %p491 = scmp.ne.s32.totalorder %s480, %s481
      %p492 = scmp.eq.s32.totalorder %s43, 0
      %p493 = por %p491, %p492
      %p494 = scmp.ne.s32.totalorder %s480, %s481
      %p495 = scmp.eq.s32.totalorder %s44, 3
      %p496 = por %p494, %p495
      %p498 = scmp.ne.s32.totalorder %s481, %s497
      %p499 = scmp.eq.s32.totalorder %s44, 0
      %p500 = por %p498, %p499
      %s502 = sadd.s32 %s501, 1
      %p505 = scmp.eq.s32.totalorder %s38, 3
      %p506 = scmp.ne.s32.totalorder %s501, %s503
      %p507 = scmp.eq.s32.totalorder %s38, 0
      %p508 = por %p506, %p507
      %p509 = scmp.ne.s32.totalorder %s501, %s503
      %p510 = scmp.eq.s32.totalorder %s43, 3
      %p511 = por %p509, %p510
      %p512 = scmp.ne.s32.totalorder %s503, %s504
      %p513 = scmp.eq.s32.totalorder %s43, 0
      %p514 = por %p512, %p513
      %p515 = scmp.ne.s32.totalorder %s503, %s504
      %p516 = scmp.eq.s32.totalorder %s44, 3
      %p517 = por %p515, %p516
      %p519 = scmp.ne.s32.totalorder %s504, %s518
      %p520 = scmp.eq.s32.totalorder %s44, 0
      %p521 = por %p519, %p520
      %s523 = sadd.s32 %s522, 1
      %p526 = scmp.eq.s32.totalorder %s38, 3
      %p527 = scmp.ne.s32.totalorder %s522, %s524
      %p528 = scmp.eq.s32.totalorder %s38, 0
      %p529 = por %p527, %p528
      %p530 = scmp.ne.s32.totalorder %s522, %s524
      %p531 = scmp.eq.s32.totalorder %s43, 3
      %p532 = por %p530, %p531
      %p533 = scmp.ne.s32.totalorder %s524, %s525
      %p534 = scmp.eq.s32.totalorder %s43, 0
      %p535 = por %p533, %p534
      %p536 = scmp.ne.s32.totalorder %s524, %s525
      %p537 = scmp.eq.s32.totalorder %s44, 3
      %p538 = por %p536, %p537
      %p540 = scmp.ne.s32.totalorder %s525, %s539
      %p541 = scmp.eq.s32.totalorder %s44, 0
      %p542 = por %p540, %p541
      %s544 = sadd.s32 %s543, 1
      %p547 = scmp.eq.s32.totalorder %s38, 3
      %p548 = scmp.ne.s32.totalorder %s543, %s545
      %p549 = scmp.eq.s32.totalorder %s38, 0
      %p550 = por %p548, %p549
      %p551 = scmp.ne.s32.totalorder %s543, %s545
      %p552 = scmp.eq.s32.totalorder %s43, 3
      %p553 = por %p551, %p552
      %p554 = scmp.ne.s32.totalorder %s545, %s546
      %p555 = scmp.eq.s32.totalorder %s43, 0
      %p556 = por %p554, %p555
      %p557 = scmp.ne.s32.totalorder %s545, %s546
      %p558 = scmp.eq.s32.totalorder %s44, 3
      %p559 = por %p557, %p558
      %p561 = scmp.ne.s32.totalorder %s546, %s560
      %p562 = scmp.eq.s32.totalorder %s44, 0
      %p563 = por %p561, %p562
      %s565 = sadd.s32 %s564, 1
      %p568 = scmp.eq.s32.totalorder %s38, 3
      %p569 = scmp.ne.s32.totalorder %s564, %s566
      %p570 = scmp.eq.s32.totalorder %s38, 0
      %p571 = por %p569, %p570
      %p572 = scmp.ne.s32.totalorder %s564, %s566
      %p573 = scmp.eq.s32.totalorder %s43, 3
      %p574 = por %p572, %p573
      %p575 = scmp.ne.s32.totalorder %s566, %s567
      %p576 = scmp.eq.s32.totalorder %s43, 0
      %p577 = por %p575, %p576
      %p578 = scmp.ne.s32.totalorder %s566, %s567
      %p579 = scmp.eq.s32.totalorder %s44, 3
      %p580 = por %p578, %p579
      %p582 = scmp.ne.s32.totalorder %s567, %s581
      %p583 = scmp.eq.s32.totalorder %s44, 0
      %p584 = por %p582, %p583
      %s586 = sadd.s32 %s585, 1
      %p589 = scmp.eq.s32.totalorder %s38, 3
      %p590 = scmp.ne.s32.totalorder %s585, %s587
      %p591 = scmp.eq.s32.totalorder %s38, 0
      %p592 = por %p590, %p591
      %p593 = scmp.ne.s32.totalorder %s585, %s587
      %p594 = scmp.eq.s32.totalorder %s43, 3
      %p595 = por %p593, %p594
      %p596 = scmp.ne.s32.totalorder %s587, %s588
      %p597 = scmp.eq.s32.totalorder %s43, 0
      %p598 = por %p596, %p597
      %p599 = scmp.ne.s32.totalorder %s587, %s588
      %p600 = scmp.eq.s32.totalorder %s44, 3
      %p601 = por %p599, %p600
      %p603 = scmp.ne.s32.totalorder %s588, %s602
      %p604 = scmp.eq.s32.totalorder %s44, 0
      %p605 = por %p603, %p604
      %s607 = sadd.s32 %s606, 1
      %p610 = scmp.eq.s32.totalorder %s38, 3
      %p611 = scmp.ne.s32.totalorder %s606, %s608
      %p612 = scmp.eq.s32.totalorder %s38, 0
      %p613 = por %p611, %p612
      %p614 = scmp.ne.s32.totalorder %s606, %s608
      %p615 = scmp.eq.s32.totalorder %s43, 3
      %p616 = por %p614, %p615
      %p617 = scmp.ne.s32.totalorder %s608, %s609
      %p618 = scmp.eq.s32.totalorder %s43, 0
      %p619 = por %p617, %p618
      %p620 = scmp.ne.s32.totalorder %s608, %s609
      %p621 = scmp.eq.s32.totalorder %s44, 3
      %p622 = por %p620, %p621
      %p624 = scmp.ne.s32.totalorder %s609, %s623
      %p625 = scmp.eq.s32.totalorder %s44, 0
      %p626 = por %p624, %p625
      %s628 = sadd.s32 %s627, 1
      %p631 = scmp.eq.s32.totalorder %s38, 3
      %p632 = scmp.ne.s32.totalorder %s627, %s629
      %p633 = scmp.eq.s32.totalorder %s38, 0
      %p634 = por %p632, %p633
      %p635 = scmp.ne.s32.totalorder %s627, %s629
      %p636 = scmp.eq.s32.totalorder %s43, 3
      %p637 = por %p635, %p636
      %p638 = scmp.ne.s32.totalorder %s629, %s630
      %p639 = scmp.eq.s32.totalorder %s43, 0
      %p640 = por %p638, %p639
      %p641 = scmp.ne.s32.totalorder %s629, %s630
      %p642 = scmp.eq.s32.totalorder %s44, 3
      %p643 = por %p641, %p642
      %p645 = scmp.ne.s32.totalorder %s630, %s644
      %p646 = scmp.eq.s32.totalorder %s44, 0
      %p647 = por %p645, %p646
      %s648 = ssub.s32 %s45, %s57
      %p649 = scmp.eq.s32.totalorder %s648, 0
      %s651 = sadd.s32 %s650, 1
      %s652 = scalar_select %p649, %s650, %s651
      %p655 = pneg %p649
      %p656 = scmp.eq.s32.totalorder %s38, 3
      %p657 = por %p655, %p656
      %p658 = scmp.ne.s32.totalorder %s650, %s653
      %p659 = scmp.eq.s32.totalorder %s38, 0
      %p660 = por %p658, %p659
      %p661 = scmp.ne.s32.totalorder %s650, %s653
      %p662 = scmp.eq.s32.totalorder %s43, 3
      %p663 = por %p661, %p662
      %p664 = scmp.ne.s32.totalorder %s653, %s654
      %p665 = scmp.eq.s32.totalorder %s43, 0
      %p666 = por %p664, %p665
      %p667 = scmp.ne.s32.totalorder %s653, %s654
      %p668 = scmp.eq.s32.totalorder %s44, 3
      %p669 = por %p667, %p668
      %p671 = scmp.ne.s32.totalorder %s654, %s670
      %p672 = scmp.eq.s32.totalorder %s44, 0
      %p673 = por %p671, %p672
      %p674 = scmp.le.s32.totalorder 1, %s38
      %p675 = scmp.lt.s32.totalorder %s38, 5
      %p676 = pnand %p674, %p675
      %p677 = pneg %p676
      // Predicated region
      $region9: #{clip_vit_image_encoder.1} parent=5 // pred_check
        _
      $region10: #{clip_vit_image_encoder.1} parent=5 // pred_check_branch
        %679 = sbr.rel (%p676) target = $region12
      $region11: #{clip_vit_image_encoder.1} parent=5 // pred_region
        %s680 = ssub.s32 %s38, 1
        // Predicated region
        $region13: #{clip_vit_image_encoder.1} parent=11 // pred_check
          %p681 = pneg %p97
        $region14: #{clip_vit_image_encoder.1} parent=11 // pred_check_branch
          %683 = sbr.rel (%p681) target = $region16
        $region15: #{clip_vit_image_encoder.1} parent=11 // pred_region
          %s685 = ssub.s32 1536, 1536
          %686 = vsyncadd [#allocation5], %s685
          %s687 = sshll.u32 [#allocation4], 4
          %s688 = int_to_ptr.vmem [resolvable:$true] %s687
          %693 = dma.hbm_to_vmem [thread:$0]  %s1, 1536, %s688, [#allocation5], 64, 64, 4
        $region16: #{clip_vit_image_encoder.1} parent=11 // pred_fallthru
          _
        // Predicated region
        $region17: #{clip_vit_image_encoder.1} parent=11 // pred_check
          %p694 = pneg %p118
        $region18: #{clip_vit_image_encoder.1} parent=11 // pred_check_branch
          %696 = sbr.rel (%p694) target = $region20
        $region19: #{clip_vit_image_encoder.1} parent=11 // pred_region
          %s698 = ssub.s32 16, 16
          %699 = vsyncadd [#allocation8], %s698
          %s701 = sshll.u32 [#allocation7], 4
          %s702 = int_to_ptr.vmem [resolvable:$true] %s701
          %704 = dma.hbm_to_vmem [thread:$0]  %s2, 16, %s702, [#allocation8]
        $region20: #{clip_vit_image_encoder.1} parent=11 // pred_fallthru
          _
        // Predicated region
        $region21: #{clip_vit_image_encoder.1} parent=11 // pred_check
          %p705 = pneg %p139
        $region22: #{clip_vit_image_encoder.1} parent=11 // pred_check_branch
          %707 = sbr.rel (%p705) target = $region24
        $region23: #{clip_vit_image_encoder.1} parent=11 // pred_region
          _
        $region24: #{clip_vit_image_encoder.1} parent=11 // pred_fallthru
          _
        // Predicated region
        $region25: #{clip_vit_image_encoder.1} parent=11 // pred_check
          %p708 = pneg %p160
        $region26: #{clip_vit_image_encoder.1} parent=11 // pred_check_branch
          %710 = sbr.rel (%p708) target = $region28
        $region27: #{clip_vit_image_encoder.1} parent=11 // pred_region
          _
        $region28: #{clip_vit_image_encoder.1} parent=11 // pred_fallthru
          _
        // Predicated region
        $region29: #{clip_vit_image_encoder.1} parent=11 // pred_check
          %p711 = pneg %p181
        $region30: #{clip_vit_image_encoder.1} parent=11 // pred_check_branch
          %713 = sbr.rel (%p711) target = $region32
        $region31: #{clip_vit_image_encoder.1} parent=11 // pred_region
          _
        $region32: #{clip_vit_image_encoder.1} parent=11 // pred_fallthru
          _
        // Predicated region
        $region33: #{clip_vit_image_encoder.1} parent=11 // pred_check
          %p714 = pneg %p514
        $region34: #{clip_vit_image_encoder.1} parent=11 // pred_check_branch
          %716 = sbr.rel (%p714) target = $region36
        $region35: #{clip_vit_image_encoder.1} parent=11 // pred_region
          _
        $region36: #{clip_vit_image_encoder.1} parent=11 // pred_fallthru
          _
        // Predicated region
        $region37: #{clip_vit_image_encoder.1} parent=11 // pred_check
          %p717 = pneg %p535
        $region38: #{clip_vit_image_encoder.1} parent=11 // pred_check_branch
          %719 = sbr.rel (%p717) target = $region40
        $region39: #{clip_vit_image_encoder.1} parent=11 // pred_region
          _
        $region40: #{clip_vit_image_encoder.1} parent=11 // pred_fallthru
          _
        // Predicated region
        $region41: #{clip_vit_image_encoder.1} parent=11 // pred_check
          %p720 = pneg %p556
        $region42: #{clip_vit_image_encoder.1} parent=11 // pred_check_branch
          %722 = sbr.rel (%p720) target = $region44
        $region43: #{clip_vit_image_encoder.1} parent=11 // pred_region
          %s724 = ssub.s32 1024, 1024
          %725 = vsyncadd [#allocation8], %s724
          %s726 = sshll.u32 [#allocation19], 4
          %s727 = int_to_ptr.vmem [resolvable:$true] %s726
          %732 = dma.hbm_to_vmem [thread:$0]  %s20, 1024, %s727, [#allocation8], 64, 64, 4
        $region44: #{clip_vit_image_encoder.1} parent=11 // pred_fallthru
          _
        // Predicated region
        $region45: #{clip_vit_image_encoder.1} parent=11 // pred_check
          %p733 = pneg %p577
        $region46: #{clip_vit_image_encoder.1} parent=11 // pred_check_branch
          %735 = sbr.rel (%p733) target = $region48
        $region47: #{clip_vit_image_encoder.1} parent=11 // pred_region
          %s737 = ssub.s32 1024, 1024
          %738 = vsyncadd [#allocation21], %s737
          %s739 = sshll.u32 [#allocation20], 4
          %s740 = int_to_ptr.vmem [resolvable:$true] %s739
          %745 = dma.hbm_to_vmem [thread:$0]  %s21, 1024, %s740, [#allocation21], 64, 64, 4
        $region48: #{clip_vit_image_encoder.1} parent=11 // pred_fallthru
          _
        // Predicated region
        $region49: #{clip_vit_image_encoder.1} parent=11 // pred_check
          %p746 = pneg %p598
        $region50: #{clip_vit_image_encoder.1} parent=11 // pred_check_branch
          %748 = sbr.rel (%p746) target = $region52
        $region51: #{clip_vit_image_encoder.1} parent=11 // pred_region
          %s750 = ssub.s32 16, 16
          %751 = vsyncadd [#allocation21], %s750
          %s753 = sshll.u32 [#allocation22], 4
          %s754 = int_to_ptr.vmem [resolvable:$true] %s753
          %756 = dma.hbm_to_vmem [thread:$0]  %s22, 16, %s754, [#allocation21]
        $region52: #{clip_vit_image_encoder.1} parent=11 // pred_fallthru
          _
        // Predicated region
        $region53: #{clip_vit_image_encoder.1} parent=11 // pred_check
          %p757 = pneg %p619
        $region54: #{clip_vit_image_encoder.1} parent=11 // pred_check_branch
          %759 = sbr.rel (%p757) target = $region56
        $region55: #{clip_vit_image_encoder.1} parent=11 // pred_region
          %s761 = ssub.s32 1024, 1024
          %762 = vsyncadd [#allocation24], %s761
          %s763 = sshll.u32 [#allocation23], 4
          %s764 = int_to_ptr.vmem [resolvable:$true] %s763
          %769 = dma.hbm_to_vmem [thread:$0]  %s23, 1024, %s764, [#allocation24], 64, 64, 4
        $region56: #{clip_vit_image_encoder.1} parent=11 // pred_fallthru
          _
        // Predicated region
        $region57: #{clip_vit_image_encoder.1} parent=11 // pred_check
          %p770 = pneg %p640
        $region58: #{clip_vit_image_encoder.1} parent=11 // pred_check_branch
          %772 = sbr.rel (%p770) target = $region60
        $region59: #{clip_vit_image_encoder.1} parent=11 // pred_region
          %s774 = ssub.s32 16, 16
          %775 = vsyncadd [#allocation24], %s774
          %s777 = sshll.u32 [#allocation25], 4
          %s778 = int_to_ptr.vmem [resolvable:$true] %s777
          %780 = dma.hbm_to_vmem [thread:$0]  %s24, 16, %s778, [#allocation24]
        $region60: #{clip_vit_image_encoder.1} parent=11 // pred_fallthru
          _
      $region12: #{clip_vit_image_encoder.1} parent=5 // pred_fallthru
        _
      %p781 = scmp.lt.s32.totalorder %s38, 4
      // Predicated region
      $region61: #{clip_vit_image_encoder.1} parent=5 // pred_check
        %p782 = pneg %p781
      $region62: #{clip_vit_image_encoder.1} parent=5 // pred_check_branch
        %784 = sbr.rel (%p782) target = $region64
      $region63: #{clip_vit_image_encoder.1} parent=5 // pred_region
        // Predicated region
        $region65: #{clip_vit_image_encoder.1} parent=63 // pred_check
          %p785 = pneg %p70
        $region66: #{clip_vit_image_encoder.1} parent=63 // pred_check_branch
          %787 = sbr.rel (%p785) target = $region68
        $region67: #{clip_vit_image_encoder.1} parent=63 // pred_region
          %p788 = scmp.lt.s32.totalorder %s45, 1
          %s789 = scalar_select %p788, %s45, 1
          %s790 = smul.addr %s789, 2
          %s791 = smul.addr %s790, 4
          %s792 = scalar_lea.vmem %s0, %s791
        $region68: #{clip_vit_image_encoder.1} parent=63 // pred_fallthru
          _
        // Predicated region
        $region69: #{clip_vit_image_encoder.1} parent=63 // pred_check
          %p793 = pneg %p201
        $region70: #{clip_vit_image_encoder.1} parent=63 // pred_check_branch
          %795 = sbr.rel (%p793) target = $region72
        $region71: #{clip_vit_image_encoder.1} parent=63 // pred_region
          %s796 = sand.u32 %s38, 1
          %s797 = scalar_lea.sflag [#allocation5], %s796
          %s798 = sand.u32 %s191, 1
          %s799 = scalar_lea.vmem [#allocation9], %s798
          %s801 = ssub.s32 16, 16
          %802 = vsyncadd %s797, %s801
          %s803 = smul.addr %s46, 16
          %s804 = scalar_lea.hbm %s6, %s803
          %s806 = sshll.u32 %s799, 4
          %s807 = int_to_ptr.vmem [resolvable:$true] %s806
          %809 = dma.hbm_to_vmem [thread:$0]  %s804, 16, %s807, %s797
        $region72: #{clip_vit_image_encoder.1} parent=63 // pred_fallthru
          _
        // Predicated region
        $region73: #{clip_vit_image_encoder.1} parent=63 // pred_check
          %p810 = pneg %p227
        $region74: #{clip_vit_image_encoder.1} parent=63 // pred_check_branch
          %812 = sbr.rel (%p810) target = $region76
        $region75: #{clip_vit_image_encoder.1} parent=63 // pred_region
          %s813 = sand.u32 %s38, 1
          %s814 = scalar_lea.sflag [#allocation5], %s813
          %s815 = sand.u32 %s217, 1
          %s816 = scalar_lea.vmem [#allocation10], %s815
          %s818 = ssub.s32 16, 16
          %819 = vsyncadd %s814, %s818
          %s820 = smul.addr %s46, 16
          %s821 = scalar_lea.hbm %s7, %s820
          %s823 = sshll.u32 %s816, 4
          %s824 = int_to_ptr.vmem [resolvable:$true] %s823
          %826 = dma.hbm_to_vmem [thread:$0]  %s821, 16, %s824, %s814
        $region76: #{clip_vit_image_encoder.1} parent=63 // pred_fallthru
          _
        // Predicated region
        $region77: #{clip_vit_image_encoder.1} parent=63 // pred_check
          %p827 = pneg %p253
        $region78: #{clip_vit_image_encoder.1} parent=63 // pred_check_branch
          %829 = sbr.rel (%p827) target = $region80
        $region79: #{clip_vit_image_encoder.1} parent=63 // pred_region
          %p830 = scmp.lt.s32.totalorder %s46, 1
          %s831 = scalar_select %p830, %s46, 1
          %s832 = smul.addr %s831, 48
          %s833 = smul.addr %s832, 4
          %s834 = scalar_lea.vmem %s8, %s833
        $region80: #{clip_vit_image_encoder.1} parent=63 // pred_fallthru
          _
        // Predicated region
        $region81: #{clip_vit_image_encoder.1} parent=63 // pred_check
          %p835 = pneg %p279
        $region82: #{clip_vit_image_encoder.1} parent=63 // pred_check_branch
          %837 = sbr.rel (%p835) target = $region84
        $region83: #{clip_vit_image_encoder.1} parent=63 // pred_region
          %s838 = sand.u32 %s38, 1
          %s839 = scalar_lea.sflag [#allocation5], %s838
          %s840 = sand.u32 %s269, 1
          %s841 = smul.addr %s840, 3
          %s842 = scalar_lea.vmem [#allocation11], %s841
          %s844 = ssub.s32 48, 48
          %845 = vsyncadd %s839, %s844
          %s846 = smul.addr %s46, 3
          %s847 = smul.addr %s846, 16
          %s848 = scalar_lea.hbm %s9, %s847
          %s850 = sshll.u32 %s842, 4
          %s851 = int_to_ptr.vmem [resolvable:$true] %s850
          %853 = dma.hbm_to_vmem [thread:$0]  %s848, 48, %s851, %s839
        $region84: #{clip_vit_image_encoder.1} parent=63 // pred_fallthru
          _
        // Predicated region
        $region85: #{clip_vit_image_encoder.1} parent=63 // pred_check
          %p854 = pneg %p305
        $region86: #{clip_vit_image_encoder.1} parent=63 // pred_check_branch
          %856 = sbr.rel (%p854) target = $region88
        $region87: #{clip_vit_image_encoder.1} parent=63 // pred_region
          %s857 = sand.u32 %s38, 1
          %s858 = scalar_lea.sflag [#allocation5], %s857
          %s859 = sand.u32 %s295, 1
          %s860 = smul.addr %s859, 64
          %s861 = scalar_lea.vmem [#allocation12], %s860
          %s863 = ssub.s32 1024, 1024
          %864 = vsyncadd %s858, %s863
          %s865 = smul.addr %s46, 16
          %s866 = smul.addr %s865, 64
          %s867 = scalar_lea.hbm %s10, %s866
          %s868 = sshll.u32 %s861, 4
          %s869 = int_to_ptr.vmem [resolvable:$true] %s868
          %874 = dma.hbm_to_vmem [thread:$0]  %s867, 1024, %s869, %s858, 64, 64, 4
        $region88: #{clip_vit_image_encoder.1} parent=63 // pred_fallthru
          _
        // Predicated region
        $region89: #{clip_vit_image_encoder.1} parent=63 // pred_check
          %p875 = pneg %p331
        $region90: #{clip_vit_image_encoder.1} parent=63 // pred_check_branch
          %877 = sbr.rel (%p875) target = $region92
        $region91: #{clip_vit_image_encoder.1} parent=63 // pred_region
          %s878 = sand.u32 %s38, 1
          %s879 = scalar_lea.sflag [#allocation5], %s878
          %s880 = sand.u32 %s321, 1
          %s881 = scalar_lea.vmem [#allocation13], %s880
          %s883 = ssub.s32 16, 16
          %884 = vsyncadd %s879, %s883
          %s885 = smul.addr %s46, 16
          %s886 = scalar_lea.hbm %s11, %s885
          %s888 = sshll.u32 %s881, 4
          %s889 = int_to_ptr.vmem [resolvable:$true] %s888
          %891 = dma.hbm_to_vmem [thread:$0]  %s886, 16, %s889, %s879
        $region92: #{clip_vit_image_encoder.1} parent=63 // pred_fallthru
          _
        // Predicated region
        $region93: #{clip_vit_image_encoder.1} parent=63 // pred_check
          %p892 = pneg %p357
        $region94: #{clip_vit_image_encoder.1} parent=63 // pred_check_branch
          %894 = sbr.rel (%p892) target = $region96
        $region95: #{clip_vit_image_encoder.1} parent=63 // pred_region
          %s895 = sand.u32 %s38, 1
          %s896 = scalar_lea.sflag [#allocation5], %s895
          %s897 = sand.u32 %s347, 1
          %s898 = scalar_lea.vmem [#allocation14], %s897
          %s900 = ssub.s32 16, 16
          %901 = vsyncadd %s896, %s900
          %s902 = smul.addr %s46, 16
          %s903 = scalar_lea.hbm %s12, %s902
          %s905 = sshll.u32 %s898, 4
          %s906 = int_to_ptr.vmem [resolvable:$true] %s905
          %908 = dma.hbm_to_vmem [thread:$0]  %s903, 16, %s906, %s896
        $region96: #{clip_vit_image_encoder.1} parent=63 // pred_fallthru
          _
        // Predicated region
        $region97: #{clip_vit_image_encoder.1} parent=63 // pred_check
          %p909 = pneg %p383
        $region98: #{clip_vit_image_encoder.1} parent=63 // pred_check_branch
          %911 = sbr.rel (%p909) target = $region100
        $region99: #{clip_vit_image_encoder.1} parent=63 // pred_region
          %s912 = sand.u32 %s38, 1
          %s913 = scalar_lea.sflag [#allocation5], %s912
          %s914 = sand.u32 %s373, 1
          %s915 = scalar_lea.vmem [#allocation15], %s914
          %s917 = ssub.s32 16, 16
          %918 = vsyncadd %s913, %s917
          %s919 = smul.addr %s46, 16
          %s920 = scalar_lea.hbm %s13, %s919
          %s922 = sshll.u32 %s915, 4
          %s923 = int_to_ptr.vmem [resolvable:$true] %s922
          %925 = dma.hbm_to_vmem [thread:$0]  %s920, 16, %s923, %s913
        $region100: #{clip_vit_image_encoder.1} parent=63 // pred_fallthru
          _
        // Predicated region
        $region101: #{clip_vit_image_encoder.1} parent=63 // pred_check
          %p926 = pneg %p409
        $region102: #{clip_vit_image_encoder.1} parent=63 // pred_check_branch
          %928 = sbr.rel (%p926) target = $region104
        $region103: #{clip_vit_image_encoder.1} parent=63 // pred_region
          %p929 = scmp.lt.s32.totalorder %s46, 1
          %s930 = scalar_select %p929, %s46, 1
          %s931 = smul.addr %s930, 64
          %s932 = smul.addr %s931, 4
          %s933 = scalar_lea.vmem %s14, %s932
        $region104: #{clip_vit_image_encoder.1} parent=63 // pred_fallthru
          _
        // Predicated region
        $region105: #{clip_vit_image_encoder.1} parent=63 // pred_check
          %p934 = pneg %p435
        $region106: #{clip_vit_image_encoder.1} parent=63 // pred_check_branch
          %936 = sbr.rel (%p934) target = $region108
        $region107: #{clip_vit_image_encoder.1} parent=63 // pred_region
          %s937 = sand.u32 %s38, 1
          %s938 = scalar_lea.sflag [#allocation5], %s937
          %s939 = sand.u32 %s425, 1
          %s940 = smul.addr %s939, 4
          %s941 = scalar_lea.vmem [#allocation16], %s940
          %s943 = ssub.s32 64, 64
          %944 = vsyncadd %s938, %s943
          %s945 = smul.addr %s46, 4
          %s946 = smul.addr %s945, 16
          %s947 = scalar_lea.hbm %s15, %s946
          %s949 = sshll.u32 %s941, 4
          %s950 = int_to_ptr.vmem [resolvable:$true] %s949
          %952 = dma.hbm_to_vmem [thread:$0]  %s947, 64, %s950, %s938
        $region108: #{clip_vit_image_encoder.1} parent=63 // pred_fallthru
          _
        // Predicated region
        $region109: #{clip_vit_image_encoder.1} parent=63 // pred_check
          %p953 = pneg %p461
        $region110: #{clip_vit_image_encoder.1} parent=63 // pred_check_branch
          %955 = sbr.rel (%p953) target = $region112
        $region111: #{clip_vit_image_encoder.1} parent=63 // pred_region
          %s956 = sand.u32 %s38, 1
          %s957 = scalar_lea.sflag [#allocation5], %s956
          %s958 = sand.u32 %s451, 1
          %s959 = smul.addr %s958, 256
          %s960 = scalar_lea.vmem [#allocation17], %s959
          %s962 = ssub.s32 4096, 4096
          %963 = vsyncadd %s957, %s962
          %s964 = smul.addr %s46, 64
          %s965 = smul.addr %s964, 64
          %s966 = scalar_lea.hbm %s16, %s965
          %s967 = sshll.u32 %s960, 4
          %s968 = int_to_ptr.vmem [resolvable:$true] %s967
          %973 = dma.hbm_to_vmem [thread:$0]  %s966, 4096, %s968, %s957, 64, 64, 4
        $region112: #{clip_vit_image_encoder.1} parent=63 // pred_fallthru
          _
        // Predicated region
        $region113: #{clip_vit_image_encoder.1} parent=63 // pred_check
          %p974 = pneg %p487
        $region114: #{clip_vit_image_encoder.1} parent=63 // pred_check_branch
          %976 = sbr.rel (%p974) target = $region116
        $region115: #{clip_vit_image_encoder.1} parent=63 // pred_region
          %s977 = sand.u32 %s38, 1
          %s978 = scalar_lea.sflag [#allocation5], %s977
          %s979 = sand.u32 %s477, 1
          %s980 = scalar_lea.vmem [#allocation18], %s979
          %s982 = ssub.s32 16, 16
          %983 = vsyncadd %s978, %s982
          %s984 = smul.addr %s46, 16
          %s985 = scalar_lea.hbm %s17, %s984
          %s987 = sshll.u32 %s980, 4
          %s988 = int_to_ptr.vmem [resolvable:$true] %s987
          %990 = dma.hbm_to_vmem [thread:$0]  %s985, 16, %s988, %s978
        $region116: #{clip_vit_image_encoder.1} parent=63 // pred_fallthru
          _
      $region64: #{clip_vit_image_encoder.1} parent=5 // pred_fallthru
        _
      %p991 = scmp.le.s32.totalorder 1, %s38
      %p992 = scmp.lt.s32.totalorder %s38, 5
      %p993 = pnand %p991, %p992
      %p994 = pneg %p993
      // Predicated region
      $region117: #{clip_vit_image_encoder.1} parent=5 // pred_check
        _
      $region118: #{clip_vit_image_encoder.1} parent=5 // pred_check_branch
        %996 = sbr.rel (%p993) target = $region120
      $region119: #{clip_vit_image_encoder.1} parent=5 // pred_region
        %s997 = ssub.s32 %s38, 1
        // Predicated region
        $region121: #{clip_vit_image_encoder.1} parent=119 // pred_check
          %p998 = pneg %p97
        $region122: #{clip_vit_image_encoder.1} parent=119 // pred_check_branch
          %1000 = sbr.rel (%p998) target = $region124
        $region123: #{clip_vit_image_encoder.1} parent=119 // pred_region
          %1001 = dma.done [#allocation5], 1536
        $region124: #{clip_vit_image_encoder.1} parent=119 // pred_fallthru
          _
        // Predicated region
        $region125: #{clip_vit_image_encoder.1} parent=119 // pred_check
          %p1002 = pneg %p118
        $region126: #{clip_vit_image_encoder.1} parent=119 // pred_check_branch
          %1004 = sbr.rel (%p1002) target = $region128
        $region127: #{clip_vit_image_encoder.1} parent=119 // pred_region
          %1005 = dma.done [#allocation8], 16
        $region128: #{clip_vit_image_encoder.1} parent=119 // pred_fallthru
          _
        %s1006 = sand.u32 %s43, 1
        %s1007 = scalar_lea.sflag [#allocation5], %s1006
        %s1008 = sand.u32 %s194, 1
        %s1009 = scalar_lea.vmem [#allocation9], %s1008
        // Predicated region
        $region129: #{clip_vit_image_encoder.1} parent=119 // pred_check
          %p1010 = pneg %p207
        $region130: #{clip_vit_image_encoder.1} parent=119 // pred_check_branch
          %1012 = sbr.rel (%p1010) target = $region132
        $region131: #{clip_vit_image_encoder.1} parent=119 // pred_region
          %1013 = dma.done %s1007, 16
        $region132: #{clip_vit_image_encoder.1} parent=119 // pred_fallthru
          _
        %s1014 = sand.u32 %s43, 1
        %s1015 = scalar_lea.sflag [#allocation5], %s1014
        %s1016 = sand.u32 %s220, 1
        %s1017 = scalar_lea.vmem [#allocation10], %s1016
        // Predicated region
        $region133: #{clip_vit_image_encoder.1} parent=119 // pred_check
          %p1018 = pneg %p233
        $region134: #{clip_vit_image_encoder.1} parent=119 // pred_check_branch
          %1020 = sbr.rel (%p1018) target = $region136
        $region135: #{clip_vit_image_encoder.1} parent=119 // pred_region
          %1021 = dma.done %s1015, 16
        $region136: #{clip_vit_image_encoder.1} parent=119 // pred_fallthru
          _
        %s1022 = sand.u32 %s43, 1
        %s1023 = scalar_lea.sflag [#allocation5], %s1022
        %s1024 = sand.u32 %s272, 1
        %s1025 = smul.addr %s1024, 3
        %s1026 = scalar_lea.vmem [#allocation11], %s1025
        // Predicated region
        $region137: #{clip_vit_image_encoder.1} parent=119 // pred_check
          %p1027 = pneg %p285
        $region138: #{clip_vit_image_encoder.1} parent=119 // pred_check_branch
          %1029 = sbr.rel (%p1027) target = $region140
        $region139: #{clip_vit_image_encoder.1} parent=119 // pred_region
          %1030 = dma.done %s1023, 48
        $region140: #{clip_vit_image_encoder.1} parent=119 // pred_fallthru
          _
        %s1031 = sand.u32 %s43, 1
        %s1032 = scalar_lea.sflag [#allocation5], %s1031
        %s1033 = sand.u32 %s298, 1
        %s1034 = smul.addr %s1033, 64
        %s1035 = scalar_lea.vmem [#allocation12], %s1034
        // Predicated region
        $region141: #{clip_vit_image_encoder.1} parent=119 // pred_check
          %p1036 = pneg %p311
        $region142: #{clip_vit_image_encoder.1} parent=119 // pred_check_branch
          %1038 = sbr.rel (%p1036) target = $region144
        $region143: #{clip_vit_image_encoder.1} parent=119 // pred_region
          %1039 = dma.done %s1032, 1024
        $region144: #{clip_vit_image_encoder.1} parent=119 // pred_fallthru
          _
        %s1040 = sand.u32 %s43, 1
        %s1041 = scalar_lea.sflag [#allocation5], %s1040
        %s1042 = sand.u32 %s324, 1
        %s1043 = scalar_lea.vmem [#allocation13], %s1042
        // Predicated region
        $region145: #{clip_vit_image_encoder.1} parent=119 // pred_check
          %p1044 = pneg %p337
        $region146: #{clip_vit_image_encoder.1} parent=119 // pred_check_branch
          %1046 = sbr.rel (%p1044) target = $region148
        $region147: #{clip_vit_image_encoder.1} parent=119 // pred_region
          %1047 = dma.done %s1041, 16
        $region148: #{clip_vit_image_encoder.1} parent=119 // pred_fallthru
          _
        %s1048 = sand.u32 %s43, 1
        %s1049 = scalar_lea.sflag [#allocation5], %s1048
        %s1050 = sand.u32 %s350, 1
        %s1051 = scalar_lea.vmem [#allocation14], %s1050
        // Predicated region
        $region149: #{clip_vit_image_encoder.1} parent=119 // pred_check
          %p1052 = pneg %p363
        $region150: #{clip_vit_image_encoder.1} parent=119 // pred_check_branch
          %1054 = sbr.rel (%p1052) target = $region152
        $region151: #{clip_vit_image_encoder.1} parent=119 // pred_region
          %1055 = dma.done %s1049, 16
        $region152: #{clip_vit_image_encoder.1} parent=119 // pred_fallthru
          _
        %s1056 = sand.u32 %s43, 1
        %s1057 = scalar_lea.sflag [#allocation5], %s1056
        %s1058 = sand.u32 %s376, 1
        %s1059 = scalar_lea.vmem [#allocation15], %s1058
        // Predicated region
        $region153: #{clip_vit_image_encoder.1} parent=119 // pred_check
          %p1060 = pneg %p389
        $region154: #{clip_vit_image_encoder.1} parent=119 // pred_check_branch
          %1062 = sbr.rel (%p1060) target = $region156
        $region155: #{clip_vit_image_encoder.1} parent=119 // pred_region
          %1063 = dma.done %s1057, 16
        $region156: #{clip_vit_image_encoder.1} parent=119 // pred_fallthru
          _
        %s1064 = sand.u32 %s43, 1
        %s1065 = scalar_lea.sflag [#allocation5], %s1064
        %s1066 = sand.u32 %s428, 1
        %s1067 = smul.addr %s1066, 4
        %s1068 = scalar_lea.vmem [#allocation16], %s1067
        // Predicated region
        $region157: #{clip_vit_image_encoder.1} parent=119 // pred_check
          %p1069 = pneg %p441
        $region158: #{clip_vit_image_encoder.1} parent=119 // pred_check_branch
          %1071 = sbr.rel (%p1069) target = $region160
        $region159: #{clip_vit_image_encoder.1} parent=119 // pred_region
          %1072 = dma.done %s1065, 64
        $region160: #{clip_vit_image_encoder.1} parent=119 // pred_fallthru
          _
        %s1073 = sand.u32 %s43, 1
        %s1074 = scalar_lea.sflag [#allocation5], %s1073
        %s1075 = sand.u32 %s454, 1
        %s1076 = smul.addr %s1075, 256
        %s1077 = scalar_lea.vmem [#allocation17], %s1076
        // Predicated region
        $region161: #{clip_vit_image_encoder.1} parent=119 // pred_check
          %p1078 = pneg %p467
        $region162: #{clip_vit_image_encoder.1} parent=119 // pred_check_branch
          %1080 = sbr.rel (%p1078) target = $region164
        $region163: #{clip_vit_image_encoder.1} parent=119 // pred_region
          %1081 = dma.done %s1074, 4096
        $region164: #{clip_vit_image_encoder.1} parent=119 // pred_fallthru
          _
        %s1082 = sand.u32 %s43, 1
        %s1083 = scalar_lea.sflag [#allocation5], %s1082
        %s1084 = sand.u32 %s480, 1
        %s1085 = scalar_lea.vmem [#allocation18], %s1084
        // Predicated region
        $region165: #{clip_vit_image_encoder.1} parent=119 // pred_check
          %p1086 = pneg %p493
        $region166: #{clip_vit_image_encoder.1} parent=119 // pred_check_branch
          %1088 = sbr.rel (%p1086) target = $region168
        $region167: #{clip_vit_image_encoder.1} parent=119 // pred_region
          %1089 = dma.done %s1083, 16
        $region168: #{clip_vit_image_encoder.1} parent=119 // pred_fallthru
          _
        // Predicated region
        $region169: #{clip_vit_image_encoder.1} parent=119 // pred_check
          %p1090 = pneg %p556
        $region170: #{clip_vit_image_encoder.1} parent=119 // pred_check_branch
          %1092 = sbr.rel (%p1090) target = $region172
        $region171: #{clip_vit_image_encoder.1} parent=119 // pred_region
          %1093 = dma.done [#allocation8], 1024
        $region172: #{clip_vit_image_encoder.1} parent=119 // pred_fallthru
          _
        // Predicated region
        $region173: #{clip_vit_image_encoder.1} parent=119 // pred_check
          %p1094 = pneg %p577
        $region174: #{clip_vit_image_encoder.1} parent=119 // pred_check_branch
          %1096 = sbr.rel (%p1094) target = $region176
        $region175: #{clip_vit_image_encoder.1} parent=119 // pred_region
          %1097 = dma.done [#allocation21], 1024
        $region176: #{clip_vit_image_encoder.1} parent=119 // pred_fallthru
          _
        // Predicated region
        $region177: #{clip_vit_image_encoder.1} parent=119 // pred_check
          %p1098 = pneg %p598
        $region178: #{clip_vit_image_encoder.1} parent=119 // pred_check_branch
          %1100 = sbr.rel (%p1098) target = $region180
        $region179: #{clip_vit_image_encoder.1} parent=119 // pred_region
          %1101 = dma.done [#allocation21], 16
        $region180: #{clip_vit_image_encoder.1} parent=119 // pred_fallthru
          _
        // Predicated region
        $region181: #{clip_vit_image_encoder.1} parent=119 // pred_check
          %p1102 = pneg %p619
        $region182: #{clip_vit_image_encoder.1} parent=119 // pred_check_branch
          %1104 = sbr.rel (%p1102) target = $region184
        $region183: #{clip_vit_image_encoder.1} parent=119 // pred_region
          %1105 = dma.done [#allocation24], 1024
        $region184: #{clip_vit_image_encoder.1} parent=119 // pred_fallthru
          _
        // Predicated region
        $region185: #{clip_vit_image_encoder.1} parent=119 // pred_check
          %p1106 = pneg %p640
        $region186: #{clip_vit_image_encoder.1} parent=119 // pred_check_branch
          %1108 = sbr.rel (%p1106) target = $region188
        $region187: #{clip_vit_image_encoder.1} parent=119 // pred_region
          %1109 = dma.done [#allocation24], 16
        $region188: #{clip_vit_image_encoder.1} parent=119 // pred_fallthru
          _
        %p1110 = scmp.lt.s32.totalorder %s47, 1
        %s1111 = scalar_select %p1110, %s47, 1
        %s1112 = smul.addr %s1111, 2
        %s1113 = smul.addr %s1112, 4
        %s1114 = scalar_lea.vmem %s0, %s1113
        %p1115 = pneg %p76
        %p1116 = pneg %p73
        %p1117 = pneg %p97
        %p1118 = pneg %p94
        %p1119 = pneg %p118
        %p1120 = pneg %p115
        %p1121 = pneg %p139
        %p1122 = pneg %p136
        %p1123 = pneg %p160
        %p1124 = pneg %p157
        %p1125 = pneg %p181
        %p1126 = pneg %p178
        %s1127 = sand.u32 %s43, 1
        %s1128 = scalar_lea.sflag [#allocation5], %s1127
        %s1129 = sand.u32 %s194, 1
        %s1130 = scalar_lea.vmem [#allocation9], %s1129
        %p1131 = pneg %p207
        %p1132 = pneg %p204
        %s1133 = sand.u32 %s43, 1
        %s1134 = scalar_lea.sflag [#allocation5], %s1133
        %s1135 = sand.u32 %s220, 1
        %s1136 = scalar_lea.vmem [#allocation10], %s1135
        %p1137 = pneg %p233
        %p1138 = pneg %p230
        %p1139 = scmp.lt.s32.totalorder %s48, 1
        %s1140 = scalar_select %p1139, %s48, 1
        %s1141 = smul.addr %s1140, 48
        %s1142 = smul.addr %s1141, 4
        %s1143 = scalar_lea.vmem %s8, %s1142
        %p1144 = pneg %p259
        %p1145 = pneg %p256
        %s1146 = sand.u32 %s43, 1
        %s1147 = scalar_lea.sflag [#allocation5], %s1146
        %s1148 = sand.u32 %s272, 1
        %s1149 = smul.addr %s1148, 3
        %s1150 = scalar_lea.vmem [#allocation11], %s1149
        %p1151 = pneg %p285
        %p1152 = pneg %p282
        %s1153 = sand.u32 %s43, 1
        %s1154 = scalar_lea.sflag [#allocation5], %s1153
        %s1155 = sand.u32 %s298, 1
        %s1156 = smul.addr %s1155, 64
        %s1157 = scalar_lea.vmem [#allocation12], %s1156
        %p1158 = pneg %p311
        %p1159 = pneg %p308
        %s1160 = sand.u32 %s43, 1
        %s1161 = scalar_lea.sflag [#allocation5], %s1160
        %s1162 = sand.u32 %s324, 1
        %s1163 = scalar_lea.vmem [#allocation13], %s1162
        %p1164 = pneg %p337
        %p1165 = pneg %p334
        %s1166 = sand.u32 %s43, 1
        %s1167 = scalar_lea.sflag [#allocation5], %s1166
        %s1168 = sand.u32 %s350, 1
        %s1169 = scalar_lea.vmem [#allocation14], %s1168
        %p1170 = pneg %p363
        %p1171 = pneg %p360
        %s1172 = sand.u32 %s43, 1
        %s1173 = scalar_lea.sflag [#allocation5], %s1172
        %s1174 = sand.u32 %s376, 1
        %s1175 = scalar_lea.vmem [#allocation15], %s1174
        %p1176 = pneg %p389
        %p1177 = pneg %p386
        %p1178 = scmp.lt.s32.totalorder %s48, 1
        %s1179 = scalar_select %p1178, %s48, 1
        %s1180 = smul.addr %s1179, 64
        %s1181 = smul.addr %s1180, 4
        %s1182 = scalar_lea.vmem %s14, %s1181
        %p1183 = pneg %p415
        %p1184 = pneg %p412
        %s1185 = sand.u32 %s43, 1
        %s1186 = scalar_lea.sflag [#allocation5], %s1185
        %s1187 = sand.u32 %s428, 1
        %s1188 = smul.addr %s1187, 4
        %s1189 = scalar_lea.vmem [#allocation16], %s1188
        %p1190 = pneg %p441
        %p1191 = pneg %p438
        %s1192 = sand.u32 %s43, 1
        %s1193 = scalar_lea.sflag [#allocation5], %s1192
        %s1194 = sand.u32 %s454, 1
        %s1195 = smul.addr %s1194, 256
        %s1196 = scalar_lea.vmem [#allocation17], %s1195
        %p1197 = pneg %p467
        %p1198 = pneg %p464
        %s1199 = sand.u32 %s43, 1
        %s1200 = scalar_lea.sflag [#allocation5], %s1199
        %s1201 = sand.u32 %s480, 1
        %s1202 = scalar_lea.vmem [#allocation18], %s1201
        %p1203 = pneg %p493
        %p1204 = pneg %p490
        %p1205 = pneg %p514
        %p1206 = pneg %p511
        %p1207 = pneg %p535
        %p1208 = pneg %p532
        %p1209 = pneg %p556
        %p1210 = pneg %p553
        %p1211 = pneg %p577
        %p1212 = pneg %p574
        %p1213 = pneg %p598
        %p1214 = pneg %p595
        %p1215 = pneg %p619
        %p1216 = pneg %p616
        %p1217 = pneg %p640
        %p1218 = pneg %p637
        %p1219 = pneg %p666
        %p1220 = pneg %p663
        %s1221 = sand.u32 %s653, 1
        %s1222 = scalar_lea.sflag [#allocation6], %s1221
        %s1223 = sand.u32 %s653, 1
        %s1224 = scalar_lea.vmem [#allocation26], %s1223
        %p1225 = scmp.lt.s32.totalorder %s47, 1
        %s1226 = scalar_select %p1225, %s47, 1
        %s1227 = smul.addr %s1226, 2
        %s1228 = smul.addr %s1227, 4
        %s1229 = scalar_lea.vmem %s0, %s1228
        %p1230 = scmp.lt.s32.totalorder %s48, 1
        %s1231 = scalar_select %p1230, %s48, 1
        %s1232 = smul.addr %s1231, 48
        %s1233 = smul.addr %s1232, 4
        %s1234 = scalar_lea.vmem %s8, %s1233
        %p1235 = scmp.lt.s32.totalorder %s48, 1
        %s1236 = scalar_select %p1235, %s48, 1
        %s1237 = smul.addr %s1236, 64
        %s1238 = smul.addr %s1237, 4
        %s1239 = scalar_lea.vmem %s14, %s1238
        %p1241 = scmp.eq.s32.totalorder %s48, 0
        // Predicated region
        $region189: #{clip_vit_image_encoder.1} parent=119 // pred_check
          %p1242 = pneg %p1241
        $region190: #{clip_vit_image_encoder.1} parent=119 // pred_check_branch
          %1244 = sbr.rel (%p1242) target = $region192
        $region191: #{clip_vit_image_encoder.1} parent=119 // pred_region
          %v1245 = vld [vmem:[%s1229] sm:$0xff]
          %v1247 = vcombine.high %v1245, %v1245
          %v1249 = vpack.c.bf16 %v1245, %v1245
          %v1250 = vpack.c.bf16 %v1247, %v1247
          %v1251 = vld [vmem:[#allocation4] sm:$0xf]
          %v1252 = vld [vmem:[#allocation4 + $0x4] sm:$0xf]
          %v1253 = vld [vmem:[#allocation4 + $0x8] sm:$0xf]
          %v1254 = vld [vmem:[#allocation4 + $0xc] sm:$0xf]
          %v1255 = vld [vmem:[#allocation4 + $0x10] sm:$0xf]
          %v1256 = vld [vmem:[#allocation4 + $0x14] sm:$0xf]
          %v1257 = vld [vmem:[#allocation4 + $0x18] sm:$0xf]
          %v1258 = vld [vmem:[#allocation4 + $0x1c] sm:$0xf]
          %v1259 = vld [vmem:[#allocation4 + $0x20] sm:$0xf]
          %v1260 = vld [vmem:[#allocation4 + $0x24] sm:$0xf]
          %v1261 = vld [vmem:[#allocation4 + $0x28] sm:$0xf]
          %v1262 = vld [vmem:[#allocation4 + $0x2c] sm:$0xf]
          %v1263 = vld [vmem:[#allocation4 + $0x30] sm:$0xf]
          %v1264 = vld [vmem:[#allocation4 + $0x34] sm:$0xf]
          %v1265 = vld [vmem:[#allocation4 + $0x38] sm:$0xf]
          %v1266 = vld [vmem:[#allocation4 + $0x3c] sm:$0xf]
          %v1267 = vld [vmem:[#allocation4 + $0x40] sm:$0xf]
          %v1268 = vld [vmem:[#allocation4 + $0x44] sm:$0xf]
          %v1269 = vld [vmem:[#allocation4 + $0x48] sm:$0xf]
          %v1270 = vld [vmem:[#allocation4 + $0x4c] sm:$0xf]
          %v1271 = vld [vmem:[#allocation4 + $0x50] sm:$0xf]
          %v1272 = vld [vmem:[#allocation4 + $0x54] sm:$0xf]
          %v1273 = vld [vmem:[#allocation4 + $0x58] sm:$0xf]
          %v1274 = vld [vmem:[#allocation4 + $0x5c] sm:$0xf]
          %v1299 = vunpack.c.l.b16 %v1251
          %v1300 = vunpack.c.l.b16 %v1252
          %v1301 = vunpack.c.l.b16 %v1253
          %v1302 = vunpack.c.l.b16 %v1254
          %v1303 = vunpack.c.l.b16 %v1255
          %v1304 = vunpack.c.l.b16 %v1256
          %v1305 = vunpack.c.l.b16 %v1257
          %v1306 = vunpack.c.l.b16 %v1258
          %v1307 = vunpack.c.l.b16 %v1259
          %v1308 = vunpack.c.l.b16 %v1260
          %v1309 = vunpack.c.l.b16 %v1261
          %v1310 = vunpack.c.l.b16 %v1262
          %v1311 = vunpack.c.l.b16 %v1263
          %v1312 = vunpack.c.l.b16 %v1264
          %v1313 = vunpack.c.l.b16 %v1265
          %v1314 = vunpack.c.l.b16 %v1266
          %v1315 = vunpack.c.l.b16 %v1267
          %v1316 = vunpack.c.l.b16 %v1268
          %v1317 = vunpack.c.l.b16 %v1269
          %v1318 = vunpack.c.l.b16 %v1270
          %v1319 = vunpack.c.l.b16 %v1271
          %v1320 = vunpack.c.l.b16 %v1272
          %v1321 = vunpack.c.l.b16 %v1273
          %v1322 = vunpack.c.l.b16 %v1274
          %v1323 = vpack.c.b16 %v1300, %v1299
          %v1324 = vpack.c.b16 %v1302, %v1301
          %v1325 = vpack.c.b16 %v1304, %v1303
          %v1326 = vpack.c.b16 %v1306, %v1305
          %v1327 = vpack.c.b16 %v1308, %v1307
          %v1328 = vpack.c.b16 %v1310, %v1309
          %v1329 = vpack.c.b16 %v1312, %v1311
          %v1330 = vpack.c.b16 %v1314, %v1313
          %v1331 = vpack.c.b16 %v1316, %v1315
          %v1332 = vpack.c.b16 %v1318, %v1317
          %v1333 = vpack.c.b16 %v1320, %v1319
          %v1334 = vpack.c.b16 %v1322, %v1321
          %vm1347 = vcmask 523264
          %v1349 = vsel %vm1347, %v1250, 0
          %1351 = vmatprep.subr.bf16.mxu0 0
          %1352 = vmatpush1.bf16.msra.mxu0 %v1330
          %1353 = vmatprep.subr.bf16.mxu0 0
          %1354 = vmatpush1.bf16.msra.mxu0 %v1329
          %1355 = vmatprep.subr.bf16.mxu0 0
          %1356 = vmatpush1.bf16.msra.mxu0 %v1328
          %1357 = vmatprep.subr.bf16.mxu0 0
          %1358 = vmatpush1.bf16.msra.mxu0 %v1327
          %1359 = vmatprep.subr.bf16.mxu0 0
          %1360 = vmatpush1.bf16.msra.mxu0 %v1326
          %1361 = vmatprep.subr.bf16.mxu0 0
          %1362 = vmatpush1.bf16.msra.mxu0 %v1325
          %1363 = vmatprep.subr.bf16.mxu0 0
          %1364 = vmatpush1.bf16.msra.mxu0 %v1324
          %1365 = vmatprep.subr.bf16.mxu0 0
          %1366 = vmatpush1.bf16.msra.mxu0 %v1323
          %1367 = vmatprep.subr.bf16.mxu0 0
          %1368 = vmatpush2.bf16.msra.mxu0 0
          %1369 = vmatprep.subr.bf16.mxu0 0
          %1370 = vmatpush2.bf16.msra.mxu0 0
          %1371 = vmatprep.subr.bf16.mxu0 0
          %1372 = vmatpush2.bf16.msra.mxu0 0
          %1373 = vmatprep.subr.bf16.mxu0 0
          %1374 = vmatpush2.bf16.msra.mxu0 0
          %1375 = vmatprep.subr.bf16.mxu0 0
          %1376 = vmatpush2.bf16.msra.mxu0 %v1334
          %1377 = vmatprep.subr.bf16.mxu0 0
          %1378 = vmatpush2.bf16.msra.mxu0 %v1333
          %1379 = vmatprep.subr.bf16.mxu0 0
          %1380 = vmatpush2.bf16.msra.mxu0 %v1332
          %1381 = vmatprep.subr.bf16.mxu0 0
          %1382 = vmatpush2.bf16.msra.mxu0 %v1331
          %1383 = vmatprep.mubr.bf16.mxu0 %v1349
          %1384 = vmatmul.mubr.bf16.gmra.mxu0 %v1249
          %v1385 = vpop.f32.mrf.mxu0
          %v1386 = vadd.f32 0.0, %v1385
          %v1387 = vpop.f32.mrf.mxu0
          %v1388 = vpop.f32.mrf.mxu0
          %v1389 = vpop.f32.mrf.mxu0
          %1390 = vdwg.mxu0
          %v1391 = vld [vmem:[%s3] sm:$0xff]
          %1392 = vst [vmem:[#allocation2] sm:$0xff] %v1391
          %v1393 = vld [vmem:[#allocation2] sm:$0x1]
          %v1394 = vld [vmem:[#allocation7] sm:$0x1]
          %v1395 = vadd.f32 %v1393, %v1394
          %1396 = vst [vmem:[#allocation2] sm:$0x1] %v1395
          %v1397 = vld [vmem:[#allocation2 + $0x1] sm:$0xf]
          %v1398 = vadd.f32 %v1397, %v1386
          %1399 = vst [vmem:[#allocation2 + $0x1] sm:$0xf] %v1398
          %v1400 = vld [vmem:[#allocation2] sm:$0xff]
          %v1401 = vld [vmem:[%s4] sm:$0x1]
          %v1402 = vld [vmem:[%s5] sm:$0x1]
          %1403 = vadd.xlane.f32.xlu0 %v1400
          %v1404 = vpop.xlane.xlu0 %1403
          %v1405 = vrcp.pop 128.0
          %v1406 = vmul.f32 %v1404, %v1405
          %v1407 = vsub.f32 %v1400, %v1406
          %v1408 = vmul.f32 %v1407, %v1407
          %1409 = vadd.xlane.f32.xlu0 %v1408
          %v1410 = vpop.xlane.xlu0 %1409
          %v1411 = vmul.f32 %v1410, %v1405
          %v1412 = vadd.f32 %v1411, 1e-05
          %v1413 = vrsqrt.pop %v1412
          %v1414 = vmul.f32 %v1407, %v1413
          %v1416 = vlaneseq
          %v1417 = vshrl.u32 %v1416, 7
          %v1418 = vsub.s32 0, %v1417
          %v1419 = vrot.slane %v1401, %v1418
          %v1421 = vmul.f32 %v1414, %v1419
          %v1423 = vlaneseq
          %v1424 = vshrl.u32 %v1423, 7
          %v1425 = vsub.s32 0, %v1424
          %v1426 = vrot.slane %v1402, %v1425
          %v1428 = vadd.f32 %v1421, %v1426
          %1429 = vst [vmem:[#allocation2] sm:$0xff] %v1428
        $region192: #{clip_vit_image_encoder.1} parent=119 // pred_fallthru
          _
        %v1430 = vld [vmem:[#allocation2] sm:$0xff]
        %v1431 = vld [vmem:[%s1009] sm:$0x1]
        %v1432 = vld [vmem:[%s1017] sm:$0x1]
        %1433 = vadd.xlane.f32.xlu0 %v1430
        %v1434 = vpop.xlane.xlu0 %1433
        %v1435 = vrcp.pop 128.0
        %v1436 = vmul.f32 %v1434, %v1435
        %v1437 = vsub.f32 %v1430, %v1436
        %v1438 = vmul.f32 %v1437, %v1437
        %1439 = vadd.xlane.f32.xlu0 %v1438
        %v1440 = vpop.xlane.xlu0 %1439
        %v1441 = vmul.f32 %v1440, %v1435
        %v1442 = vadd.f32 %v1441, 1e-05
        %v1443 = vrsqrt.pop %v1442
        %v1444 = vmul.f32 %v1437, %v1443
        %v1446 = vlaneseq
        %v1447 = vshrl.u32 %v1446, 7
        %v1448 = vsub.s32 0, %v1447
        %v1449 = vrot.slane %v1431, %v1448
        %v1451 = vmul.f32 %v1444, %v1449
        %v1453 = vlaneseq
        %v1454 = vshrl.u32 %v1453, 7
        %v1455 = vsub.s32 0, %v1454
        %v1456 = vrot.slane %v1432, %v1455
        %v1458 = vadd.f32 %v1451, %v1456
        %v1459 = vpack.c.bf16 %v1458, %v1458
        %v1460 = vld [vmem:[%s1234] sm:$0xff]
        %v1461 = vld [vmem:[%s1234 + $0x8] sm:$0xf]
        %v1462 = vld [vmem:[%s1234 + $0xc] sm:$0xff]
        %v1463 = vld [vmem:[%s1234 + $0x14] sm:$0xf]
        %v1464 = vld [vmem:[%s1234 + $0x18] sm:$0xff]
        %v1465 = vld [vmem:[%s1234 + $0x20] sm:$0xf]
        %v1466 = vld [vmem:[%s1234 + $0x24] sm:$0xff]
        %v1467 = vld [vmem:[%s1234 + $0x2c] sm:$0xf]
        %v1468 = vld [vmem:[%s1234 + $0x30] sm:$0xff]
        %v1469 = vld [vmem:[%s1234 + $0x38] sm:$0xf]
        %v1470 = vld [vmem:[%s1234 + $0x3c] sm:$0xff]
        %v1471 = vld [vmem:[%s1234 + $0x44] sm:$0xf]
        %v1472 = vld [vmem:[%s1234 + $0x48] sm:$0xff]
        %v1473 = vld [vmem:[%s1234 + $0x50] sm:$0xf]
        %v1474 = vld [vmem:[%s1234 + $0x54] sm:$0xff]
        %v1475 = vld [vmem:[%s1234 + $0x5c] sm:$0xf]
        %v1476 = vld [vmem:[%s1234 + $0x60] sm:$0xff]
        %v1477 = vld [vmem:[%s1234 + $0x68] sm:$0xf]
        %v1478 = vld [vmem:[%s1234 + $0x6c] sm:$0xff]
        %v1479 = vld [vmem:[%s1234 + $0x74] sm:$0xf]
        %v1480 = vld [vmem:[%s1234 + $0x78] sm:$0xff]
        %v1481 = vld [vmem:[%s1234 + $0x80] sm:$0xf]
        %v1482 = vld [vmem:[%s1234 + $0x84] sm:$0xff]
        %v1483 = vld [vmem:[%s1234 + $0x8c] sm:$0xf]
        %v1484 = vld [vmem:[%s1234 + $0x90] sm:$0xff]
        %v1485 = vld [vmem:[%s1234 + $0x98] sm:$0xf]
        %v1486 = vld [vmem:[%s1234 + $0x9c] sm:$0xff]
        %v1487 = vld [vmem:[%s1234 + $0xa4] sm:$0xf]
        %v1488 = vld [vmem:[%s1234 + $0xa8] sm:$0xff]
        %v1489 = vld [vmem:[%s1234 + $0xb0] sm:$0xf]
        %v1490 = vld [vmem:[%s1234 + $0xb4] sm:$0xff]
        %v1491 = vld [vmem:[%s1234 + $0xbc] sm:$0xf]
        %v1492 = vld [vmem:[%s1026] sm:$0x7]
        %v1494 = vlaneseq
        %v1495 = vshrl.u32 %v1494, 7
        %v1496 = vsub.s32 0, %v1495
        %v1497 = vrot.slane %v1492, %v1496
        %v1498 = vlaneseq
        %v1499 = vshrl.u32 %v1498, 7
        %v1500 = vsub.s32 1, %v1499
        %v1501 = vrot.slane %v1492, %v1500
        %v1502 = vlaneseq
        %v1503 = vshrl.u32 %v1502, 7
        %v1504 = vsub.s32 2, %v1503
        %v1505 = vrot.slane %v1492, %v1504
        %v1541 = vunpack.c.l.b16 %v1460
        %v1542 = vunpack.c.h.b16 %v1460
        %v1543 = vunpack.c.l.b16 %v1461
        %v1544 = vunpack.c.l.b16 %v1462
        %v1545 = vunpack.c.h.b16 %v1462
        %v1546 = vunpack.c.l.b16 %v1463
        %v1547 = vunpack.c.l.b16 %v1464
        %v1548 = vunpack.c.h.b16 %v1464
        %v1549 = vunpack.c.l.b16 %v1465
        %v1550 = vunpack.c.l.b16 %v1466
        %v1551 = vunpack.c.h.b16 %v1466
        %v1552 = vunpack.c.l.b16 %v1467
        %v1553 = vunpack.c.l.b16 %v1468
        %v1554 = vunpack.c.h.b16 %v1468
        %v1555 = vunpack.c.l.b16 %v1469
        %v1556 = vunpack.c.l.b16 %v1470
        %v1557 = vunpack.c.h.b16 %v1470
        %v1558 = vunpack.c.l.b16 %v1471
        %v1559 = vunpack.c.l.b16 %v1472
        %v1560 = vunpack.c.h.b16 %v1472
        %v1561 = vunpack.c.l.b16 %v1473
        %v1562 = vunpack.c.l.b16 %v1474
        %v1563 = vunpack.c.h.b16 %v1474
        %v1564 = vunpack.c.l.b16 %v1475
        %v1565 = vunpack.c.l.b16 %v1476
        %v1566 = vunpack.c.h.b16 %v1476
        %v1567 = vunpack.c.l.b16 %v1477
        %v1568 = vunpack.c.l.b16 %v1478
        %v1569 = vunpack.c.h.b16 %v1478
        %v1570 = vunpack.c.l.b16 %v1479
        %v1571 = vunpack.c.l.b16 %v1480
        %v1572 = vunpack.c.h.b16 %v1480
        %v1573 = vunpack.c.l.b16 %v1481
        %v1574 = vunpack.c.l.b16 %v1482
        %v1575 = vunpack.c.h.b16 %v1482
        %v1576 = vunpack.c.l.b16 %v1483
        %v1577 = vunpack.c.l.b16 %v1484
        %v1578 = vunpack.c.h.b16 %v1484
        %v1579 = vunpack.c.l.b16 %v1485
        %v1580 = vunpack.c.l.b16 %v1486
        %v1581 = vunpack.c.h.b16 %v1486
        %v1582 = vunpack.c.l.b16 %v1487
        %v1583 = vunpack.c.l.b16 %v1488
        %v1584 = vunpack.c.h.b16 %v1488
        %v1585 = vunpack.c.l.b16 %v1489
        %v1586 = vunpack.c.l.b16 %v1490
        %v1587 = vunpack.c.h.b16 %v1490
        %v1588 = vunpack.c.l.b16 %v1491
        %v1589 = vpack.c.b16 %v1544, %v1541
        %v1590 = vpack.c.b16 %v1545, %v1542
        %v1591 = vpack.c.b16 %v1546, %v1543
        %v1592 = vpack.c.b16 %v1550, %v1547
        %v1593 = vpack.c.b16 %v1551, %v1548
        %v1594 = vpack.c.b16 %v1552, %v1549
        %v1595 = vpack.c.b16 %v1556, %v1553
        %v1596 = vpack.c.b16 %v1557, %v1554
        %v1597 = vpack.c.b16 %v1558, %v1555
        %v1598 = vpack.c.b16 %v1562, %v1559
        %v1599 = vpack.c.b16 %v1563, %v1560
        %v1600 = vpack.c.b16 %v1564, %v1561
        %v1601 = vpack.c.b16 %v1568, %v1565
        %v1602 = vpack.c.b16 %v1569, %v1566
        %v1603 = vpack.c.b16 %v1570, %v1567
        %v1604 = vpack.c.b16 %v1574, %v1571
        %v1605 = vpack.c.b16 %v1575, %v1572
        %v1606 = vpack.c.b16 %v1576, %v1573
        %v1607 = vpack.c.b16 %v1580, %v1577
        %v1608 = vpack.c.b16 %v1581, %v1578
        %v1609 = vpack.c.b16 %v1582, %v1579
        %v1610 = vpack.c.b16 %v1586, %v1583
        %v1611 = vpack.c.b16 %v1587, %v1584
        %v1612 = vpack.c.b16 %v1588, %v1585
        %1637 = vmatprep.subr.bf16.mxu0 %v1611
        %1638 = vmatpush1.bf16.msra.mxu0 %v1610
        %1639 = vmatprep.subr.bf16.mxu0 %v1608
        %1640 = vmatpush1.bf16.msra.mxu0 %v1607
        %1641 = vmatprep.subr.bf16.mxu0 %v1605
        %1642 = vmatpush1.bf16.msra.mxu0 %v1604
        %1643 = vmatprep.subr.bf16.mxu0 %v1602
        %1644 = vmatpush1.bf16.msra.mxu0 %v1601
        %1645 = vmatprep.subr.bf16.mxu0 %v1599
        %1646 = vmatpush1.bf16.msra.mxu0 %v1598
        %1647 = vmatprep.subr.bf16.mxu0 %v1596
        %1648 = vmatpush1.bf16.msra.mxu0 %v1595
        %1649 = vmatprep.subr.bf16.mxu0 %v1593
        %1650 = vmatpush1.bf16.msra.mxu0 %v1592
        %1651 = vmatprep.subr.bf16.mxu0 %v1590
        %1652 = vmatpush1.bf16.msra.mxu0 %v1589
        %1653 = vmatprep.subr.bf16.mxu0 0
        %1654 = vmatpush2.bf16.msra.mxu0 0
        %1655 = vmatprep.subr.bf16.mxu0 0
        %1656 = vmatpush2.bf16.msra.mxu0 0
        %1657 = vmatprep.subr.bf16.mxu0 0
        %1658 = vmatpush2.bf16.msra.mxu0 0
        %1659 = vmatprep.subr.bf16.mxu0 0
        %1660 = vmatpush2.bf16.msra.mxu0 0
        %1661 = vmatprep.subr.bf16.mxu0 0
        %1662 = vmatpush2.bf16.msra.mxu0 0
        %1663 = vmatprep.subr.bf16.mxu0 0
        %1664 = vmatpush2.bf16.msra.mxu0 0
        %1665 = vmatprep.subr.bf16.mxu0 0
        %1666 = vmatpush2.bf16.msra.mxu0 0
        %1667 = vmatprep.subr.bf16.mxu0 0
        %1668 = vmatpush2.bf16.msra.mxu0 0
        %1669 = vmatprep.mubr.bf16.mxu0 0
        %1670 = vmatmul.mubr.bf16.gmra.mxu0 %v1459
        %v1671 = vpop.f32.mrf.mxu0
        %v1672 = vadd.f32 %v1497, %v1671
        %v1673 = vpop.f32.mrf.mxu0
        %v1674 = vadd.f32 %v1501, %v1673
        %v1675 = vpop.f32.mrf.mxu0
        %v1676 = vpop.f32.mrf.mxu0
        %1677 = vdwg.mxu0
        %1678 = vmatprep.subr.bf16.mxu0 0
        %1679 = vmatpush1.bf16.msra.mxu0 %v1612
        %1680 = vmatprep.subr.bf16.mxu0 0
        %1681 = vmatpush1.bf16.msra.mxu0 %v1609
        %1682 = vmatprep.subr.bf16.mxu0 0
        %1683 = vmatpush1.bf16.msra.mxu0 %v1606
        %1684 = vmatprep.subr.bf16.mxu0 0
        %1685 = vmatpush1.bf16.msra.mxu0 %v1603
        %1686 = vmatprep.subr.bf16.mxu0 0
        %1687 = vmatpush1.bf16.msra.mxu0 %v1600
        %1688 = vmatprep.subr.bf16.mxu0 0
        %1689 = vmatpush1.bf16.msra.mxu0 %v1597
        %1690 = vmatprep.subr.bf16.mxu0 0
        %1691 = vmatpush1.bf16.msra.mxu0 %v1594
        %1692 = vmatprep.subr.bf16.mxu0 0
        %1693 = vmatpush1.bf16.msra.mxu0 %v1591
        %1694 = vmatprep.subr.bf16.mxu0 0
        %1695 = vmatpush2.bf16.msra.mxu0 0
        %1696 = vmatprep.subr.bf16.mxu0 0
        %1697 = vmatpush2.bf16.msra.mxu0 0
        %1698 = vmatprep.subr.bf16.mxu0 0
        %1699 = vmatpush2.bf16.msra.mxu0 0
        %1700 = vmatprep.subr.bf16.mxu0 0
        %1701 = vmatpush2.bf16.msra.mxu0 0
        %1702 = vmatprep.subr.bf16.mxu0 0
        %1703 = vmatpush2.bf16.msra.mxu0 0
        %1704 = vmatprep.subr.bf16.mxu0 0
        %1705 = vmatpush2.bf16.msra.mxu0 0
        %1706 = vmatprep.subr.bf16.mxu0 0
        %1707 = vmatpush2.bf16.msra.mxu0 0
        %1708 = vmatprep.subr.bf16.mxu0 0
        %1709 = vmatpush2.bf16.msra.mxu0 0
        %1710 = vmatprep.mubr.bf16.mxu0 0
        %1711 = vmatmul.mubr.bf16.gmra.mxu0 %v1459
        %v1712 = vpop.f32.mrf.mxu0
        %v1713 = vadd.f32 %v1505, %v1712
        %v1714 = vpop.f32.mrf.mxu0
        %v1715 = vpop.f32.mrf.mxu0
        %v1716 = vpop.f32.mrf.mxu0
        %1717 = vdwg.mxu0
        %v1718 = vlaneseq
        %v1719 = vand.u32 %v1718, 127
        %vm1720 = vcmp.lt.s32.totalorder %v1719, 5
        %v1721 = vpack.c.bf16 %v1672, %v1672
        %v1722 = vpack.c.bf16 %v1674, %v1674
        %v1723 = vpack.c.bf16 %v1713, %v1713
        %vm1724 = vcmask 261120
        %v1726 = vsel %vm1724, %v1721, 0
        %v1729 = vsel %vm1724, %v1722, 0
        %1731 = vmatprep.subr.bf16.mxu0 0
        %1732 = vmatpush1.bf16.xpose.msra.mxu0 0
        %1733 = vmatprep.subr.bf16.mxu0 0
        %1734 = vmatpush1.bf16.xpose.msra.mxu0 0
        %1735 = vmatprep.subr.bf16.mxu0 0
        %1736 = vmatpush1.bf16.xpose.msra.mxu0 0
        %1737 = vmatprep.subr.bf16.mxu0 0
        %1738 = vmatpush1.bf16.xpose.msra.mxu0 0
        %1739 = vmatprep.subr.bf16.mxu0 0
        %1740 = vmatpush1.bf16.xpose.msra.mxu0 0
        %1741 = vmatprep.subr.bf16.mxu0 0
        %1742 = vmatpush1.bf16.xpose.msra.mxu0 0
        %1743 = vmatprep.subr.bf16.mxu0 0
        %1744 = vmatpush1.bf16.xpose.msra.mxu0 0
        %1745 = vmatprep.subr.bf16.mxu0 0
        %1746 = vmatpush1.bf16.xpose.msra.mxu0 %v1729
        %1747 = vmatprep.subr.bf16.mxu0 0
        %1748 = vmatpush2.bf16.xpose.msra.mxu0 0
        %1749 = vmatprep.subr.bf16.mxu0 0
        %1750 = vmatpush2.bf16.xpose.msra.mxu0 0
        %1751 = vmatprep.subr.bf16.mxu0 0
        %1752 = vmatpush2.bf16.xpose.msra.mxu0 0
        %1753 = vmatprep.subr.bf16.mxu0 0
        %1754 = vmatpush2.bf16.xpose.msra.mxu0 0
        %1755 = vmatprep.subr.bf16.mxu0 0
        %1756 = vmatpush2.bf16.xpose.msra.mxu0 0
        %1757 = vmatprep.subr.bf16.mxu0 0
        %1758 = vmatpush2.bf16.xpose.msra.mxu0 0
        %1759 = vmatprep.subr.bf16.mxu0 0
        %1760 = vmatpush2.bf16.xpose.msra.mxu0 0
        %1761 = vmatprep.subr.bf16.mxu0 0
        %1762 = vmatpush2.bf16.xpose.msra.mxu0 0
        %1763 = vmatprep.mubr.bf16.mxu0 0
        %1764 = vmatmul.mubr.bf16.gmra.mxu0 %v1726
        %v1765 = vpop.f32.mrf.mxu0
        %v1766 = vadd.f32 0.0, %v1765
        %v1767 = vpop.f32.mrf.mxu0
        %v1768 = vpop.f32.mrf.mxu0
        %v1769 = vpop.f32.mrf.mxu0
        %1770 = vdwg.mxu0
        %v1771 = vsel %vm1720, 1, 0
        %vm1772 = vcmp.eq.s32.totalorder %v1771, 1
        %v1773 = vsel %vm1772, %v1766, -1e+30
        %vm1774 = vcmask 64512
        %v1775 = vsel %vm1774, %v1773, -inf
        %1776 = vmax.xlane.f32.xlu0 %v1775
        %v1777 = vpop.xlane.xlu0 %1776
        %v1778 = vsub.f32 %v1773, %v1777
        %v1779 = vmul.f32 %v1778, 1.442695
        %v1780 = vpow.pop %v1779
        %v1781 = vsel %vm1774, %v1780, 0.0
        %1782 = vadd.xlane.f32.xlu0 %v1781
        %v1783 = vpop.xlane.xlu0 %1782
        %v1784 = vrcp.pop %v1783
        %v1785 = vmul.f32 %v1780, %v1784
        %v1786 = vpack.c.bf16 %v1785, %v1785
        %v1788 = vsel %vm1774, %v1786, 0
        %vm1790 = vcmask 1043456
        %v1792 = vsel %vm1790, %v1723, 0
        %1794 = vmatprep.subr.bf16.mxu0 0
        %1795 = vmatpush1.bf16.msra.mxu0 0
        %1796 = vmatprep.subr.bf16.mxu0 0
        %1797 = vmatpush1.bf16.msra.mxu0 0
        %1798 = vmatprep.subr.bf16.mxu0 0
        %1799 = vmatpush1.bf16.msra.mxu0 0
        %1800 = vmatprep.subr.bf16.mxu0 0
        %1801 = vmatpush1.bf16.msra.mxu0 0
        %1802 = vmatprep.subr.bf16.mxu0 0
        %1803 = vmatpush1.bf16.msra.mxu0 0
        %1804 = vmatprep.subr.bf16.mxu0 0
        %1805 = vmatpush1.bf16.msra.mxu0 0
        %1806 = vmatprep.subr.bf16.mxu0 0
        %1807 = vmatpush1.bf16.msra.mxu0 0
        %1808 = vmatprep.subr.bf16.mxu0 0
        %1809 = vmatpush1.bf16.msra.mxu0 %v1792
        %1810 = vmatprep.subr.bf16.mxu0 0
        %1811 = vmatpush2.bf16.msra.mxu0 0
        %1812 = vmatprep.subr.bf16.mxu0 0
        %1813 = vmatpush2.bf16.msra.mxu0 0
        %1814 = vmatprep.subr.bf16.mxu0 0
        %1815 = vmatpush2.bf16.msra.mxu0 0
        %1816 = vmatprep.subr.bf16.mxu0 0
        %1817 = vmatpush2.bf16.msra.mxu0 0
        %1818 = vmatprep.subr.bf16.mxu0 0
        %1819 = vmatpush2.bf16.msra.mxu0 0
        %1820 = vmatprep.subr.bf16.mxu0 0
        %1821 = vmatpush2.bf16.msra.mxu0 0
        %1822 = vmatprep.subr.bf16.mxu0 0
        %1823 = vmatpush2.bf16.msra.mxu0 0
        %1824 = vmatprep.subr.bf16.mxu0 0
        %1825 = vmatpush2.bf16.msra.mxu0 0
        %1826 = vmatprep.mubr.bf16.mxu0 0
        %1827 = vmatmul.mubr.bf16.gmra.mxu0 %v1788
        %v1828 = vpop.f32.mrf.mxu0
        %v1829 = vadd.f32 0.0, %v1828
        %v1830 = vpop.f32.mrf.mxu0
        %v1831 = vpop.f32.mrf.mxu0
        %v1832 = vpop.f32.mrf.mxu0
        %1833 = vdwg.mxu0
        %1834 = vst.msk [vmem:[#allocation3] sm:$0xff] %vm1724, %v1829
        %1836 = vrot.lane.b32.xlu0 %v1721, 96
        %v1837 = vpop.permute.xlu0 %1836
        %1839 = vrot.lane.b32.xlu0 %v1722, 96
        %v1840 = vpop.permute.xlu0 %1839
        %v1842 = vsel %vm1724, %v1837, 0
        %v1845 = vsel %vm1724, %v1840, 0
        %1847 = vmatprep.subr.bf16.mxu0 0
        %1848 = vmatpush1.bf16.xpose.msra.mxu0 0
        %1849 = vmatprep.subr.bf16.mxu0 0
        %1850 = vmatpush1.bf16.xpose.msra.mxu0 0
        %1851 = vmatprep.subr.bf16.mxu0 0
        %1852 = vmatpush1.bf16.xpose.msra.mxu0 0
        %1853 = vmatprep.subr.bf16.mxu0 0
        %1854 = vmatpush1.bf16.xpose.msra.mxu0 0
        %1855 = vmatprep.subr.bf16.mxu0 0
        %1856 = vmatpush1.bf16.xpose.msra.mxu0 0
        %1857 = vmatprep.subr.bf16.mxu0 0
        %1858 = vmatpush1.bf16.xpose.msra.mxu0 0
        %1859 = vmatprep.subr.bf16.mxu0 0
        %1860 = vmatpush1.bf16.xpose.msra.mxu0 0
        %1861 = vmatprep.subr.bf16.mxu0 0
        %1862 = vmatpush1.bf16.xpose.msra.mxu0 %v1845
        %1863 = vmatprep.subr.bf16.mxu0 0
        %1864 = vmatpush2.bf16.xpose.msra.mxu0 0
        %1865 = vmatprep.subr.bf16.mxu0 0
        %1866 = vmatpush2.bf16.xpose.msra.mxu0 0
        %1867 = vmatprep.subr.bf16.mxu0 0
        %1868 = vmatpush2.bf16.xpose.msra.mxu0 0
        %1869 = vmatprep.subr.bf16.mxu0 0
        %1870 = vmatpush2.bf16.xpose.msra.mxu0 0
        %1871 = vmatprep.subr.bf16.mxu0 0
        %1872 = vmatpush2.bf16.xpose.msra.mxu0 0
        %1873 = vmatprep.subr.bf16.mxu0 0
        %1874 = vmatpush2.bf16.xpose.msra.mxu0 0
        %1875 = vmatprep.subr.bf16.mxu0 0
        %1876 = vmatpush2.bf16.xpose.msra.mxu0 0
        %1877 = vmatprep.subr.bf16.mxu0 0
        %1878 = vmatpush2.bf16.xpose.msra.mxu0 0
        %1879 = vmatprep.mubr.bf16.mxu0 0
        %1880 = vmatmul.mubr.bf16.gmra.mxu0 %v1842
        %v1881 = vpop.f32.mrf.mxu0
        %v1882 = vadd.f32 0.0, %v1881
        %v1883 = vpop.f32.mrf.mxu0
        %v1884 = vpop.f32.mrf.mxu0
        %v1885 = vpop.f32.mrf.mxu0
        %1886 = vdwg.mxu0
        %v1887 = vsel %vm1772, %v1882, -1e+30
        %v1888 = vsel %vm1774, %v1887, -inf
        %1889 = vmax.xlane.f32.xlu0 %v1888
        %v1890 = vpop.xlane.xlu0 %1889
        %v1891 = vsub.f32 %v1887, %v1890
        %v1892 = vmul.f32 %v1891, 1.442695
        %v1893 = vpow.pop %v1892
        %v1894 = vsel %vm1774, %v1893, 0.0
        %1895 = vadd.xlane.f32.xlu0 %v1894
        %v1896 = vpop.xlane.xlu0 %1895
        %v1897 = vrcp.pop %v1896
        %v1898 = vmul.f32 %v1893, %v1897
        %v1899 = vpack.c.bf16 %v1898, %v1898
        %1901 = vrot.lane.b32.xlu0 %v1723, 96
        %v1902 = vpop.permute.xlu0 %1901
        %v1904 = vsel %vm1774, %v1899, 0
        %v1907 = vsel %vm1790, %v1902, 0
        %1909 = vmatprep.subr.bf16.mxu0 0
        %1910 = vmatpush1.bf16.msra.mxu0 0
        %1911 = vmatprep.subr.bf16.mxu0 0
        %1912 = vmatpush1.bf16.msra.mxu0 0
        %1913 = vmatprep.subr.bf16.mxu0 0
        %1914 = vmatpush1.bf16.msra.mxu0 0
        %1915 = vmatprep.subr.bf16.mxu0 0
        %1916 = vmatpush1.bf16.msra.mxu0 0
        %1917 = vmatprep.subr.bf16.mxu0 0
        %1918 = vmatpush1.bf16.msra.mxu0 0
        %1919 = vmatprep.subr.bf16.mxu0 0
        %1920 = vmatpush1.bf16.msra.mxu0 0
        %1921 = vmatprep.subr.bf16.mxu0 0
        %1922 = vmatpush1.bf16.msra.mxu0 0
        %1923 = vmatprep.subr.bf16.mxu0 0
        %1924 = vmatpush1.bf16.msra.mxu0 %v1907
        %1925 = vmatprep.subr.bf16.mxu0 0
        %1926 = vmatpush2.bf16.msra.mxu0 0
        %1927 = vmatprep.subr.bf16.mxu0 0
        %1928 = vmatpush2.bf16.msra.mxu0 0
        %1929 = vmatprep.subr.bf16.mxu0 0
        %1930 = vmatpush2.bf16.msra.mxu0 0
        %1931 = vmatprep.subr.bf16.mxu0 0
        %1932 = vmatpush2.bf16.msra.mxu0 0
        %1933 = vmatprep.subr.bf16.mxu0 0
        %1934 = vmatpush2.bf16.msra.mxu0 0
        %1935 = vmatprep.subr.bf16.mxu0 0
        %1936 = vmatpush2.bf16.msra.mxu0 0
        %1937 = vmatprep.subr.bf16.mxu0 0
        %1938 = vmatpush2.bf16.msra.mxu0 0
        %1939 = vmatprep.subr.bf16.mxu0 0
        %1940 = vmatpush2.bf16.msra.mxu0 0
        %1941 = vmatprep.mubr.bf16.mxu0 0
        %1942 = vmatmul.mubr.bf16.gmra.mxu0 %v1904
        %v1943 = vpop.f32.mrf.mxu0
        %v1944 = vadd.f32 0.0, %v1943
        %v1945 = vpop.f32.mrf.mxu0
        %v1946 = vpop.f32.mrf.mxu0
        %v1947 = vpop.f32.mrf.mxu0
        %1948 = vdwg.mxu0
        %1950 = vrot.lane.b32.xlu0 %v1944, 32
        %v1951 = vpop.permute.xlu0 %1950
        %vm1953 = vcmask 523520
        %1954 = vst.msk [vmem:[#allocation3] sm:$0xff] %vm1953, %v1951
        %1955 = vrot.lane.b32.xlu0 %v1721, 64
        %v1956 = vpop.permute.xlu0 %1955
        %1957 = vrot.lane.b32.xlu0 %v1722, 64
        %v1958 = vpop.permute.xlu0 %1957
        %v1960 = vsel %vm1724, %v1956, 0
        %v1963 = vsel %vm1724, %v1958, 0
        %1965 = vmatprep.subr.bf16.mxu0 0
        %1966 = vmatpush1.bf16.xpose.msra.mxu0 0
        %1967 = vmatprep.subr.bf16.mxu0 0
        %1968 = vmatpush1.bf16.xpose.msra.mxu0 0
        %1969 = vmatprep.subr.bf16.mxu0 0
        %1970 = vmatpush1.bf16.xpose.msra.mxu0 0
        %1971 = vmatprep.subr.bf16.mxu0 0
        %1972 = vmatpush1.bf16.xpose.msra.mxu0 0
        %1973 = vmatprep.subr.bf16.mxu0 0
        %1974 = vmatpush1.bf16.xpose.msra.mxu0 0
        %1975 = vmatprep.subr.bf16.mxu0 0
        %1976 = vmatpush1.bf16.xpose.msra.mxu0 0
        %1977 = vmatprep.subr.bf16.mxu0 0
        %1978 = vmatpush1.bf16.xpose.msra.mxu0 0
        %1979 = vmatprep.subr.bf16.mxu0 0
        %1980 = vmatpush1.bf16.xpose.msra.mxu0 %v1963
        %1981 = vmatprep.subr.bf16.mxu0 0
        %1982 = vmatpush2.bf16.xpose.msra.mxu0 0
        %1983 = vmatprep.subr.bf16.mxu0 0
        %1984 = vmatpush2.bf16.xpose.msra.mxu0 0
        %1985 = vmatprep.subr.bf16.mxu0 0
        %1986 = vmatpush2.bf16.xpose.msra.mxu0 0
        %1987 = vmatprep.subr.bf16.mxu0 0
        %1988 = vmatpush2.bf16.xpose.msra.mxu0 0
        %1989 = vmatprep.subr.bf16.mxu0 0
        %1990 = vmatpush2.bf16.xpose.msra.mxu0 0
        %1991 = vmatprep.subr.bf16.mxu0 0
        %1992 = vmatpush2.bf16.xpose.msra.mxu0 0
        %1993 = vmatprep.subr.bf16.mxu0 0
        %1994 = vmatpush2.bf16.xpose.msra.mxu0 0
        %1995 = vmatprep.subr.bf16.mxu0 0
        %1996 = vmatpush2.bf16.xpose.msra.mxu0 0
        %1997 = vmatprep.mubr.bf16.mxu0 0
        %1998 = vmatmul.mubr.bf16.gmra.mxu0 %v1960
        %v1999 = vpop.f32.mrf.mxu0
        %v2000 = vadd.f32 0.0, %v1999
        %v2001 = vpop.f32.mrf.mxu0
        %v2002 = vpop.f32.mrf.mxu0
        %v2003 = vpop.f32.mrf.mxu0
        %2004 = vdwg.mxu0
        %v2005 = vsel %vm1772, %v2000, -1e+30
        %v2006 = vsel %vm1774, %v2005, -inf
        %2007 = vmax.xlane.f32.xlu0 %v2006
        %v2008 = vpop.xlane.xlu0 %2007
        %v2009 = vsub.f32 %v2005, %v2008
        %v2010 = vmul.f32 %v2009, 1.442695
        %v2011 = vpow.pop %v2010
        %v2012 = vsel %vm1774, %v2011, 0.0
        %2013 = vadd.xlane.f32.xlu0 %v2012
        %v2014 = vpop.xlane.xlu0 %2013
        %v2015 = vrcp.pop %v2014
        %v2016 = vmul.f32 %v2011, %v2015
        %v2017 = vpack.c.bf16 %v2016, %v2016
        %2018 = vrot.lane.b32.xlu0 %v1723, 64
        %v2019 = vpop.permute.xlu0 %2018
        %v2021 = vsel %vm1774, %v2017, 0
        %v2024 = vsel %vm1790, %v2019, 0
        %2026 = vmatprep.subr.bf16.mxu0 0
        %2027 = vmatpush1.bf16.msra.mxu0 0
        %2028 = vmatprep.subr.bf16.mxu0 0
        %2029 = vmatpush1.bf16.msra.mxu0 0
        %2030 = vmatprep.subr.bf16.mxu0 0
        %2031 = vmatpush1.bf16.msra.mxu0 0
        %2032 = vmatprep.subr.bf16.mxu0 0
        %2033 = vmatpush1.bf16.msra.mxu0 0
        %2034 = vmatprep.subr.bf16.mxu0 0
        %2035 = vmatpush1.bf16.msra.mxu0 0
        %2036 = vmatprep.subr.bf16.mxu0 0
        %2037 = vmatpush1.bf16.msra.mxu0 0
        %2038 = vmatprep.subr.bf16.mxu0 0
        %2039 = vmatpush1.bf16.msra.mxu0 0
        %2040 = vmatprep.subr.bf16.mxu0 0
        %2041 = vmatpush1.bf16.msra.mxu0 %v2024
        %2042 = vmatprep.subr.bf16.mxu0 0
        %2043 = vmatpush2.bf16.msra.mxu0 0
        %2044 = vmatprep.subr.bf16.mxu0 0
        %2045 = vmatpush2.bf16.msra.mxu0 0
        %2046 = vmatprep.subr.bf16.mxu0 0
        %2047 = vmatpush2.bf16.msra.mxu0 0
        %2048 = vmatprep.subr.bf16.mxu0 0
        %2049 = vmatpush2.bf16.msra.mxu0 0
        %2050 = vmatprep.subr.bf16.mxu0 0
        %2051 = vmatpush2.bf16.msra.mxu0 0
        %2052 = vmatprep.subr.bf16.mxu0 0
        %2053 = vmatpush2.bf16.msra.mxu0 0
        %2054 = vmatprep.subr.bf16.mxu0 0
        %2055 = vmatpush2.bf16.msra.mxu0 0
        %2056 = vmatprep.subr.bf16.mxu0 0
        %2057 = vmatpush2.bf16.msra.mxu0 0
        %2058 = vmatprep.mubr.bf16.mxu0 0
        %2059 = vmatmul.mubr.bf16.gmra.mxu0 %v2021
        %v2060 = vpop.f32.mrf.mxu0
        %v2061 = vadd.f32 0.0, %v2060
        %v2062 = vpop.f32.mrf.mxu0
        %v2063 = vpop.f32.mrf.mxu0
        %v2064 = vpop.f32.mrf.mxu0
        %2065 = vdwg.mxu0
        %2067 = vrot.lane.b32.xlu0 %v2061, 64
        %v2068 = vpop.permute.xlu0 %2067
        %vm2070 = vcmask 785920
        %2071 = vst.msk [vmem:[#allocation3] sm:$0xff] %vm2070, %v2068
        %2072 = vrot.lane.b32.xlu0 %v1721, 32
        %v2073 = vpop.permute.xlu0 %2072
        %2074 = vrot.lane.b32.xlu0 %v1722, 32
        %v2075 = vpop.permute.xlu0 %2074
        %v2077 = vsel %vm1724, %v2073, 0
        %v2080 = vsel %vm1724, %v2075, 0
        %2082 = vmatprep.subr.bf16.mxu0 0
        %2083 = vmatpush1.bf16.xpose.msra.mxu0 0
        %2084 = vmatprep.subr.bf16.mxu0 0
        %2085 = vmatpush1.bf16.xpose.msra.mxu0 0
        %2086 = vmatprep.subr.bf16.mxu0 0
        %2087 = vmatpush1.bf16.xpose.msra.mxu0 0
        %2088 = vmatprep.subr.bf16.mxu0 0
        %2089 = vmatpush1.bf16.xpose.msra.mxu0 0
        %2090 = vmatprep.subr.bf16.mxu0 0
        %2091 = vmatpush1.bf16.xpose.msra.mxu0 0
        %2092 = vmatprep.subr.bf16.mxu0 0
        %2093 = vmatpush1.bf16.xpose.msra.mxu0 0
        %2094 = vmatprep.subr.bf16.mxu0 0
        %2095 = vmatpush1.bf16.xpose.msra.mxu0 0
        %2096 = vmatprep.subr.bf16.mxu0 0
        %2097 = vmatpush1.bf16.xpose.msra.mxu0 %v2080
        %2098 = vmatprep.subr.bf16.mxu0 0
        %2099 = vmatpush2.bf16.xpose.msra.mxu0 0
        %2100 = vmatprep.subr.bf16.mxu0 0
        %2101 = vmatpush2.bf16.xpose.msra.mxu0 0
        %2102 = vmatprep.subr.bf16.mxu0 0
        %2103 = vmatpush2.bf16.xpose.msra.mxu0 0
        %2104 = vmatprep.subr.bf16.mxu0 0
        %2105 = vmatpush2.bf16.xpose.msra.mxu0 0
        %2106 = vmatprep.subr.bf16.mxu0 0
        %2107 = vmatpush2.bf16.xpose.msra.mxu0 0
        %2108 = vmatprep.subr.bf16.mxu0 0
        %2109 = vmatpush2.bf16.xpose.msra.mxu0 0
        %2110 = vmatprep.subr.bf16.mxu0 0
        %2111 = vmatpush2.bf16.xpose.msra.mxu0 0
        %2112 = vmatprep.subr.bf16.mxu0 0
        %2113 = vmatpush2.bf16.xpose.msra.mxu0 0
        %2114 = vmatprep.mubr.bf16.mxu0 0
        %2115 = vmatmul.mubr.bf16.gmra.mxu0 %v2077
        %v2116 = vpop.f32.mrf.mxu0
        %v2117 = vadd.f32 0.0, %v2116
        %v2118 = vpop.f32.mrf.mxu0
        %v2119 = vpop.f32.mrf.mxu0
        %v2120 = vpop.f32.mrf.mxu0
        %2121 = vdwg.mxu0
        %v2122 = vsel %vm1772, %v2117, -1e+30
        %v2123 = vsel %vm1774, %v2122, -inf
        %2124 = vmax.xlane.f32.xlu0 %v2123
        %v2125 = vpop.xlane.xlu0 %2124
        %v2126 = vsub.f32 %v2122, %v2125
        %v2127 = vmul.f32 %v2126, 1.442695
        %v2128 = vpow.pop %v2127
        %v2129 = vsel %vm1774, %v2128, 0.0
        %2130 = vadd.xlane.f32.xlu0 %v2129
        %v2131 = vpop.xlane.xlu0 %2130
        %v2132 = vrcp.pop %v2131
        %v2133 = vmul.f32 %v2128, %v2132
        %v2134 = vpack.c.bf16 %v2133, %v2133
        %2135 = vrot.lane.b32.xlu0 %v1723, 32
        %v2136 = vpop.permute.xlu0 %2135
        %v2138 = vsel %vm1774, %v2134, 0
        %v2141 = vsel %vm1790, %v2136, 0
        %2143 = vmatprep.subr.bf16.mxu0 0
        %2144 = vmatpush1.bf16.msra.mxu0 0
        %2145 = vmatprep.subr.bf16.mxu0 0
        %2146 = vmatpush1.bf16.msra.mxu0 0
        %2147 = vmatprep.subr.bf16.mxu0 0
        %2148 = vmatpush1.bf16.msra.mxu0 0
        %2149 = vmatprep.subr.bf16.mxu0 0
        %2150 = vmatpush1.bf16.msra.mxu0 0
        %2151 = vmatprep.subr.bf16.mxu0 0
        %2152 = vmatpush1.bf16.msra.mxu0 0
        %2153 = vmatprep.subr.bf16.mxu0 0
        %2154 = vmatpush1.bf16.msra.mxu0 0
        %2155 = vmatprep.subr.bf16.mxu0 0
        %2156 = vmatpush1.bf16.msra.mxu0 0
        %2157 = vmatprep.subr.bf16.mxu0 0
        %2158 = vmatpush1.bf16.msra.mxu0 %v2141
        %2159 = vmatprep.subr.bf16.mxu0 0
        %2160 = vmatpush2.bf16.msra.mxu0 0
        %2161 = vmatprep.subr.bf16.mxu0 0
        %2162 = vmatpush2.bf16.msra.mxu0 0
        %2163 = vmatprep.subr.bf16.mxu0 0
        %2164 = vmatpush2.bf16.msra.mxu0 0
        %2165 = vmatprep.subr.bf16.mxu0 0
        %2166 = vmatpush2.bf16.msra.mxu0 0
        %2167 = vmatprep.subr.bf16.mxu0 0
        %2168 = vmatpush2.bf16.msra.mxu0 0
        %2169 = vmatprep.subr.bf16.mxu0 0
        %2170 = vmatpush2.bf16.msra.mxu0 0
        %2171 = vmatprep.subr.bf16.mxu0 0
        %2172 = vmatpush2.bf16.msra.mxu0 0
        %2173 = vmatprep.subr.bf16.mxu0 0
        %2174 = vmatpush2.bf16.msra.mxu0 0
        %2175 = vmatprep.mubr.bf16.mxu0 0
        %2176 = vmatmul.mubr.bf16.gmra.mxu0 %v2138
        %v2177 = vpop.f32.mrf.mxu0
        %v2178 = vadd.f32 0.0, %v2177
        %v2179 = vpop.f32.mrf.mxu0
        %v2180 = vpop.f32.mrf.mxu0
        %v2181 = vpop.f32.mrf.mxu0
        %2182 = vdwg.mxu0
        %2184 = vrot.lane.b32.xlu0 %v2178, 96
        %v2185 = vpop.permute.xlu0 %2184
        %vm2187 = vcmask 1048320
        %2188 = vst.msk [vmem:[#allocation3] sm:$0xff] %vm2187, %v2185
        %v2189 = vld [vmem:[#allocation3] sm:$0xff]
        %v2190 = vpack.c.bf16 %v2189, %v2189
        %v2191 = vld [vmem:[%s1035] sm:$0xf]
        %v2192 = vld [vmem:[%s1035 + $0x4] sm:$0xf]
        %v2193 = vld [vmem:[%s1035 + $0x8] sm:$0xf]
        %v2194 = vld [vmem:[%s1035 + $0xc] sm:$0xf]
        %v2195 = vld [vmem:[%s1035 + $0x10] sm:$0xf]
        %v2196 = vld [vmem:[%s1035 + $0x14] sm:$0xf]
        %v2197 = vld [vmem:[%s1035 + $0x18] sm:$0xf]
        %v2198 = vld [vmem:[%s1035 + $0x1c] sm:$0xf]
        %v2199 = vld [vmem:[%s1035 + $0x20] sm:$0xf]
        %v2200 = vld [vmem:[%s1035 + $0x24] sm:$0xf]
        %v2201 = vld [vmem:[%s1035 + $0x28] sm:$0xf]
        %v2202 = vld [vmem:[%s1035 + $0x2c] sm:$0xf]
        %v2203 = vld [vmem:[%s1035 + $0x30] sm:$0xf]
        %v2204 = vld [vmem:[%s1035 + $0x34] sm:$0xf]
        %v2205 = vld [vmem:[%s1035 + $0x38] sm:$0xf]
        %v2206 = vld [vmem:[%s1035 + $0x3c] sm:$0xf]
        %v2207 = vld [vmem:[%s1043] sm:$0x1]
        %v2209 = vlaneseq
        %v2210 = vshrl.u32 %v2209, 7
        %v2211 = vsub.s32 0, %v2210
        %v2212 = vrot.slane %v2207, %v2211
        %v2230 = vunpack.c.l.b16 %v2191
        %v2231 = vunpack.c.l.b16 %v2192
        %v2232 = vunpack.c.l.b16 %v2193
        %v2233 = vunpack.c.l.b16 %v2194
        %v2234 = vunpack.c.l.b16 %v2195
        %v2235 = vunpack.c.l.b16 %v2196
        %v2236 = vunpack.c.l.b16 %v2197
        %v2237 = vunpack.c.l.b16 %v2198
        %v2238 = vunpack.c.l.b16 %v2199
        %v2239 = vunpack.c.l.b16 %v2200
        %v2240 = vunpack.c.l.b16 %v2201
        %v2241 = vunpack.c.l.b16 %v2202
        %v2242 = vunpack.c.l.b16 %v2203
        %v2243 = vunpack.c.l.b16 %v2204
        %v2244 = vunpack.c.l.b16 %v2205
        %v2245 = vunpack.c.l.b16 %v2206
        %v2246 = vpack.c.b16 %v2231, %v2230
        %v2247 = vpack.c.b16 %v2233, %v2232
        %v2248 = vpack.c.b16 %v2235, %v2234
        %v2249 = vpack.c.b16 %v2237, %v2236
        %v2250 = vpack.c.b16 %v2239, %v2238
        %v2251 = vpack.c.b16 %v2241, %v2240
        %v2252 = vpack.c.b16 %v2243, %v2242
        %v2253 = vpack.c.b16 %v2245, %v2244
        %2262 = vmatprep.subr.bf16.mxu0 0
        %2263 = vmatpush1.bf16.msra.mxu0 %v2253
        %2264 = vmatprep.subr.bf16.mxu0 0
        %2265 = vmatpush1.bf16.msra.mxu0 %v2252
        %2266 = vmatprep.subr.bf16.mxu0 0
        %2267 = vmatpush1.bf16.msra.mxu0 %v2251
        %2268 = vmatprep.subr.bf16.mxu0 0
        %2269 = vmatpush1.bf16.msra.mxu0 %v2250
        %2270 = vmatprep.subr.bf16.mxu0 0
        %2271 = vmatpush1.bf16.msra.mxu0 %v2249
        %2272 = vmatprep.subr.bf16.mxu0 0
        %2273 = vmatpush1.bf16.msra.mxu0 %v2248
        %2274 = vmatprep.subr.bf16.mxu0 0
        %2275 = vmatpush1.bf16.msra.mxu0 %v2247
        %2276 = vmatprep.subr.bf16.mxu0 0
        %2277 = vmatpush1.bf16.msra.mxu0 %v2246
        %2278 = vmatprep.subr.bf16.mxu0 0
        %2279 = vmatpush2.bf16.msra.mxu0 0
        %2280 = vmatprep.subr.bf16.mxu0 0
        %2281 = vmatpush2.bf16.msra.mxu0 0
        %2282 = vmatprep.subr.bf16.mxu0 0
        %2283 = vmatpush2.bf16.msra.mxu0 0
        %2284 = vmatprep.subr.bf16.mxu0 0
        %2285 = vmatpush2.bf16.msra.mxu0 0
        %2286 = vmatprep.subr.bf16.mxu0 0
        %2287 = vmatpush2.bf16.msra.mxu0 0
        %2288 = vmatprep.subr.bf16.mxu0 0
        %2289 = vmatpush2.bf16.msra.mxu0 0
        %2290 = vmatprep.subr.bf16.mxu0 0
        %2291 = vmatpush2.bf16.msra.mxu0 0
        %2292 = vmatprep.subr.bf16.mxu0 0
        %2293 = vmatpush2.bf16.msra.mxu0 0
        %2294 = vmatprep.mubr.bf16.mxu0 0
        %2295 = vmatmul.mubr.bf16.gmra.mxu0 %v2190
        %v2296 = vpop.f32.mrf.mxu0
        %v2297 = vadd.f32 %v2212, %v2296
        %v2298 = vpop.f32.mrf.mxu0
        %v2299 = vpop.f32.mrf.mxu0
        %v2300 = vpop.f32.mrf.mxu0
        %2301 = vdwg.mxu0
        %v2302 = vadd.f32 %v1430, %v2297
        %v2303 = vld [vmem:[%s1051] sm:$0x1]
        %v2304 = vld [vmem:[%s1059] sm:$0x1]
        %2305 = vadd.xlane.f32.xlu0 %v2302
        %v2306 = vpop.xlane.xlu0 %2305
        %v2307 = vmul.f32 %v2306, %v1435
        %v2308 = vsub.f32 %v2302, %v2307
        %v2309 = vmul.f32 %v2308, %v2308
        %2310 = vadd.xlane.f32.xlu0 %v2309
        %v2311 = vpop.xlane.xlu0 %2310
        %v2312 = vmul.f32 %v2311, %v1435
        %v2313 = vadd.f32 %v2312, 1e-05
        %v2314 = vrsqrt.pop %v2313
        %v2315 = vmul.f32 %v2308, %v2314
        %v2317 = vlaneseq
        %v2318 = vshrl.u32 %v2317, 7
        %v2319 = vsub.s32 0, %v2318
        %v2320 = vrot.slane %v2303, %v2319
        %v2322 = vmul.f32 %v2315, %v2320
        %v2324 = vlaneseq
        %v2325 = vshrl.u32 %v2324, 7
        %v2326 = vsub.s32 0, %v2325
        %v2327 = vrot.slane %v2304, %v2326
        %v2329 = vadd.f32 %v2322, %v2327
        %v2330 = vpack.c.bf16 %v2329, %v2329
        %v2331 = vld [vmem:[%s1239] sm:$0xff]
        %v2332 = vld [vmem:[%s1239 + $0x8] sm:$0xff]
        %v2333 = vld [vmem:[%s1239 + $0x10] sm:$0xff]
        %v2334 = vld [vmem:[%s1239 + $0x18] sm:$0xff]
        %v2335 = vld [vmem:[%s1239 + $0x20] sm:$0xff]
        %v2336 = vld [vmem:[%s1239 + $0x28] sm:$0xff]
        %v2337 = vld [vmem:[%s1239 + $0x30] sm:$0xff]
        %v2338 = vld [vmem:[%s1239 + $0x38] sm:$0xff]
        %v2339 = vld [vmem:[%s1239 + $0x40] sm:$0xff]
        %v2340 = vld [vmem:[%s1239 + $0x48] sm:$0xff]
        %v2341 = vld [vmem:[%s1239 + $0x50] sm:$0xff]
        %v2342 = vld [vmem:[%s1239 + $0x58] sm:$0xff]
        %v2343 = vld [vmem:[%s1239 + $0x60] sm:$0xff]
        %v2344 = vld [vmem:[%s1239 + $0x68] sm:$0xff]
        %v2345 = vld [vmem:[%s1239 + $0x70] sm:$0xff]
        %v2346 = vld [vmem:[%s1239 + $0x78] sm:$0xff]
        %v2347 = vld [vmem:[%s1239 + $0x80] sm:$0xff]
        %v2348 = vld [vmem:[%s1239 + $0x88] sm:$0xff]
        %v2349 = vld [vmem:[%s1239 + $0x90] sm:$0xff]
        %v2350 = vld [vmem:[%s1239 + $0x98] sm:$0xff]
        %v2351 = vld [vmem:[%s1239 + $0xa0] sm:$0xff]
        %v2352 = vld [vmem:[%s1239 + $0xa8] sm:$0xff]
        %v2353 = vld [vmem:[%s1239 + $0xb0] sm:$0xff]
        %v2354 = vld [vmem:[%s1239 + $0xb8] sm:$0xff]
        %v2355 = vld [vmem:[%s1239 + $0xc0] sm:$0xff]
        %v2356 = vld [vmem:[%s1239 + $0xc8] sm:$0xff]
        %v2357 = vld [vmem:[%s1239 + $0xd0] sm:$0xff]
        %v2358 = vld [vmem:[%s1239 + $0xd8] sm:$0xff]
        %v2359 = vld [vmem:[%s1239 + $0xe0] sm:$0xff]
        %v2360 = vld [vmem:[%s1239 + $0xe8] sm:$0xff]
        %v2361 = vld [vmem:[%s1239 + $0xf0] sm:$0xff]
        %v2362 = vld [vmem:[%s1239 + $0xf8] sm:$0xff]
        %v2363 = vld [vmem:[%s1068] sm:$0xf]
        %v2365 = vlaneseq
        %v2366 = vshrl.u32 %v2365, 7
        %v2367 = vsub.s32 0, %v2366
        %v2368 = vrot.slane %v2363, %v2367
        %v2369 = vlaneseq
        %v2370 = vshrl.u32 %v2369, 7
        %v2371 = vsub.s32 1, %v2370
        %v2372 = vrot.slane %v2363, %v2371
        %v2373 = vlaneseq
        %v2374 = vshrl.u32 %v2373, 7
        %v2375 = vsub.s32 2, %v2374
        %v2376 = vrot.slane %v2363, %v2375
        %v2377 = vlaneseq
        %v2378 = vshrl.u32 %v2377, 7
        %v2379 = vsub.s32 3, %v2378
        %v2380 = vrot.slane %v2363, %v2379
        %v2417 = vunpack.c.l.b16 %v2331
        %v2418 = vunpack.c.h.b16 %v2331
        %v2419 = vunpack.c.l.b16 %v2332
        %v2420 = vunpack.c.h.b16 %v2332
        %v2421 = vunpack.c.l.b16 %v2333
        %v2422 = vunpack.c.h.b16 %v2333
        %v2423 = vunpack.c.l.b16 %v2334
        %v2424 = vunpack.c.h.b16 %v2334
        %v2425 = vunpack.c.l.b16 %v2335
        %v2426 = vunpack.c.h.b16 %v2335
        %v2427 = vunpack.c.l.b16 %v2336
        %v2428 = vunpack.c.h.b16 %v2336
        %v2429 = vunpack.c.l.b16 %v2337
        %v2430 = vunpack.c.h.b16 %v2337
        %v2431 = vunpack.c.l.b16 %v2338
        %v2432 = vunpack.c.h.b16 %v2338
        %v2433 = vunpack.c.l.b16 %v2339
        %v2434 = vunpack.c.h.b16 %v2339
        %v2435 = vunpack.c.l.b16 %v2340
        %v2436 = vunpack.c.h.b16 %v2340
        %v2437 = vunpack.c.l.b16 %v2341
        %v2438 = vunpack.c.h.b16 %v2341
        %v2439 = vunpack.c.l.b16 %v2342
        %v2440 = vunpack.c.h.b16 %v2342
        %v2441 = vunpack.c.l.b16 %v2343
        %v2442 = vunpack.c.h.b16 %v2343
        %v2443 = vunpack.c.l.b16 %v2344
        %v2444 = vunpack.c.h.b16 %v2344
        %v2445 = vunpack.c.l.b16 %v2345
        %v2446 = vunpack.c.h.b16 %v2345
        %v2447 = vunpack.c.l.b16 %v2346
        %v2448 = vunpack.c.h.b16 %v2346
        %v2449 = vunpack.c.l.b16 %v2347
        %v2450 = vunpack.c.h.b16 %v2347
        %v2451 = vunpack.c.l.b16 %v2348
        %v2452 = vunpack.c.h.b16 %v2348
        %v2453 = vunpack.c.l.b16 %v2349
        %v2454 = vunpack.c.h.b16 %v2349
        %v2455 = vunpack.c.l.b16 %v2350
        %v2456 = vunpack.c.h.b16 %v2350
        %v2457 = vunpack.c.l.b16 %v2351
        %v2458 = vunpack.c.h.b16 %v2351
        %v2459 = vunpack.c.l.b16 %v2352
        %v2460 = vunpack.c.h.b16 %v2352
        %v2461 = vunpack.c.l.b16 %v2353
        %v2462 = vunpack.c.h.b16 %v2353
        %v2463 = vunpack.c.l.b16 %v2354
        %v2464 = vunpack.c.h.b16 %v2354
        %v2465 = vunpack.c.l.b16 %v2355
        %v2466 = vunpack.c.h.b16 %v2355
        %v2467 = vunpack.c.l.b16 %v2356
        %v2468 = vunpack.c.h.b16 %v2356
        %v2469 = vunpack.c.l.b16 %v2357
        %v2470 = vunpack.c.h.b16 %v2357
        %v2471 = vunpack.c.l.b16 %v2358
        %v2472 = vunpack.c.h.b16 %v2358
        %v2473 = vunpack.c.l.b16 %v2359
        %v2474 = vunpack.c.h.b16 %v2359
        %v2475 = vunpack.c.l.b16 %v2360
        %v2476 = vunpack.c.h.b16 %v2360
        %v2477 = vunpack.c.l.b16 %v2361
        %v2478 = vunpack.c.h.b16 %v2361
        %v2479 = vunpack.c.l.b16 %v2362
        %v2480 = vunpack.c.h.b16 %v2362
        %v2481 = vpack.c.b16 %v2421, %v2417
        %v2482 = vpack.c.b16 %v2422, %v2418
        %v2483 = vpack.c.b16 %v2423, %v2419
        %v2484 = vpack.c.b16 %v2424, %v2420
        %v2485 = vpack.c.b16 %v2429, %v2425
        %v2486 = vpack.c.b16 %v2430, %v2426
        %v2487 = vpack.c.b16 %v2431, %v2427
        %v2488 = vpack.c.b16 %v2432, %v2428
        %v2489 = vpack.c.b16 %v2437, %v2433
        %v2490 = vpack.c.b16 %v2438, %v2434
        %v2491 = vpack.c.b16 %v2439, %v2435
        %v2492 = vpack.c.b16 %v2440, %v2436
        %v2493 = vpack.c.b16 %v2445, %v2441
        %v2494 = vpack.c.b16 %v2446, %v2442
        %v2495 = vpack.c.b16 %v2447, %v2443
        %v2496 = vpack.c.b16 %v2448, %v2444
        %v2497 = vpack.c.b16 %v2453, %v2449
        %v2498 = vpack.c.b16 %v2454, %v2450
        %v2499 = vpack.c.b16 %v2455, %v2451
        %v2500 = vpack.c.b16 %v2456, %v2452
        %v2501 = vpack.c.b16 %v2461, %v2457
        %v2502 = vpack.c.b16 %v2462, %v2458
        %v2503 = vpack.c.b16 %v2463, %v2459
        %v2504 = vpack.c.b16 %v2464, %v2460
        %v2505 = vpack.c.b16 %v2469, %v2465
        %v2506 = vpack.c.b16 %v2470, %v2466
        %v2507 = vpack.c.b16 %v2471, %v2467
        %v2508 = vpack.c.b16 %v2472, %v2468
        %v2509 = vpack.c.b16 %v2477, %v2473
        %v2510 = vpack.c.b16 %v2478, %v2474
        %v2511 = vpack.c.b16 %v2479, %v2475
        %v2512 = vpack.c.b16 %v2480, %v2476
        %2545 = vmatprep.subr.bf16.mxu0 %v2510
        %2546 = vmatpush1.bf16.msra.mxu0 %v2509
        %2547 = vmatprep.subr.bf16.mxu0 %v2506
        %2548 = vmatpush1.bf16.msra.mxu0 %v2505
        %2549 = vmatprep.subr.bf16.mxu0 %v2502
        %2550 = vmatpush1.bf16.msra.mxu0 %v2501
        %2551 = vmatprep.subr.bf16.mxu0 %v2498
        %2552 = vmatpush1.bf16.msra.mxu0 %v2497
        %2553 = vmatprep.subr.bf16.mxu0 %v2494
        %2554 = vmatpush1.bf16.msra.mxu0 %v2493
        %2555 = vmatprep.subr.bf16.mxu0 %v2490
        %2556 = vmatpush1.bf16.msra.mxu0 %v2489
        %2557 = vmatprep.subr.bf16.mxu0 %v2486
        %2558 = vmatpush1.bf16.msra.mxu0 %v2485
        %2559 = vmatprep.subr.bf16.mxu0 %v2482
        %2560 = vmatpush1.bf16.msra.mxu0 %v2481
        %2561 = vmatprep.subr.bf16.mxu0 0
        %2562 = vmatpush2.bf16.msra.mxu0 0
        %2563 = vmatprep.subr.bf16.mxu0 0
        %2564 = vmatpush2.bf16.msra.mxu0 0
        %2565 = vmatprep.subr.bf16.mxu0 0
        %2566 = vmatpush2.bf16.msra.mxu0 0
        %2567 = vmatprep.subr.bf16.mxu0 0
        %2568 = vmatpush2.bf16.msra.mxu0 0
        %2569 = vmatprep.subr.bf16.mxu0 0
        %2570 = vmatpush2.bf16.msra.mxu0 0
        %2571 = vmatprep.subr.bf16.mxu0 0
        %2572 = vmatpush2.bf16.msra.mxu0 0
        %2573 = vmatprep.subr.bf16.mxu0 0
        %2574 = vmatpush2.bf16.msra.mxu0 0
        %2575 = vmatprep.subr.bf16.mxu0 0
        %2576 = vmatpush2.bf16.msra.mxu0 0
        %2577 = vmatprep.mubr.bf16.mxu0 0
        %2578 = vmatmul.mubr.bf16.gmra.mxu0 %v2330
        %v2579 = vpop.f32.mrf.mxu0
        %v2580 = vadd.f32 %v2368, %v2579
        %v2581 = vpop.f32.mrf.mxu0
        %v2582 = vadd.f32 %v2372, %v2581
        %v2583 = vpop.f32.mrf.mxu0
        %v2584 = vpop.f32.mrf.mxu0
        %2585 = vdwg.mxu0
        %2586 = vmatprep.subr.bf16.mxu0 %v2512
        %2587 = vmatpush1.bf16.msra.mxu0 %v2511
        %2588 = vmatprep.subr.bf16.mxu0 %v2508
        %2589 = vmatpush1.bf16.msra.mxu0 %v2507
        %2590 = vmatprep.subr.bf16.mxu0 %v2504
        %2591 = vmatpush1.bf16.msra.mxu0 %v2503
        %2592 = vmatprep.subr.bf16.mxu0 %v2500
        %2593 = vmatpush1.bf16.msra.mxu0 %v2499
        %2594 = vmatprep.subr.bf16.mxu0 %v2496
        %2595 = vmatpush1.bf16.msra.mxu0 %v2495
        %2596 = vmatprep.subr.bf16.mxu0 %v2492
        %2597 = vmatpush1.bf16.msra.mxu0 %v2491
        %2598 = vmatprep.subr.bf16.mxu0 %v2488
        %2599 = vmatpush1.bf16.msra.mxu0 %v2487
        %2600 = vmatprep.subr.bf16.mxu0 %v2484
        %2601 = vmatpush1.bf16.msra.mxu0 %v2483
        %2602 = vmatprep.subr.bf16.mxu0 0
        %2603 = vmatpush2.bf16.msra.mxu0 0
        %2604 = vmatprep.subr.bf16.mxu0 0
        %2605 = vmatpush2.bf16.msra.mxu0 0
        %2606 = vmatprep.subr.bf16.mxu0 0
        %2607 = vmatpush2.bf16.msra.mxu0 0
        %2608 = vmatprep.subr.bf16.mxu0 0
        %2609 = vmatpush2.bf16.msra.mxu0 0
        %2610 = vmatprep.subr.bf16.mxu0 0
        %2611 = vmatpush2.bf16.msra.mxu0 0
        %2612 = vmatprep.subr.bf16.mxu0 0
        %2613 = vmatpush2.bf16.msra.mxu0 0
        %2614 = vmatprep.subr.bf16.mxu0 0
        %2615 = vmatpush2.bf16.msra.mxu0 0
        %2616 = vmatprep.subr.bf16.mxu0 0
        %2617 = vmatpush2.bf16.msra.mxu0 0
        %2618 = vmatprep.mubr.bf16.mxu0 0
        %2619 = vmatmul.mubr.bf16.gmra.mxu0 %v2330
        %v2620 = vpop.f32.mrf.mxu0
        %v2621 = vadd.f32 %v2376, %v2620
        %v2622 = vpop.f32.mrf.mxu0
        %v2623 = vadd.f32 %v2380, %v2622
        %v2624 = vpop.f32.mrf.mxu0
        %v2625 = vpop.f32.mrf.mxu0
        %2626 = vdwg.mxu0
        %v2627 = vmul.f32 %v2580, 1.702
        %v2628 = vmul.f32 %v2582, 1.702
        %v2629 = vmul.f32 %v2621, 1.702
        %v2630 = vmul.f32 %v2623, 1.702
        %v2631 = vxor.u32 %v2627, 2147483648
        %v2632 = vxor.u32 %v2628, 2147483648
        %v2633 = vxor.u32 %v2629, 2147483648
        %v2634 = vxor.u32 %v2630, 2147483648
        %v2635 = vmul.f32 %v2631, 1.442695
        %v2636 = vpow.pop %v2635
        %v2637 = vmul.f32 %v2632, 1.442695
        %v2638 = vpow.pop %v2637
        %v2639 = vmul.f32 %v2633, 1.442695
        %v2640 = vpow.pop %v2639
        %v2641 = vmul.f32 %v2634, 1.442695
        %v2642 = vpow.pop %v2641
        %v2643 = vadd.f32 %v2636, 1.0
        %v2644 = vadd.f32 %v2638, 1.0
        %v2645 = vadd.f32 %v2640, 1.0
        %v2646 = vadd.f32 %v2642, 1.0
        %v2647 = vrcp.pop %v2643
        %v2648 = vmul.f32 1.0, %v2647
        %v2649 = vrcp.pop %v2644
        %v2650 = vmul.f32 1.0, %v2649
        %v2651 = vrcp.pop %v2645
        %v2652 = vmul.f32 1.0, %v2651
        %v2653 = vrcp.pop %v2646
        %v2654 = vmul.f32 1.0, %v2653
        %v2655 = vmul.f32 %v2580, %v2648
        %v2656 = vmul.f32 %v2582, %v2650
        %v2657 = vmul.f32 %v2621, %v2652
        %v2658 = vmul.f32 %v2623, %v2654
        %v2659 = vpack.c.bf16 %v2655, %v2655
        %v2660 = vpack.c.bf16 %v2656, %v2656
        %v2661 = vpack.c.bf16 %v2657, %v2657
        %v2662 = vpack.c.bf16 %v2658, %v2658
        %v2663 = vld [vmem:[%s1077] sm:$0xf]
        %v2664 = vld [vmem:[%s1077 + $0x4] sm:$0xf]
        %v2665 = vld [vmem:[%s1077 + $0x8] sm:$0xf]
        %v2666 = vld [vmem:[%s1077 + $0xc] sm:$0xf]
        %v2667 = vld [vmem:[%s1077 + $0x10] sm:$0xf]
        %v2668 = vld [vmem:[%s1077 + $0x14] sm:$0xf]
        %v2669 = vld [vmem:[%s1077 + $0x18] sm:$0xf]
        %v2670 = vld [vmem:[%s1077 + $0x1c] sm:$0xf]
        %v2671 = vld [vmem:[%s1077 + $0x20] sm:$0xf]
        %v2672 = vld [vmem:[%s1077 + $0x24] sm:$0xf]
        %v2673 = vld [vmem:[%s1077 + $0x28] sm:$0xf]
        %v2674 = vld [vmem:[%s1077 + $0x2c] sm:$0xf]
        %v2675 = vld [vmem:[%s1077 + $0x30] sm:$0xf]
        %v2676 = vld [vmem:[%s1077 + $0x34] sm:$0xf]
        %v2677 = vld [vmem:[%s1077 + $0x38] sm:$0xf]
        %v2678 = vld [vmem:[%s1077 + $0x3c] sm:$0xf]
        %v2679 = vld [vmem:[%s1077 + $0x40] sm:$0xf]
        %v2680 = vld [vmem:[%s1077 + $0x44] sm:$0xf]
        %v2681 = vld [vmem:[%s1077 + $0x48] sm:$0xf]
        %v2682 = vld [vmem:[%s1077 + $0x4c] sm:$0xf]
        %v2683 = vld [vmem:[%s1077 + $0x50] sm:$0xf]
        %v2684 = vld [vmem:[%s1077 + $0x54] sm:$0xf]
        %v2685 = vld [vmem:[%s1077 + $0x58] sm:$0xf]
        %v2686 = vld [vmem:[%s1077 + $0x5c] sm:$0xf]
        %v2687 = vld [vmem:[%s1077 + $0x60] sm:$0xf]
        %v2688 = vld [vmem:[%s1077 + $0x64] sm:$0xf]
        %v2689 = vld [vmem:[%s1077 + $0x68] sm:$0xf]
        %v2690 = vld [vmem:[%s1077 + $0x6c] sm:$0xf]
        %v2691 = vld [vmem:[%s1077 + $0x70] sm:$0xf]
        %v2692 = vld [vmem:[%s1077 + $0x74] sm:$0xf]
        %v2693 = vld [vmem:[%s1077 + $0x78] sm:$0xf]
        %v2694 = vld [vmem:[%s1077 + $0x7c] sm:$0xf]
        %v2695 = vld [vmem:[%s1077 + $0x80] sm:$0xf]
        %v2696 = vld [vmem:[%s1077 + $0x84] sm:$0xf]
        %v2697 = vld [vmem:[%s1077 + $0x88] sm:$0xf]
        %v2698 = vld [vmem:[%s1077 + $0x8c] sm:$0xf]
        %v2699 = vld [vmem:[%s1077 + $0x90] sm:$0xf]
        %v2700 = vld [vmem:[%s1077 + $0x94] sm:$0xf]
        %v2701 = vld [vmem:[%s1077 + $0x98] sm:$0xf]
        %v2702 = vld [vmem:[%s1077 + $0x9c] sm:$0xf]
        %v2703 = vld [vmem:[%s1077 + $0xa0] sm:$0xf]
        %v2704 = vld [vmem:[%s1077 + $0xa4] sm:$0xf]
        %v2705 = vld [vmem:[%s1077 + $0xa8] sm:$0xf]
        %v2706 = vld [vmem:[%s1077 + $0xac] sm:$0xf]
        %v2707 = vld [vmem:[%s1077 + $0xb0] sm:$0xf]
        %v2708 = vld [vmem:[%s1077 + $0xb4] sm:$0xf]
        %v2709 = vld [vmem:[%s1077 + $0xb8] sm:$0xf]
        %v2710 = vld [vmem:[%s1077 + $0xbc] sm:$0xf]
        %v2711 = vld [vmem:[%s1077 + $0xc0] sm:$0xf]
        %v2712 = vld [vmem:[%s1077 + $0xc4] sm:$0xf]
        %v2713 = vld [vmem:[%s1077 + $0xc8] sm:$0xf]
        %v2714 = vld [vmem:[%s1077 + $0xcc] sm:$0xf]
        %v2715 = vld [vmem:[%s1077 + $0xd0] sm:$0xf]
        %v2716 = vld [vmem:[%s1077 + $0xd4] sm:$0xf]
        %v2717 = vld [vmem:[%s1077 + $0xd8] sm:$0xf]
        %v2718 = vld [vmem:[%s1077 + $0xdc] sm:$0xf]
        %v2719 = vld [vmem:[%s1077 + $0xe0] sm:$0xf]
        %v2720 = vld [vmem:[%s1077 + $0xe4] sm:$0xf]
        %v2721 = vld [vmem:[%s1077 + $0xe8] sm:$0xf]
        %v2722 = vld [vmem:[%s1077 + $0xec] sm:$0xf]
        %v2723 = vld [vmem:[%s1077 + $0xf0] sm:$0xf]
        %v2724 = vld [vmem:[%s1077 + $0xf4] sm:$0xf]
        %v2725 = vld [vmem:[%s1077 + $0xf8] sm:$0xf]
        %v2726 = vld [vmem:[%s1077 + $0xfc] sm:$0xf]
        %v2727 = vld [vmem:[%s1085] sm:$0x1]
        %v2729 = vlaneseq
        %v2730 = vshrl.u32 %v2729, 7
        %v2731 = vsub.s32 0, %v2730
        %v2732 = vrot.slane %v2727, %v2731
        %v2798 = vunpack.c.l.b16 %v2663
        %v2799 = vunpack.c.l.b16 %v2664
        %v2800 = vunpack.c.l.b16 %v2665
        %v2801 = vunpack.c.l.b16 %v2666
        %v2802 = vunpack.c.l.b16 %v2667
        %v2803 = vunpack.c.l.b16 %v2668
        %v2804 = vunpack.c.l.b16 %v2669
        %v2805 = vunpack.c.l.b16 %v2670
        %v2806 = vunpack.c.l.b16 %v2671
        %v2807 = vunpack.c.l.b16 %v2672
        %v2808 = vunpack.c.l.b16 %v2673
        %v2809 = vunpack.c.l.b16 %v2674
        %v2810 = vunpack.c.l.b16 %v2675
        %v2811 = vunpack.c.l.b16 %v2676
        %v2812 = vunpack.c.l.b16 %v2677
        %v2813 = vunpack.c.l.b16 %v2678
        %v2814 = vunpack.c.l.b16 %v2679
        %v2815 = vunpack.c.l.b16 %v2680
        %v2816 = vunpack.c.l.b16 %v2681
        %v2817 = vunpack.c.l.b16 %v2682
        %v2818 = vunpack.c.l.b16 %v2683
        %v2819 = vunpack.c.l.b16 %v2684
        %v2820 = vunpack.c.l.b16 %v2685
        %v2821 = vunpack.c.l.b16 %v2686
        %v2822 = vunpack.c.l.b16 %v2687
        %v2823 = vunpack.c.l.b16 %v2688
        %v2824 = vunpack.c.l.b16 %v2689
        %v2825 = vunpack.c.l.b16 %v2690
        %v2826 = vunpack.c.l.b16 %v2691
        %v2827 = vunpack.c.l.b16 %v2692
        %v2828 = vunpack.c.l.b16 %v2693
        %v2829 = vunpack.c.l.b16 %v2694
        %v2830 = vunpack.c.l.b16 %v2695
        %v2831 = vunpack.c.l.b16 %v2696
        %v2832 = vunpack.c.l.b16 %v2697
        %v2833 = vunpack.c.l.b16 %v2698
        %v2834 = vunpack.c.l.b16 %v2699
        %v2835 = vunpack.c.l.b16 %v2700
        %v2836 = vunpack.c.l.b16 %v2701
        %v2837 = vunpack.c.l.b16 %v2702
        %v2838 = vunpack.c.l.b16 %v2703
        %v2839 = vunpack.c.l.b16 %v2704
        %v2840 = vunpack.c.l.b16 %v2705
        %v2841 = vunpack.c.l.b16 %v2706
        %v2842 = vunpack.c.l.b16 %v2707
        %v2843 = vunpack.c.l.b16 %v2708
        %v2844 = vunpack.c.l.b16 %v2709
        %v2845 = vunpack.c.l.b16 %v2710
        %v2846 = vunpack.c.l.b16 %v2711
        %v2847 = vunpack.c.l.b16 %v2712
        %v2848 = vunpack.c.l.b16 %v2713
        %v2849 = vunpack.c.l.b16 %v2714
        %v2850 = vunpack.c.l.b16 %v2715
        %v2851 = vunpack.c.l.b16 %v2716
        %v2852 = vunpack.c.l.b16 %v2717
        %v2853 = vunpack.c.l.b16 %v2718
        %v2854 = vunpack.c.l.b16 %v2719
        %v2855 = vunpack.c.l.b16 %v2720
        %v2856 = vunpack.c.l.b16 %v2721
        %v2857 = vunpack.c.l.b16 %v2722
        %v2858 = vunpack.c.l.b16 %v2723
        %v2859 = vunpack.c.l.b16 %v2724
        %v2860 = vunpack.c.l.b16 %v2725
        %v2861 = vunpack.c.l.b16 %v2726
        %v2862 = vpack.c.b16 %v2799, %v2798
        %v2863 = vpack.c.b16 %v2801, %v2800
        %v2864 = vpack.c.b16 %v2803, %v2802
        %v2865 = vpack.c.b16 %v2805, %v2804
        %v2866 = vpack.c.b16 %v2807, %v2806
        %v2867 = vpack.c.b16 %v2809, %v2808
        %v2868 = vpack.c.b16 %v2811, %v2810
        %v2869 = vpack.c.b16 %v2813, %v2812
        %v2870 = vpack.c.b16 %v2815, %v2814
        %v2871 = vpack.c.b16 %v2817, %v2816
        %v2872 = vpack.c.b16 %v2819, %v2818
        %v2873 = vpack.c.b16 %v2821, %v2820
        %v2874 = vpack.c.b16 %v2823, %v2822
        %v2875 = vpack.c.b16 %v2825, %v2824
        %v2876 = vpack.c.b16 %v2827, %v2826
        %v2877 = vpack.c.b16 %v2829, %v2828
        %v2878 = vpack.c.b16 %v2831, %v2830
        %v2879 = vpack.c.b16 %v2833, %v2832
        %v2880 = vpack.c.b16 %v2835, %v2834
        %v2881 = vpack.c.b16 %v2837, %v2836
        %v2882 = vpack.c.b16 %v2839, %v2838
        %v2883 = vpack.c.b16 %v2841, %v2840
        %v2884 = vpack.c.b16 %v2843, %v2842
        %v2885 = vpack.c.b16 %v2845, %v2844
        %v2886 = vpack.c.b16 %v2847, %v2846
        %v2887 = vpack.c.b16 %v2849, %v2848
        %v2888 = vpack.c.b16 %v2851, %v2850
        %v2889 = vpack.c.b16 %v2853, %v2852
        %v2890 = vpack.c.b16 %v2855, %v2854
        %v2891 = vpack.c.b16 %v2857, %v2856
        %v2892 = vpack.c.b16 %v2859, %v2858
        %v2893 = vpack.c.b16 %v2861, %v2860
        %2926 = vmatprep.subr.bf16.mxu0 0
        %2927 = vmatpush1.bf16.msra.mxu0 %v2869
        %2928 = vmatprep.subr.bf16.mxu0 0
        %2929 = vmatpush1.bf16.msra.mxu0 %v2868
        %2930 = vmatprep.subr.bf16.mxu0 0
        %2931 = vmatpush1.bf16.msra.mxu0 %v2867
        %2932 = vmatprep.subr.bf16.mxu0 0
        %2933 = vmatpush1.bf16.msra.mxu0 %v2866
        %2934 = vmatprep.subr.bf16.mxu0 0
        %2935 = vmatpush1.bf16.msra.mxu0 %v2865
        %2936 = vmatprep.subr.bf16.mxu0 0
        %2937 = vmatpush1.bf16.msra.mxu0 %v2864
        %2938 = vmatprep.subr.bf16.mxu0 0
        %2939 = vmatpush1.bf16.msra.mxu0 %v2863
        %2940 = vmatprep.subr.bf16.mxu0 0
        %2941 = vmatpush1.bf16.msra.mxu0 %v2862
        %2942 = vmatprep.subr.bf16.mxu0 0
        %2943 = vmatpush2.bf16.msra.mxu0 %v2877
        %2944 = vmatprep.subr.bf16.mxu0 0
        %2945 = vmatpush2.bf16.msra.mxu0 %v2876
        %2946 = vmatprep.subr.bf16.mxu0 0
        %2947 = vmatpush2.bf16.msra.mxu0 %v2875
        %2948 = vmatprep.subr.bf16.mxu0 0
        %2949 = vmatpush2.bf16.msra.mxu0 %v2874
        %2950 = vmatprep.subr.bf16.mxu0 0
        %2951 = vmatpush2.bf16.msra.mxu0 %v2873
        %2952 = vmatprep.subr.bf16.mxu0 0
        %2953 = vmatpush2.bf16.msra.mxu0 %v2872
        %2954 = vmatprep.subr.bf16.mxu0 0
        %2955 = vmatpush2.bf16.msra.mxu0 %v2871
        %2956 = vmatprep.subr.bf16.mxu0 0
        %2957 = vmatpush2.bf16.msra.mxu0 %v2870
        %2958 = vmatprep.mubr.bf16.mxu0 %v2660
        %2959 = vmatmul.mubr.bf16.gmra.mxu0 %v2659
        %v2960 = vpop.f32.mrf.mxu0
        %v2961 = vadd.f32 %v2732, %v2960
        %v2962 = vpop.f32.mrf.mxu0
        %v2963 = vpop.f32.mrf.mxu0
        %v2964 = vpop.f32.mrf.mxu0
        %2965 = vdwg.mxu0
        %2966 = vmatprep.subr.bf16.mxu0 0
        %2967 = vmatpush1.bf16.msra.mxu0 %v2885
        %2968 = vmatprep.subr.bf16.mxu0 0
        %2969 = vmatpush1.bf16.msra.mxu0 %v2884
        %2970 = vmatprep.subr.bf16.mxu0 0
        %2971 = vmatpush1.bf16.msra.mxu0 %v2883
        %2972 = vmatprep.subr.bf16.mxu0 0
        %2973 = vmatpush1.bf16.msra.mxu0 %v2882
        %2974 = vmatprep.subr.bf16.mxu0 0
        %2975 = vmatpush1.bf16.msra.mxu0 %v2881
        %2976 = vmatprep.subr.bf16.mxu0 0
        %2977 = vmatpush1.bf16.msra.mxu0 %v2880
        %2978 = vmatprep.subr.bf16.mxu0 0
        %2979 = vmatpush1.bf16.msra.mxu0 %v2879
        %2980 = vmatprep.subr.bf16.mxu0 0
        %2981 = vmatpush1.bf16.msra.mxu0 %v2878
        %2982 = vmatprep.subr.bf16.mxu0 0
        %2983 = vmatpush2.bf16.msra.mxu0 %v2893
        %2984 = vmatprep.subr.bf16.mxu0 0
        %2985 = vmatpush2.bf16.msra.mxu0 %v2892
        %2986 = vmatprep.subr.bf16.mxu0 0
        %2987 = vmatpush2.bf16.msra.mxu0 %v2891
        %2988 = vmatprep.subr.bf16.mxu0 0
        %2989 = vmatpush2.bf16.msra.mxu0 %v2890
        %2990 = vmatprep.subr.bf16.mxu0 0
        %2991 = vmatpush2.bf16.msra.mxu0 %v2889
        %2992 = vmatprep.subr.bf16.mxu0 0
        %2993 = vmatpush2.bf16.msra.mxu0 %v2888
        %2994 = vmatprep.subr.bf16.mxu0 0
        %2995 = vmatpush2.bf16.msra.mxu0 %v2887
        %2996 = vmatprep.subr.bf16.mxu0 0
        %2997 = vmatpush2.bf16.msra.mxu0 %v2886
        %2998 = vmatprep.mubr.bf16.mxu0 %v2662
        %2999 = vmatmul.mubr.bf16.gmra.mxu0 %v2661
        %v3000 = vpop.f32.mrf.mxu0
        %v3001 = vadd.f32 %v2961, %v3000
        %v3002 = vpop.f32.mrf.mxu0
        %v3003 = vpop.f32.mrf.mxu0
        %v3004 = vpop.f32.mrf.mxu0
        %3005 = vdwg.mxu0
        %v3006 = vadd.f32 %v2302, %v3001
        %3007 = vst [vmem:[#allocation2] sm:$0xff] %v3006
        %p3008 = scmp.eq.s32.totalorder %s48, 1
        // Predicated region
        $region193: #{clip_vit_image_encoder.1} parent=119 // pred_check
          %p3009 = pneg %p3008
        $region194: #{clip_vit_image_encoder.1} parent=119 // pred_check_branch
          %3011 = sbr.rel (%p3009) target = $region196
        $region195: #{clip_vit_image_encoder.1} parent=119 // pred_region
          %v3012 = vld [vmem:[#allocation2] sm:$0x1]
          %v3013 = vld [vmem:[%s18] sm:$0x1]
          %v3014 = vld [vmem:[%s19] sm:$0x1]
          %vm3015 = vcmask 1040384
          %v3016 = vsel %vm3015, %v3012, 0.0
          %3017 = vadd.xlane.f32.xlu0 %v3016
          %v3018 = vpop.xlane.xlu0 %3017
          %v3019 = vmul.f32 %v3018, %v1435
          %v3020 = vsub.f32 %v3012, %v3019
          %v3021 = vmul.f32 %v3020, %v3020
          %v3022 = vsel %vm3015, %v3021, 0.0
          %3023 = vadd.xlane.f32.xlu0 %v3022
          %v3024 = vpop.xlane.xlu0 %3023
          %v3025 = vmul.f32 %v3024, %v1435
          %v3026 = vadd.f32 %v3025, 1e-05
          %v3027 = vrsqrt.pop %v3026
          %v3028 = vmul.f32 %v3020, %v3027
          %v3029 = vmul.f32 %v3028, %v3013
          %v3030 = vadd.f32 %v3029, %v3014
          %v3031 = vpack.c.bf16 %v3030, %v3030
          %v3032 = vld [vmem:[#allocation19] sm:$0xf]
          %v3033 = vld [vmem:[#allocation19 + $0x4] sm:$0xf]
          %v3034 = vld [vmem:[#allocation19 + $0x8] sm:$0xf]
          %v3035 = vld [vmem:[#allocation19 + $0xc] sm:$0xf]
          %v3036 = vld [vmem:[#allocation19 + $0x10] sm:$0xf]
          %v3037 = vld [vmem:[#allocation19 + $0x14] sm:$0xf]
          %v3038 = vld [vmem:[#allocation19 + $0x18] sm:$0xf]
          %v3039 = vld [vmem:[#allocation19 + $0x1c] sm:$0xf]
          %v3040 = vld [vmem:[#allocation19 + $0x20] sm:$0xf]
          %v3041 = vld [vmem:[#allocation19 + $0x24] sm:$0xf]
          %v3042 = vld [vmem:[#allocation19 + $0x28] sm:$0xf]
          %v3043 = vld [vmem:[#allocation19 + $0x2c] sm:$0xf]
          %v3044 = vld [vmem:[#allocation19 + $0x30] sm:$0xf]
          %v3045 = vld [vmem:[#allocation19 + $0x34] sm:$0xf]
          %v3046 = vld [vmem:[#allocation19 + $0x38] sm:$0xf]
          %v3047 = vld [vmem:[#allocation19 + $0x3c] sm:$0xf]
          %v3064 = vunpack.c.l.b16 %v3032
          %v3065 = vunpack.c.l.b16 %v3033
          %v3066 = vunpack.c.l.b16 %v3034
          %v3067 = vunpack.c.l.b16 %v3035
          %v3068 = vunpack.c.l.b16 %v3036
          %v3069 = vunpack.c.l.b16 %v3037
          %v3070 = vunpack.c.l.b16 %v3038
          %v3071 = vunpack.c.l.b16 %v3039
          %v3072 = vunpack.c.l.b16 %v3040
          %v3073 = vunpack.c.l.b16 %v3041
          %v3074 = vunpack.c.l.b16 %v3042
          %v3075 = vunpack.c.l.b16 %v3043
          %v3076 = vunpack.c.l.b16 %v3044
          %v3077 = vunpack.c.l.b16 %v3045
          %v3078 = vunpack.c.l.b16 %v3046
          %v3079 = vunpack.c.l.b16 %v3047
          %v3080 = vpack.c.b16 %v3065, %v3064
          %v3081 = vpack.c.b16 %v3067, %v3066
          %v3082 = vpack.c.b16 %v3069, %v3068
          %v3083 = vpack.c.b16 %v3071, %v3070
          %v3084 = vpack.c.b16 %v3073, %v3072
          %v3085 = vpack.c.b16 %v3075, %v3074
          %v3086 = vpack.c.b16 %v3077, %v3076
          %v3087 = vpack.c.b16 %v3079, %v3078
          %3096 = vmatprep.subr.bf16.mxu0 0
          %3097 = vmatpush1.bf16.msra.mxu0 %v3087
          %3098 = vmatprep.subr.bf16.mxu0 0
          %3099 = vmatpush1.bf16.msra.mxu0 %v3086
          %3100 = vmatprep.subr.bf16.mxu0 0
          %3101 = vmatpush1.bf16.msra.mxu0 %v3085
          %3102 = vmatprep.subr.bf16.mxu0 0
          %3103 = vmatpush1.bf16.msra.mxu0 %v3084
          %3104 = vmatprep.subr.bf16.mxu0 0
          %3105 = vmatpush1.bf16.msra.mxu0 %v3083
          %3106 = vmatprep.subr.bf16.mxu0 0
          %3107 = vmatpush1.bf16.msra.mxu0 %v3082
          %3108 = vmatprep.subr.bf16.mxu0 0
          %3109 = vmatpush1.bf16.msra.mxu0 %v3081
          %3110 = vmatprep.subr.bf16.mxu0 0
          %3111 = vmatpush1.bf16.msra.mxu0 %v3080
          %3112 = vmatprep.subr.bf16.mxu0 0
          %3113 = vmatpush2.bf16.msra.mxu0 0
          %3114 = vmatprep.subr.bf16.mxu0 0
          %3115 = vmatpush2.bf16.msra.mxu0 0
          %3116 = vmatprep.subr.bf16.mxu0 0
          %3117 = vmatpush2.bf16.msra.mxu0 0
          %3118 = vmatprep.subr.bf16.mxu0 0
          %3119 = vmatpush2.bf16.msra.mxu0 0
          %3120 = vmatprep.subr.bf16.mxu0 0
          %3121 = vmatpush2.bf16.msra.mxu0 0
          %3122 = vmatprep.subr.bf16.mxu0 0
          %3123 = vmatpush2.bf16.msra.mxu0 0
          %3124 = vmatprep.subr.bf16.mxu0 0
          %3125 = vmatpush2.bf16.msra.mxu0 0
          %3126 = vmatprep.subr.bf16.mxu0 0
          %3127 = vmatpush2.bf16.msra.mxu0 0
          %3128 = vmatprep.mubr.bf16.mxu0 0
          %3129 = vmatmul.mubr.bf16.gmra.mxu0 %v3031
          %v3130 = vpop.f32.mrf.mxu0
          %v3131 = vadd.f32 0.0, %v3130
          %v3132 = vpop.f32.mrf.mxu0
          %v3133 = vpop.f32.mrf.mxu0
          %v3134 = vpop.f32.mrf.mxu0
          %3135 = vdwg.mxu0
          %v3136 = vpack.c.bf16 %v3131, %v3131
          %v3137 = vld [vmem:[#allocation20] sm:$0xf]
          %v3138 = vld [vmem:[#allocation20 + $0x4] sm:$0xf]
          %v3139 = vld [vmem:[#allocation20 + $0x8] sm:$0xf]
          %v3140 = vld [vmem:[#allocation20 + $0xc] sm:$0xf]
          %v3141 = vld [vmem:[#allocation20 + $0x10] sm:$0xf]
          %v3142 = vld [vmem:[#allocation20 + $0x14] sm:$0xf]
          %v3143 = vld [vmem:[#allocation20 + $0x18] sm:$0xf]
          %v3144 = vld [vmem:[#allocation20 + $0x1c] sm:$0xf]
          %v3145 = vld [vmem:[#allocation20 + $0x20] sm:$0xf]
          %v3146 = vld [vmem:[#allocation20 + $0x24] sm:$0xf]
          %v3147 = vld [vmem:[#allocation20 + $0x28] sm:$0xf]
          %v3148 = vld [vmem:[#allocation20 + $0x2c] sm:$0xf]
          %v3149 = vld [vmem:[#allocation20 + $0x30] sm:$0xf]
          %v3150 = vld [vmem:[#allocation20 + $0x34] sm:$0xf]
          %v3151 = vld [vmem:[#allocation20 + $0x38] sm:$0xf]
          %v3152 = vld [vmem:[#allocation20 + $0x3c] sm:$0xf]
          %v3153 = vld [vmem:[#allocation22] sm:$0x1]
          %v3170 = vunpack.c.l.b16 %v3137
          %v3171 = vunpack.c.l.b16 %v3138
          %v3172 = vunpack.c.l.b16 %v3139
          %v3173 = vunpack.c.l.b16 %v3140
          %v3174 = vunpack.c.l.b16 %v3141
          %v3175 = vunpack.c.l.b16 %v3142
          %v3176 = vunpack.c.l.b16 %v3143
          %v3177 = vunpack.c.l.b16 %v3144
          %v3178 = vunpack.c.l.b16 %v3145
          %v3179 = vunpack.c.l.b16 %v3146
          %v3180 = vunpack.c.l.b16 %v3147
          %v3181 = vunpack.c.l.b16 %v3148
          %v3182 = vunpack.c.l.b16 %v3149
          %v3183 = vunpack.c.l.b16 %v3150
          %v3184 = vunpack.c.l.b16 %v3151
          %v3185 = vunpack.c.l.b16 %v3152
          %v3186 = vpack.c.b16 %v3171, %v3170
          %v3187 = vpack.c.b16 %v3173, %v3172
          %v3188 = vpack.c.b16 %v3175, %v3174
          %v3189 = vpack.c.b16 %v3177, %v3176
          %v3190 = vpack.c.b16 %v3179, %v3178
          %v3191 = vpack.c.b16 %v3181, %v3180
          %v3192 = vpack.c.b16 %v3183, %v3182
          %v3193 = vpack.c.b16 %v3185, %v3184
          %3202 = vmatprep.subr.bf16.mxu0 0
          %3203 = vmatpush1.bf16.msra.mxu0 %v3193
          %3204 = vmatprep.subr.bf16.mxu0 0
          %3205 = vmatpush1.bf16.msra.mxu0 %v3192
          %3206 = vmatprep.subr.bf16.mxu0 0
          %3207 = vmatpush1.bf16.msra.mxu0 %v3191
          %3208 = vmatprep.subr.bf16.mxu0 0
          %3209 = vmatpush1.bf16.msra.mxu0 %v3190
          %3210 = vmatprep.subr.bf16.mxu0 0
          %3211 = vmatpush1.bf16.msra.mxu0 %v3189
          %3212 = vmatprep.subr.bf16.mxu0 0
          %3213 = vmatpush1.bf16.msra.mxu0 %v3188
          %3214 = vmatprep.subr.bf16.mxu0 0
          %3215 = vmatpush1.bf16.msra.mxu0 %v3187
          %3216 = vmatprep.subr.bf16.mxu0 0
          %3217 = vmatpush1.bf16.msra.mxu0 %v3186
          %3218 = vmatprep.subr.bf16.mxu0 0
          %3219 = vmatpush2.bf16.msra.mxu0 0
          %3220 = vmatprep.subr.bf16.mxu0 0
          %3221 = vmatpush2.bf16.msra.mxu0 0
          %3222 = vmatprep.subr.bf16.mxu0 0
          %3223 = vmatpush2.bf16.msra.mxu0 0
          %3224 = vmatprep.subr.bf16.mxu0 0
          %3225 = vmatpush2.bf16.msra.mxu0 0
          %3226 = vmatprep.subr.bf16.mxu0 0
          %3227 = vmatpush2.bf16.msra.mxu0 0
          %3228 = vmatprep.subr.bf16.mxu0 0
          %3229 = vmatpush2.bf16.msra.mxu0 0
          %3230 = vmatprep.subr.bf16.mxu0 0
          %3231 = vmatpush2.bf16.msra.mxu0 0
          %3232 = vmatprep.subr.bf16.mxu0 0
          %3233 = vmatpush2.bf16.msra.mxu0 0
          %3234 = vmatprep.mubr.bf16.mxu0 0
          %3235 = vmatmul.mubr.bf16.gmra.mxu0 %v3136
          %v3236 = vpop.f32.mrf.mxu0
          %v3237 = vadd.f32 %v3153, %v3236
          %v3238 = vpop.f32.mrf.mxu0
          %v3239 = vpop.f32.mrf.mxu0
          %v3240 = vpop.f32.mrf.mxu0
          %3241 = vdwg.mxu0
          %v3242 = vmax.f32 %v3237, 0.0
          %v3243 = vpack.c.bf16 %v3242, %v3242
          %v3244 = vld [vmem:[#allocation23] sm:$0xf]
          %v3245 = vld [vmem:[#allocation23 + $0x4] sm:$0xf]
          %v3246 = vld [vmem:[#allocation23 + $0x8] sm:$0xf]
          %v3247 = vld [vmem:[#allocation23 + $0xc] sm:$0xf]
          %v3248 = vld [vmem:[#allocation23 + $0x10] sm:$0xf]
          %v3249 = vld [vmem:[#allocation23 + $0x14] sm:$0xf]
          %v3250 = vld [vmem:[#allocation23 + $0x18] sm:$0xf]
          %v3251 = vld [vmem:[#allocation23 + $0x1c] sm:$0xf]
          %v3252 = vld [vmem:[#allocation23 + $0x20] sm:$0xf]
          %v3253 = vld [vmem:[#allocation23 + $0x24] sm:$0xf]
          %v3254 = vld [vmem:[#allocation23 + $0x28] sm:$0xf]
          %v3255 = vld [vmem:[#allocation23 + $0x2c] sm:$0xf]
          %v3256 = vld [vmem:[#allocation23 + $0x30] sm:$0xf]
          %v3257 = vld [vmem:[#allocation23 + $0x34] sm:$0xf]
          %v3258 = vld [vmem:[#allocation23 + $0x38] sm:$0xf]
          %v3259 = vld [vmem:[#allocation23 + $0x3c] sm:$0xf]
          %v3260 = vld [vmem:[#allocation25] sm:$0x1]
          %v3277 = vunpack.c.l.b16 %v3244
          %v3278 = vunpack.c.l.b16 %v3245
          %v3279 = vunpack.c.l.b16 %v3246
          %v3280 = vunpack.c.l.b16 %v3247
          %v3281 = vunpack.c.l.b16 %v3248
          %v3282 = vunpack.c.l.b16 %v3249
          %v3283 = vunpack.c.l.b16 %v3250
          %v3284 = vunpack.c.l.b16 %v3251
          %v3285 = vunpack.c.l.b16 %v3252
          %v3286 = vunpack.c.l.b16 %v3253
          %v3287 = vunpack.c.l.b16 %v3254
          %v3288 = vunpack.c.l.b16 %v3255
          %v3289 = vunpack.c.l.b16 %v3256
          %v3290 = vunpack.c.l.b16 %v3257
          %v3291 = vunpack.c.l.b16 %v3258
          %v3292 = vunpack.c.l.b16 %v3259
          %v3293 = vpack.c.b16 %v3278, %v3277
          %v3294 = vpack.c.b16 %v3280, %v3279
          %v3295 = vpack.c.b16 %v3282, %v3281
          %v3296 = vpack.c.b16 %v3284, %v3283
          %v3297 = vpack.c.b16 %v3286, %v3285
          %v3298 = vpack.c.b16 %v3288, %v3287
          %v3299 = vpack.c.b16 %v3290, %v3289
          %v3300 = vpack.c.b16 %v3292, %v3291
          %3309 = vmatprep.subr.bf16.mxu0 0
          %3310 = vmatpush1.bf16.msra.mxu0 %v3300
          %3311 = vmatprep.subr.bf16.mxu0 0
          %3312 = vmatpush1.bf16.msra.mxu0 %v3299
          %3313 = vmatprep.subr.bf16.mxu0 0
          %3314 = vmatpush1.bf16.msra.mxu0 %v3298
          %3315 = vmatprep.subr.bf16.mxu0 0
          %3316 = vmatpush1.bf16.msra.mxu0 %v3297
          %3317 = vmatprep.subr.bf16.mxu0 0
          %3318 = vmatpush1.bf16.msra.mxu0 %v3296
          %3319 = vmatprep.subr.bf16.mxu0 0
          %3320 = vmatpush1.bf16.msra.mxu0 %v3295
          %3321 = vmatprep.subr.bf16.mxu0 0
          %3322 = vmatpush1.bf16.msra.mxu0 %v3294
          %3323 = vmatprep.subr.bf16.mxu0 0
          %3324 = vmatpush1.bf16.msra.mxu0 %v3293
          %3325 = vmatprep.subr.bf16.mxu0 0
          %3326 = vmatpush2.bf16.msra.mxu0 0
          %3327 = vmatprep.subr.bf16.mxu0 0
          %3328 = vmatpush2.bf16.msra.mxu0 0
          %3329 = vmatprep.subr.bf16.mxu0 0
          %3330 = vmatpush2.bf16.msra.mxu0 0
          %3331 = vmatprep.subr.bf16.mxu0 0
          %3332 = vmatpush2.bf16.msra.mxu0 0
          %3333 = vmatprep.subr.bf16.mxu0 0
          %3334 = vmatpush2.bf16.msra.mxu0 0
          %3335 = vmatprep.subr.bf16.mxu0 0
          %3336 = vmatpush2.bf16.msra.mxu0 0
          %3337 = vmatprep.subr.bf16.mxu0 0
          %3338 = vmatpush2.bf16.msra.mxu0 0
          %3339 = vmatprep.subr.bf16.mxu0 0
          %3340 = vmatpush2.bf16.msra.mxu0 0
          %3341 = vmatprep.mubr.bf16.mxu0 0
          %3342 = vmatmul.mubr.bf16.gmra.mxu0 %v3243
          %v3343 = vpop.f32.mrf.mxu0
          %v3344 = vadd.f32 %v3260, %v3343
          %v3345 = vpop.f32.mrf.mxu0
          %v3346 = vpop.f32.mrf.mxu0
          %v3347 = vpop.f32.mrf.mxu0
          %3348 = vdwg.mxu0
          %3349 = vst [vmem:[%s1224] sm:$0x1] %v3344
        $region196: #{clip_vit_image_encoder.1} parent=119 // pred_fallthru
          _
        %s3350 = sand.u32 %s653, 1
        %s3351 = scalar_lea.sflag [#allocation6], %s3350
        %s3352 = sand.u32 %s653, 1
        %s3353 = scalar_lea.vmem [#allocation26], %s3352
        // Predicated region
        $region197: #{clip_vit_image_encoder.1} parent=119 // pred_check
          %p3354 = pneg %p663
        $region198: #{clip_vit_image_encoder.1} parent=119 // pred_check_branch
          %3356 = sbr.rel (%p3354) target = $region200
        $region199: #{clip_vit_image_encoder.1} parent=119 // pred_region
          %s3358 = ssub.s32 16, 16
          %3359 = vsyncadd %s3351, %s3358
          %s3360 = smul.addr %s47, 16
          %s3361 = scalar_lea.hbm %s25, %s3360
          %s3363 = sshll.u32 %s3353, 4
          %s3364 = int_to_ptr.vmem [resolvable:$true] %s3363
          %3366 = dma.vmem_to_hbm [thread:$0]  %s3364, 16, %s3361, %s3351
        $region200: #{clip_vit_image_encoder.1} parent=119 // pred_fallthru
          _
      $region120: #{clip_vit_image_encoder.1} parent=5 // pred_fallthru
        _
      %p3367 = scmp.le.s32.totalorder 2, %s38
      // Predicated region
      $region201: #{clip_vit_image_encoder.1} parent=5 // pred_check
        %p3368 = pneg %p3367
      $region202: #{clip_vit_image_encoder.1} parent=5 // pred_check_branch
        %3370 = sbr.rel (%p3368) target = $region204
      $region203: #{clip_vit_image_encoder.1} parent=5 // pred_region
        %s3371 = ssub.s32 %s38, 2
        // Predicated region
        $region205: #{clip_vit_image_encoder.1} parent=203 // pred_check
          %p3372 = pneg %p669
        $region206: #{clip_vit_image_encoder.1} parent=203 // pred_check_branch
          %3374 = sbr.rel (%p3372) target = $region208
        $region207: #{clip_vit_image_encoder.1} parent=203 // pred_region
          %s3375 = sand.u32 %s654, 1
          %s3376 = scalar_lea.sflag [#allocation6], %s3375
          %s3377 = sand.u32 %s654, 1
          %s3378 = scalar_lea.vmem [#allocation26], %s3377
          %3379 = dma.done %s3376, 16
        $region208: #{clip_vit_image_encoder.1} parent=203 // pred_fallthru
          _
      $region204: #{clip_vit_image_encoder.1} parent=5 // pred_fallthru
        _
    $region6: #{clip_vit_image_encoder.1} parent=1 // loop_footer
      %s42 = sadd.s32 1, %s38
    $region7: #{clip_vit_image_encoder.1} parent=1 // loop_footer_branch
      %37 = sbr.rel target = $region3
    $region8: #{clip_vit_image_encoder.1} parent=1 // loop_exit
      _
    %3380 = vsyncpa [#allocation5], 1
    %s3381 = scalar_lea.sflag [#allocation5], 1
    %3382 = vsyncpa %s3381, 1
    %3383 = vsyncpa [#allocation8], 1
    %3384 = vsyncpa [#allocation21], 1
    %3385 = vsyncpa [#allocation24], 1
    %3386 = vsyncpa [#allocation6], 1
    %s3387 = scalar_lea.sflag [#allocation6], 1
    %3388 = vsyncpa %s3387, 1

</llo_original>
